<compile_context>
chip_gen: v5e
topology: v5e:2x2
jax: 0.10.0
libtpu: 0.0.40
codegen_flags: <defaults>
</compile_context>

<pallas_src>
import functools

import jax
import jax.numpy as jnp
from jax.experimental import pallas as pl
from jax.experimental.pallas import tpu as pltpu


# ----------------------------------------------------------------------------
# Pallas kernels
# ----------------------------------------------------------------------------
def _proj_kernel(x_ref, wt_ref, b_ref, y_ref):
    """Row-tiled y = x @ wt + b, bf16 output (hoisted GRU input projections)."""
    acc = jnp.dot(x_ref[...], wt_ref[...], preferred_element_type=jnp.float32)
    y_ref[...] = (acc + b_ref[...]).astype(y_ref.dtype)


def _enc_gru_vae_kernel(xg_ref, len_ref, whh_ref, bhn_ref,
                        wml_ref, bml_ref, noise_ref, wl2h_ref, bl2h_ref,
                        mlz_ref, dech_ref, h_ref, *, chunk, hidden, latent):
    """Encoder GRU recurrence over one S-chunk + fused VAE head on last chunk.

    xg_ref:   (chunk, B, 3H) bf16  x_t@Wih + folded biases (encoder gate half)
    len_ref:  (B, 1)  i32          sorted sequence lengths
    whh_ref:  (H, 3H) bf16         recurrent weights (gates r,z,n)
    bhn_ref:  (1, H)  f32          hidden bias of the n gate
    wml/bml:  hidden2mean|hidden2logv fused (H,2L)/(1,2L)
    noise:    (B, L)  f32          reparameterization noise
    wl2h/bl2h:latent2hidden (L,H)/(1,H)
    mlz_ref:  (B, 3L) f32 out      [mean | logv | z] slab
    dech_ref: (B, H)  f32 out      decoder initial hidden
    h_ref:    (B, H)  f32 scratch  hidden carried across grid steps
    """
    H, L = hidden, latent
    B = h_ref.shape[0]
    ci = pl.program_id(0)

    @pl.when(ci == 0)
    def _():
        h_ref[...] = jnp.zeros_like(h_ref)

    lens = len_ref[...]                                   # (B, 1) i32
    whh = whh_ref[...]                                    # bf16, loaded once
    bhn = jnp.broadcast_to(bhn_ref[...], (B, H))          # hoisted broadcast
    t0 = ci * chunk

    h = h_ref[...]
    for t in range(chunk):                                # bounded static unroll
        xg = xg_ref[t].astype(jnp.float32)                # (B, 3H)
        gh = jnp.dot(h.astype(jnp.bfloat16), whh,
                     preferred_element_type=jnp.float32)  # bf16 MXU, f32 acc
        r = jax.nn.sigmoid(xg[:, 0:H] + gh[:, 0:H])
        zg = jax.nn.sigmoid(xg[:, H:2 * H] + gh[:, H:2 * H])
        n = jnp.tanh(xg[:, 2 * H:3 * H] + r * (gh[:, 2 * H:3 * H] + bhn))
        h_new = (1.0 - zg) * n + zg * h
        valid = lens > (t0 + t)                           # (B, 1) bool
        h = jnp.where(valid, h_new, h)                    # freeze past length
    h_ref[...] = h

    @pl.when(ci == pl.num_programs(0) - 1)
    def _():
        hf = h_ref[...]
        ml = (jnp.dot(hf, wml_ref[...], preferred_element_type=jnp.float32)
              + bml_ref[...])
        mean = ml[:, 0:L]
        logv = ml[:, L:2 * L]
        std = jnp.exp(0.5 * logv)
        zz = noise_ref[...] * std + mean
        mlz_ref[:, 0:L] = mean
        mlz_ref[:, L:2 * L] = logv
        mlz_ref[:, 2 * L:3 * L] = zz
        dech_ref[...] = (
            jnp.dot(zz, wl2h_ref[...], preferred_element_type=jnp.float32)
            + bl2h_ref[...])


def _dec_gru_kernel(xg_ref, len_ref, h0_ref, whh_ref, bhn_ref,
                    out_ref, h_ref, *, chunk, hidden):
    """Decoder GRU over one S-chunk; writes outputs batch-first (B, chunk, H)."""
    H = hidden
    B = h_ref.shape[0]
    ci = pl.program_id(0)

    @pl.when(ci == 0)
    def _():
        h_ref[...] = h0_ref[...]

    lens = len_ref[...]
    whh = whh_ref[...]
    bhn = jnp.broadcast_to(bhn_ref[...], (B, H))
    t0 = ci * chunk

    h = h_ref[...]
    for t in range(chunk):
        xg = xg_ref[t].astype(jnp.float32)
        gh = jnp.dot(h.astype(jnp.bfloat16), whh,
                     preferred_element_type=jnp.float32)
        r = jax.nn.sigmoid(xg[:, 0:H] + gh[:, 0:H])
        zg = jax.nn.sigmoid(xg[:, H:2 * H] + gh[:, H:2 * H])
        n = jnp.tanh(xg[:, 2 * H:3 * H] + r * (gh[:, 2 * H:3 * H] + bhn))
        h_new = (1.0 - zg) * n + zg * h
        valid = lens > (t0 + t)
        masked = jnp.where(valid, h_new, 0.0)             # pad_packed -> zeros
        out_ref[:, t:t + 1, :] = masked[:, None, :].astype(out_ref.dtype)
        h = jnp.where(valid, h_new, h)
    h_ref[...] = h


def _vocab_kernel(perm_ref, x_ref, wt_ref, b_ref, y_ref):
    """Vocab projection + log_softmax; unsort gather folded via index_map."""
    del perm_ref  # consumed by the index_maps only
    x = x_ref[0].astype(jnp.bfloat16)                     # (tS, H) cast in-kernel
    logits = (jnp.dot(x, wt_ref[...], preferred_element_type=jnp.float32)
              + b_ref[...])
    m = jnp.max(logits, axis=-1, keepdims=True)
    lse = jnp.log(jnp.sum(jnp.exp(logits - m), axis=-1, keepdims=True)) + m
    y_ref[...] = logits - lse


# ----------------------------------------------------------------------------
# Wrappers around pallas_call
# ----------------------------------------------------------------------------
_VMEM_LIMIT = 32 * 1024 * 1024  # safe on v5e/v6e/v7x; raise for big real shapes


def proj_pallas(x, wt, b, *, block_rows=512):
    """Row-tiled y = x @ wt + b -> bf16 (single block for small N)."""
    N, Din = x.shape
    Dout = wt.shape[1]
    tn = min(block_rows, N)
    return pl.pallas_call(
        _proj_kernel,
        out_shape=jax.ShapeDtypeStruct((N, Dout), jnp.bfloat16),
        grid=(pl.cdiv(N, tn),),
        in_specs=[
            pl.BlockSpec((tn, Din), lambda i: (i, 0)),
            pl.BlockSpec((Din, Dout), lambda i: (0, 0)),
            pl.BlockSpec((1, Dout), lambda i: (0, 0)),
        ],
        out_specs=pl.BlockSpec((tn, Dout), lambda i: (i, 0)),
        compiler_params=pltpu.CompilerParams(
            dimension_semantics=("parallel",),
            vmem_limit_bytes=_VMEM_LIMIT,
        ),
    )(x, wt, b)


def enc_gru_vae_pallas(xg, lens2d, whh, bhn, wml, bml, noise, wl2h, bl2h, *,
                       chunk):
    """Encoder GRU streamed over S-chunks with fused VAE head."""
    S, B, G6 = xg.shape
    G = G6 // 2
    H = whh.shape[0]
    L = noise.shape[1]
    assert S % chunk == 0
    kernel = functools.partial(_enc_gru_vae_kernel, chunk=chunk, hidden=H,
                               latent=L)
    out_shape = (
        jax.ShapeDtypeStruct((B, 3 * L), jnp.float32),   # [mean|logv|z]
        jax.ShapeDtypeStruct((B, H), jnp.float32),       # decoder h0
    )
    return pl.pallas_call(
        kernel,
        out_shape=out_shape,
        grid=(S // chunk,),
        in_specs=[
            pl.BlockSpec((chunk, B, G), lambda i: (i, 0, 0)),  # encoder half
            pl.BlockSpec((B, 1), lambda i: (0, 0)),
            pl.BlockSpec((H, G), lambda i: (0, 0)),
            pl.BlockSpec((1, H), lambda i: (0, 0)),
            pl.BlockSpec((H, 2 * L), lambda i: (0, 0)),
            pl.BlockSpec((1, 2 * L), lambda i: (0, 0)),
            pl.BlockSpec((B, L), lambda i: (0, 0)),
            pl.BlockSpec((L, H), lambda i: (0, 0)),
            pl.BlockSpec((1, H), lambda i: (0, 0)),
        ],
        out_specs=(
            pl.BlockSpec((B, 3 * L), lambda i: (0, 0)),
            pl.BlockSpec((B, H), lambda i: (0, 0)),
        ),
        scratch_shapes=[pltpu.VMEM((B, H), jnp.float32)],
        compiler_params=pltpu.CompilerParams(
            dimension_semantics=("arbitrary",),
            vmem_limit_bytes=_VMEM_LIMIT,
        ),
    )(xg, lens2d, whh, bhn, wml, bml, noise, wl2h, bl2h)


def dec_gru_pallas(xg, lens2d, h0, whh, bhn, *, chunk):
    """Decoder GRU streamed over S-chunks; batch-first (B,S,H) f32 outputs."""
    S, B, G6 = xg.shape
    G = G6 // 2
    H = whh.shape[0]
    assert S % chunk == 0
    kernel = functools.partial(_dec_gru_kernel, chunk=chunk, hidden=H)
    return pl.pallas_call(
        kernel,
        out_shape=jax.ShapeDtypeStruct((B, S, H), jnp.float32),
        grid=(S // chunk,),
        in_specs=[
            pl.BlockSpec((chunk, B, G), lambda i: (i, 0, 1)),  # decoder half
            pl.BlockSpec((B, 1), lambda i: (0, 0)),
            pl.BlockSpec((B, H), lambda i: (0, 0)),
            pl.BlockSpec((H, G), lambda i: (0, 0)),
            pl.BlockSpec((1, H), lambda i: (0, 0)),
        ],
        out_specs=pl.BlockSpec((B, chunk, H), lambda i: (0, i, 0)),
        scratch_shapes=[pltpu.VMEM((B, H), jnp.float32)],
        compiler_params=pltpu.CompilerParams(
            dimension_semantics=("arbitrary",),
            vmem_limit_bytes=_VMEM_LIMIT,
        ),
    )(xg, lens2d, h0, whh, bhn)


def vocab_logsoftmax_pallas(perm, dec_out, wt, b, *, seq_block=256):
    """Fused outputs2vocab + log_softmax.

    perm:    (B,) i32   sorted position of each original batch row (unsort
                        gather folded into the input index_map via prefetch)
    dec_out: (B_pad, S, H) f32 decoder outputs, sorted order, batch-first
    returns: (B*S, V) f32 log-probabilities in original batch order.
    """
    Bp, S, H = dec_out.shape
    V = wt.shape[1]
    B = perm.shape[0]
    tS = min(seq_block, S)
    n_sc = S // tS
    return pl.pallas_call(
        _vocab_kernel,
        out_shape=jax.ShapeDtypeStruct((B * S, V), jnp.float32),
        grid_spec=pltpu.PrefetchScalarGridSpec(
            num_scalar_prefetch=1,
            grid=(B, n_sc),
            in_specs=[
                pl.BlockSpec((1, tS, H),
                             lambda bi, sc, perm_ref: (perm_ref[bi], sc, 0)),
                pl.BlockSpec((H, V), lambda bi, sc, perm_ref: (0, 0)),
                pl.BlockSpec((1, V), lambda bi, sc, perm_ref: (0, 0)),
            ],
            out_specs=pl.BlockSpec(
                (tS, V), lambda bi, sc, perm_ref: (bi * n_sc + sc, 0)),
        ),
        compiler_params=pltpu.CompilerParams(
            dimension_semantics=("parallel", "parallel"),
            vmem_limit_bytes=_VMEM_LIMIT,
        ),
    )(perm, dec_out, wt, b)


# ----------------------------------------------------------------------------
# Parameter construction (deterministic, synthetic)
# ----------------------------------------------------------------------------
def init_params(key, vocab_size, embedding_size, hidden_size, latent_size):
    E, H, L, V = embedding_size, hidden_size, latent_size, vocab_size
    ks = jax.random.split(key, 16)
    s = 0.1

    def rnd(k, shape):
        return s * jax.random.normal(k, shape, dtype=jnp.float32)

    # raw per-gate GRU weights (gate order r, z, n), already input-major
    enc_Wih = rnd(ks[0], (3, E, H))
    enc_Whh = rnd(ks[1], (3, H, H))
    enc_bih = rnd(ks[2], (3, H))
    enc_bhh = rnd(ks[3], (3, H))
    dec_Wih = rnd(ks[4], (3, E, H))
    dec_Whh = rnd(ks[5], (3, H, H))
    dec_bih = rnd(ks[6], (3, H))
    dec_bhh = rnd(ks[7], (3, H))

    def cat_gates(w):  # (3, A, H) -> (A, 3H), gate order preserved
        return jnp.concatenate([w[0], w[1], w[2]], axis=1)

    def folded_bias(bih, bhh):  # r/z: bih+bhh pre-folded; n keeps bih only
        return jnp.concatenate([bih[0] + bhh[0], bih[1] + bhh[1], bih[2]])[None, :]

    p = {}
    p["embedding"] = rnd(ks[8], (V, E)).astype(jnp.bfloat16)
    # fused encoder+decoder input-gate projection: (E, 6H) bf16, bias (1, 6H)
    p["encdec_WihT"] = jnp.concatenate(
        [cat_gates(enc_Wih), cat_gates(dec_Wih)], axis=1).astype(jnp.bfloat16)
    p["encdec_bih"] = jnp.concatenate(
        [folded_bias(enc_bih, enc_bhh), folded_bias(dec_bih, dec_bhh)], axis=1)
    # recurrent weights in bf16 (MXU operands); gate math stays f32 in-kernel
    p["enc_WhhT"] = cat_gates(enc_Whh).astype(jnp.bfloat16)
    p["enc_bhn"] = enc_bhh[2][None, :]
    p["dec_WhhT"] = cat_gates(dec_Whh).astype(jnp.bfloat16)
    p["dec_bhn"] = dec_bhh[2][None, :]
    # fused hidden2mean | hidden2logv: (H, 2L), bias (1, 2L)
    p["h2ml_Wt"] = jnp.concatenate([rnd(ks[9], (H, L)), rnd(ks[10], (H, L))],
                                   axis=1)
    p["h2ml_b"] = jnp.concatenate([rnd(ks[11], (1, L)), rnd(ks[12], (1, L))],
                                  axis=1)
    p["l2h_Wt"] = rnd(ks[13], (L, H))
    p["l2h_b"] = rnd(ks[14], (1, H))
    # vocab projection: bf16 weight, f32 bias
    p["o2v_Wt"] = rnd(ks[15], (H, V)).astype(jnp.bfloat16)
    p["o2v_b"] = jnp.zeros((1, V), jnp.float32)
    return p


# ----------------------------------------------------------------------------
# Forward pass (classify=False path of SentenceVAE.forward)
# ----------------------------------------------------------------------------
def sentence_vae_forward(params, input_sequence, length, z_noise, *,
                         seq_chunk=8):
    """input_sequence: (B, S) int32 token ids; length: (B,) int32.

    Assumes max(length) == S so the padded decoder output length matches
    pad_packed_sequence. As in the reference repo, mean/logv/z are returned in
    length-sorted batch order while logp is unsorted to the original order.
    """
    B, S = input_sequence.shape
    H = params["enc_WhhT"].shape[0]
    E = params["embedding"].shape[1]
    L = params["h2ml_Wt"].shape[1] // 2
    assert S % seq_chunk == 0

    # sort by length, descending (matches torch.sort(length, descending=True))
    sorted_idx = jnp.argsort(-length)
    sorted_lengths = length[sorted_idx]
    ids_sorted = input_sequence[sorted_idx]

    # pad the batch to a full sublane group so GRU matmuls/stores are unmasked
    B_pad = max(8, -(-B // 8) * 8)
    pad_b = B_pad - B
    ids_pad = jnp.pad(ids_sorted, ((0, pad_b), (0, 0)))
    lens_pad = jnp.pad(sorted_lengths, (0, pad_b)).astype(jnp.int32)
    noise_pad = jnp.pad(z_noise, ((0, pad_b), (0, 0)))

    # embedding lookup directly in time-major order (transpose applied to the
    # tiny int32 id array, not to the activation)
    emb_tm = jnp.take(params["embedding"], ids_pad.T, axis=0)  # (S,B_pad,E) bf16

    # hoisted input-gate projections for BOTH GRUs in one lane-dense matmul
    xg = proj_pallas(
        emb_tm.reshape(S * B_pad, E), params["encdec_WihT"],
        params["encdec_bih"],
    ).reshape(S, B_pad, 6 * H)                                  # bf16

    lens2d = lens_pad.reshape(B_pad, 1)

    # encoder GRU + fused VAE head (mean/logv, reparameterization, latent2hidden)
    mlz, dec_h0 = enc_gru_vae_pallas(
        xg, lens2d, params["enc_WhhT"], params["enc_bhn"],
        params["h2ml_Wt"], params["h2ml_b"], noise_pad,
        params["l2h_Wt"], params["l2h_b"], chunk=seq_chunk)
    mean = mlz[:B, 0:L]
    logv = mlz[:B, L:2 * L]
    z = mlz[:B, 2 * L:3 * L]

    # decoder GRU (word_dropout=0, embedding_dropout identity in eval mode)
    dec_out = dec_gru_pallas(
        xg, lens2d, dec_h0, params["dec_WhhT"], params["dec_bhn"],
        chunk=seq_chunk)                                        # (B_pad,S,H) f32

    # vocab projection + log_softmax; unsort gather folded via scalar prefetch
    reversed_idx = jnp.argsort(sorted_idx).astype(jnp.int32)    # (B,)
    logp = vocab_logsoftmax_pallas(
        reversed_idx, dec_out, params["o2v_Wt"], params["o2v_b"])
    return logp, mean, logv, z


# ----------------------------------------------------------------------------
# Main
# ----------------------------------------------------------------------------
if __name__ == "__main__":
    vocab_size = 256       # lane-aligned (multiple of 128)
    embedding_size = 64
    hidden_size = 128      # lane-aligned
    latent_size = 16
    batch = 4
    seq = 16
    seq_chunk = 8          # GRU S-streaming chunk (static unroll per chunk)

    key = jax.random.PRNGKey(0)
    kp, kt, kz = jax.random.split(key, 3)

    params = init_params(kp, vocab_size, embedding_size, hidden_size,
                         latent_size)

    input_sequence = jax.random.randint(kt, (batch, seq), 0, vocab_size,
                                        dtype=jnp.int32)
    length = jnp.array([10, 16, 5, 13], dtype=jnp.int32)   # max == seq
    z_noise = jax.random.normal(kz, (batch, latent_size), dtype=jnp.float32)

    fwd = jax.jit(functools.partial(sentence_vae_forward, seq_chunk=seq_chunk))
    logp, mean, logv, z = fwd(params, input_sequence, length, z_noise)
    jax.block_until_ready((logp, mean, logv, z))

    assert logp.shape == (batch * seq, vocab_size)
    assert mean.shape == (batch, latent_size)
    assert logv.shape == (batch, latent_size)
    assert z.shape == (batch, latent_size)

    print("KERNEL_OK")
</pallas_src>

<mosaic_0001>
module attributes {stable_mosaic.version = 11 : i64} {
  func.func @_enc_gru_vae_kernel(%arg0: i32, %arg1: memref<8x8x384xbf16, #tpu.memory_space<vmem>>, %arg2: memref<8x1xi32, #tpu.memory_space<vmem>>, %arg3: memref<128x384xbf16, #tpu.memory_space<vmem>>, %arg4: memref<1x128xf32, #tpu.memory_space<vmem>>, %arg5: memref<128x32xf32, #tpu.memory_space<vmem>>, %arg6: memref<1x32xf32, #tpu.memory_space<vmem>>, %arg7: memref<8x16xf32, #tpu.memory_space<vmem>>, %arg8: memref<16x128xf32, #tpu.memory_space<vmem>>, %arg9: memref<1x128xf32, #tpu.memory_space<vmem>>, %arg10: memref<8x48xf32, #tpu.memory_space<vmem>>, %arg11: memref<8x128xf32, #tpu.memory_space<vmem>>, %arg12: memref<8x128xf32, #tpu.memory_space<vmem>>) attributes {dimension_semantics = [#tpu.dimension_semantics<arbitrary>], iteration_bounds = array<i64: 2>, scalar_prefetch = 0 : i64, scratch_operands = 1 : i64, tpu.core_type = #tpu.core_type<tc>, window_params = [{transform_indices = @transform_0, window_bounds = array<i64: 8, 8, 384>}, {pipeline_mode = #tpu.pipeline_mode<synchronous>, transform_indices = @transform_1, window_bounds = array<i64: 8, 1>}, {pipeline_mode = #tpu.pipeline_mode<synchronous>, transform_indices = @transform_2, window_bounds = array<i64: 128, 384>}, {pipeline_mode = #tpu.pipeline_mode<synchronous>, transform_indices = @transform_3, window_bounds = array<i64: 1, 128>}, {pipeline_mode = #tpu.pipeline_mode<synchronous>, transform_indices = @transform_4, window_bounds = array<i64: 128, 32>}, {pipeline_mode = #tpu.pipeline_mode<synchronous>, transform_indices = @transform_5, window_bounds = array<i64: 1, 32>}, {pipeline_mode = #tpu.pipeline_mode<synchronous>, transform_indices = @transform_6, window_bounds = array<i64: 8, 16>}, {pipeline_mode = #tpu.pipeline_mode<synchronous>, transform_indices = @transform_7, window_bounds = array<i64: 16, 128>}, {pipeline_mode = #tpu.pipeline_mode<synchronous>, transform_indices = @transform_8, window_bounds = array<i64: 1, 128>}, {pipeline_mode = #tpu.pipeline_mode<synchronous>, transform_indices = @transform_9, window_bounds = array<i64: 8, 48>}, {pipeline_mode = #tpu.pipeline_mode<synchronous>, transform_indices = @transform_10, window_bounds = array<i64: 8, 128>}]} {
    %c0_i32 = arith.constant 0 : i32
    %0 = arith.cmpi eq, %arg0, %c0_i32 : i32
    %1 = arith.extui %0 : i1 to i32
    %c0_i32_0 = arith.constant 0 : i32
    %2 = arith.cmpi ne, %1, %c0_i32_0 : i32
    scf.if %2 {
      %cst_61 = arith.constant 0.000000e+00 : f32
      %318 = vector.broadcast %cst_61 : f32 to vector<8x128xf32>
      %c0_62 = arith.constant 0 : index
      %c0_63 = arith.constant 0 : index
      %319 = vector.load %arg12[%c0_62, %c0_63] : memref<8x128xf32, #tpu.memory_space<vmem>>, vector<8x128xf32>
      tpu.vector_store %arg12[%c0_62, %c0_63], %318 {strides = array<i32>} : memref<8x128xf32, #tpu.memory_space<vmem>>, vector<8x128xf32>,
    } else {
    }
    %c0 = arith.constant 0 : index
    %c0_1 = arith.constant 0 : index
    %3 = vector.load %arg2[%c0, %c0_1] : memref<8x1xi32, #tpu.memory_space<vmem>>, vector<8x1xi32>
    %c0_2 = arith.constant 0 : index
    %c0_3 = arith.constant 0 : index
    %4 = vector.load %arg3[%c0_2, %c0_3] : memref<128x384xbf16, #tpu.memory_space<vmem>>, vector<128x384xbf16>
    %c0_4 = arith.constant 0 : index
    %c0_5 = arith.constant 0 : index
    %5 = vector.load %arg4[%c0_4, %c0_5] : memref<1x128xf32, #tpu.memory_space<vmem>>, vector<1x128xf32>
    %6 = vector.shape_cast %5 : vector<1x128xf32> to vector<1x128xf32>
    %7 = vector.broadcast %6 : vector<1x128xf32> to vector<8x128xf32>
    %c8_i32 = arith.constant 8 : i32
    %8 = arith.muli %arg0, %c8_i32 : i32
    %c0_6 = arith.constant 0 : index
    %c0_7 = arith.constant 0 : index
    %9 = vector.load %arg12[%c0_6, %c0_7] : memref<8x128xf32, #tpu.memory_space<vmem>>, vector<8x128xf32>
    %c0_8 = arith.constant 0 : index
    %c0_9 = arith.constant 0 : index
    %c0_10 = arith.constant 0 : index
    %10 = vector.load %arg1[%c0_8, %c0_9, %c0_10] : memref<8x8x384xbf16, #tpu.memory_space<vmem>>, vector<1x8x384xbf16>
    %11 = vector.shape_cast %10 : vector<1x8x384xbf16> to vector<8x384xbf16>
    %12 = arith.extf %11 : vector<8x384xbf16> to vector<8x384xf32>
    %13 = arith.truncf %9 : vector<8x128xf32> to vector<8x128xbf16>
    %cst = arith.constant dense<0.000000e+00> : vector<8x384xf32>
    %14 = tpu.matmul %13, %4, %cst {dimension_numbers = #tpu.dot_dimension_numbers<[1], [0], [0], [1], [0, 0, 1, 1], [], []>} : vector<8x128xbf16>, vector<128x384xbf16>, vector<8x384xf32> -> vector<8x384xf32>
    %15 = vector.extract_strided_slice %12 {offsets = [0, 0], sizes = [8, 128], strides = [1, 1]} : vector<8x384xf32> to vector<8x128xf32>
    %16 = vector.extract_strided_slice %14 {offsets = [0, 0], sizes = [8, 128], strides = [1, 1]} : vector<8x384xf32> to vector<8x128xf32>
    %17 = arith.addf %15, %16 : vector<8x128xf32>
    %18 = arith.negf %17 : vector<8x128xf32>
    %19 = math.exp %18 : vector<8x128xf32>
    %cst_11 = arith.constant 1.000000e+00 : f32
    %20 = vector.broadcast %cst_11 : f32 to vector<8x128xf32>
    %21 = arith.addf %20, %19 : vector<8x128xf32>
    %22 = arith.divf %20, %21 : vector<8x128xf32>
    %23 = vector.extract_strided_slice %12 {offsets = [0, 128], sizes = [8, 128], strides = [1, 1]} : vector<8x384xf32> to vector<8x128xf32>
    %24 = vector.extract_strided_slice %14 {offsets = [0, 128], sizes = [8, 128], strides = [1, 1]} : vector<8x384xf32> to vector<8x128xf32>
    %25 = arith.addf %23, %24 : vector<8x128xf32>
    %26 = arith.negf %25 : vector<8x128xf32>
    %27 = math.exp %26 : vector<8x128xf32>
    %cst_12 = arith.constant 1.000000e+00 : f32
    %28 = vector.broadcast %cst_12 : f32 to vector<8x128xf32>
    %29 = arith.addf %28, %27 : vector<8x128xf32>
    %30 = arith.divf %28, %29 : vector<8x128xf32>
    %31 = vector.extract_strided_slice %12 {offsets = [0, 256], sizes = [8, 128], strides = [1, 1]} : vector<8x384xf32> to vector<8x128xf32>
    %32 = vector.extract_strided_slice %14 {offsets = [0, 256], sizes = [8, 128], strides = [1, 1]} : vector<8x384xf32> to vector<8x128xf32>
    %33 = arith.addf %32, %7 : vector<8x128xf32>
    %34 = arith.mulf %22, %33 : vector<8x128xf32>
    %35 = arith.addf %31, %34 : vector<8x128xf32>
    %36 = math.tanh %35 : vector<8x128xf32>
    %cst_13 = arith.constant 1.000000e+00 : f32
    %37 = vector.broadcast %cst_13 : f32 to vector<8x128xf32>
    %38 = arith.subf %37, %30 : vector<8x128xf32>
    %39 = arith.mulf %38, %36 : vector<8x128xf32>
    %40 = arith.mulf %30, %9 : vector<8x128xf32>
    %41 = arith.addf %39, %40 : vector<8x128xf32>
    %c0_i32_14 = arith.constant 0 : i32
    %42 = arith.addi %8, %c0_i32_14 : i32
    %43 = vector.broadcast %42 : i32 to vector<8x1xi32>
    %44 = arith.cmpi sgt, %3, %43 : vector<8x1xi32>
    %45 = vector.shape_cast %44 : vector<8x1xi1> to vector<8x1xi1>
    %46 = vector.broadcast %45 : vector<8x1xi1> to vector<8x128xi1>
    %47 = arith.select %46, %41, %9 : vector<8x128xi1>, vector<8x128xf32>
    %c1 = arith.constant 1 : index
    %c0_15 = arith.constant 0 : index
    %c0_16 = arith.constant 0 : index
    %48 = vector.load %arg1[%c1, %c0_15, %c0_16] : memref<8x8x384xbf16, #tpu.memory_space<vmem>>, vector<1x8x384xbf16>
    %49 = vector.shape_cast %48 : vector<1x8x384xbf16> to vector<8x384xbf16>
    %50 = arith.extf %49 : vector<8x384xbf16> to vector<8x384xf32>
    %51 = arith.truncf %47 : vector<8x128xf32> to vector<8x128xbf16>
    %cst_17 = arith.constant dense<0.000000e+00> : vector<8x384xf32>
    %52 = tpu.matmul %51, %4, %cst_17 {dimension_numbers = #tpu.dot_dimension_numbers<[1], [0], [0], [1], [0, 0, 1, 1], [], []>} : vector<8x128xbf16>, vector<128x384xbf16>, vector<8x384xf32> -> vector<8x384xf32>
    %53 = vector.extract_strided_slice %50 {offsets = [0, 0], sizes = [8, 128], strides = [1, 1]} : vector<8x384xf32> to vector<8x128xf32>
    %54 = vector.extract_strided_slice %52 {offsets = [0, 0], sizes = [8, 128], strides = [1, 1]} : vector<8x384xf32> to vector<8x128xf32>
    %55 = arith.addf %53, %54 : vector<8x128xf32>
    %56 = arith.negf %55 : vector<8x128xf32>
    %57 = math.exp %56 : vector<8x128xf32>
    %cst_18 = arith.constant 1.000000e+00 : f32
    %58 = vector.broadcast %cst_18 : f32 to vector<8x128xf32>
    %59 = arith.addf %58, %57 : vector<8x128xf32>
    %60 = arith.divf %58, %59 : vector<8x128xf32>
    %61 = vector.extract_strided_slice %50 {offsets = [0, 128], sizes = [8, 128], strides = [1, 1]} : vector<8x384xf32> to vector<8x128xf32>
    %62 = vector.extract_strided_slice %52 {offsets = [0, 128], sizes = [8, 128], strides = [1, 1]} : vector<8x384xf32> to vector<8x128xf32>
    %63 = arith.addf %61, %62 : vector<8x128xf32>
    %64 = arith.negf %63 : vector<8x128xf32>
    %65 = math.exp %64 : vector<8x128xf32>
    %cst_19 = arith.constant 1.000000e+00 : f32
    %66 = vector.broadcast %cst_19 : f32 to vector<8x128xf32>
    %67 = arith.addf %66, %65 : vector<8x128xf32>
    %68 = arith.divf %66, %67 : vector<8x128xf32>
    %69 = vector.extract_strided_slice %50 {offsets = [0, 256], sizes = [8, 128], strides = [1, 1]} : vector<8x384xf32> to vector<8x128xf32>
    %70 = vector.extract_strided_slice %52 {offsets = [0, 256], sizes = [8, 128], strides = [1, 1]} : vector<8x384xf32> to vector<8x128xf32>
    %71 = arith.addf %70, %7 : vector<8x128xf32>
    %72 = arith.mulf %60, %71 : vector<8x128xf32>
    %73 = arith.addf %69, %72 : vector<8x128xf32>
    %74 = math.tanh %73 : vector<8x128xf32>
    %cst_20 = arith.constant 1.000000e+00 : f32
    %75 = vector.broadcast %cst_20 : f32 to vector<8x128xf32>
    %76 = arith.subf %75, %68 : vector<8x128xf32>
    %77 = arith.mulf %76, %74 : vector<8x128xf32>
    %78 = arith.mulf %68, %47 : vector<8x128xf32>
    %79 = arith.addf %77, %78 : vector<8x128xf32>
    %c1_i32 = arith.constant 1 : i32
    %80 = arith.addi %8, %c1_i32 : i32
    %81 = vector.broadcast %80 : i32 to vector<8x1xi32>
    %82 = arith.cmpi sgt, %3, %81 : vector<8x1xi32>
    %83 = vector.shape_cast %82 : vector<8x1xi1> to vector<8x1xi1>
    %84 = vector.broadcast %83 : vector<8x1xi1> to vector<8x128xi1>
    %85 = arith.select %84, %79, %47 : vector<8x128xi1>, vector<8x128xf32>
    %c2 = arith.constant 2 : index
    %c0_21 = arith.constant 0 : index
    %c0_22 = arith.constant 0 : index
    %86 = vector.load %arg1[%c2, %c0_21, %c0_22] : memref<8x8x384xbf16, #tpu.memory_space<vmem>>, vector<1x8x384xbf16>
    %87 = vector.shape_cast %86 : vector<1x8x384xbf16> to vector<8x384xbf16>
    %88 = arith.extf %87 : vector<8x384xbf16> to vector<8x384xf32>
    %89 = arith.truncf %85 : vector<8x128xf32> to vector<8x128xbf16>
    %cst_23 = arith.constant dense<0.000000e+00> : vector<8x384xf32>
    %90 = tpu.matmul %89, %4, %cst_23 {dimension_numbers = #tpu.dot_dimension_numbers<[1], [0], [0], [1], [0, 0, 1, 1], [], []>} : vector<8x128xbf16>, vector<128x384xbf16>, vector<8x384xf32> -> vector<8x384xf32>
    %91 = vector.extract_strided_slice %88 {offsets = [0, 0], sizes = [8, 128], strides = [1, 1]} : vector<8x384xf32> to vector<8x128xf32>
    %92 = vector.extract_strided_slice %90 {offsets = [0, 0], sizes = [8, 128], strides = [1, 1]} : vector<8x384xf32> to vector<8x128xf32>
    %93 = arith.addf %91, %92 : vector<8x128xf32>
    %94 = arith.negf %93 : vector<8x128xf32>
    %95 = math.exp %94 : vector<8x128xf32>
    %cst_24 = arith.constant 1.000000e+00 : f32
    %96 = vector.broadcast %cst_24 : f32 to vector<8x128xf32>
    %97 = arith.addf %96, %95 : vector<8x128xf32>
    %98 = arith.divf %96, %97 : vector<8x128xf32>
    %99 = vector.extract_strided_slice %88 {offsets = [0, 128], sizes = [8, 128], strides = [1, 1]} : vector<8x384xf32> to vector<8x128xf32>
    %100 = vector.extract_strided_slice %90 {offsets = [0, 128], sizes = [8, 128], strides = [1, 1]} : vector<8x384xf32> to vector<8x128xf32>
    %101 = arith.addf %99, %100 : vector<8x128xf32>
    %102 = arith.negf %101 : vector<8x128xf32>
    %103 = math.exp %102 : vector<8x128xf32>
    %cst_25 = arith.constant 1.000000e+00 : f32
    %104 = vector.broadcast %cst_25 : f32 to vector<8x128xf32>
    %105 = arith.addf %104, %103 : vector<8x128xf32>
    %106 = arith.divf %104, %105 : vector<8x128xf32>
    %107 = vector.extract_strided_slice %88 {offsets = [0, 256], sizes = [8, 128], strides = [1, 1]} : vector<8x384xf32> to vector<8x128xf32>
    %108 = vector.extract_strided_slice %90 {offsets = [0, 256], sizes = [8, 128], strides = [1, 1]} : vector<8x384xf32> to vector<8x128xf32>
    %109 = arith.addf %108, %7 : vector<8x128xf32>
    %110 = arith.mulf %98, %109 : vector<8x128xf32>
    %111 = arith.addf %107, %110 : vector<8x128xf32>
    %112 = math.tanh %111 : vector<8x128xf32>
    %cst_26 = arith.constant 1.000000e+00 : f32
    %113 = vector.broadcast %cst_26 : f32 to vector<8x128xf32>
    %114 = arith.subf %113, %106 : vector<8x128xf32>
    %115 = arith.mulf %114, %112 : vector<8x128xf32>
    %116 = arith.mulf %106, %85 : vector<8x128xf32>
    %117 = arith.addf %115, %116 : vector<8x128xf32>
    %c2_i32 = arith.constant 2 : i32
    %118 = arith.addi %8, %c2_i32 : i32
    %119 = vector.broadcast %118 : i32 to vector<8x1xi32>
    %120 = arith.cmpi sgt, %3, %119 : vector<8x1xi32>
    %121 = vector.shape_cast %120 : vector<8x1xi1> to vector<8x1xi1>
    %122 = vector.broadcast %121 : vector<8x1xi1> to vector<8x128xi1>
    %123 = arith.select %122, %117, %85 : vector<8x128xi1>, vector<8x128xf32>
    %c3 = arith.constant 3 : index
    %c0_27 = arith.constant 0 : index
    %c0_28 = arith.constant 0 : index
    %124 = vector.load %arg1[%c3, %c0_27, %c0_28] : memref<8x8x384xbf16, #tpu.memory_space<vmem>>, vector<1x8x384xbf16>
    %125 = vector.shape_cast %124 : vector<1x8x384xbf16> to vector<8x384xbf16>
    %126 = arith.extf %125 : vector<8x384xbf16> to vector<8x384xf32>
    %127 = arith.truncf %123 : vector<8x128xf32> to vector<8x128xbf16>
    %cst_29 = arith.constant dense<0.000000e+00> : vector<8x384xf32>
    %128 = tpu.matmul %127, %4, %cst_29 {dimension_numbers = #tpu.dot_dimension_numbers<[1], [0], [0], [1], [0, 0, 1, 1], [], []>} : vector<8x128xbf16>, vector<128x384xbf16>, vector<8x384xf32> -> vector<8x384xf32>
    %129 = vector.extract_strided_slice %126 {offsets = [0, 0], sizes = [8, 128], strides = [1, 1]} : vector<8x384xf32> to vector<8x128xf32>
    %130 = vector.extract_strided_slice %128 {offsets = [0, 0], sizes = [8, 128], strides = [1, 1]} : vector<8x384xf32> to vector<8x128xf32>
    %131 = arith.addf %129, %130 : vector<8x128xf32>
    %132 = arith.negf %131 : vector<8x128xf32>
    %133 = math.exp %132 : vector<8x128xf32>
    %cst_30 = arith.constant 1.000000e+00 : f32
    %134 = vector.broadcast %cst_30 : f32 to vector<8x128xf32>
    %135 = arith.addf %134, %133 : vector<8x128xf32>
    %136 = arith.divf %134, %135 : vector<8x128xf32>
    %137 = vector.extract_strided_slice %126 {offsets = [0, 128], sizes = [8, 128], strides = [1, 1]} : vector<8x384xf32> to vector<8x128xf32>
    %138 = vector.extract_strided_slice %128 {offsets = [0, 128], sizes = [8, 128], strides = [1, 1]} : vector<8x384xf32> to vector<8x128xf32>
    %139 = arith.addf %137, %138 : vector<8x128xf32>
    %140 = arith.negf %139 : vector<8x128xf32>
    %141 = math.exp %140 : vector<8x128xf32>
    %cst_31 = arith.constant 1.000000e+00 : f32
    %142 = vector.broadcast %cst_31 : f32 to vector<8x128xf32>
    %143 = arith.addf %142, %141 : vector<8x128xf32>
    %144 = arith.divf %142, %143 : vector<8x128xf32>
    %145 = vector.extract_strided_slice %126 {offsets = [0, 256], sizes = [8, 128], strides = [1, 1]} : vector<8x384xf32> to vector<8x128xf32>
    %146 = vector.extract_strided_slice %128 {offsets = [0, 256], sizes = [8, 128], strides = [1, 1]} : vector<8x384xf32> to vector<8x128xf32>
    %147 = arith.addf %146, %7 : vector<8x128xf32>
    %148 = arith.mulf %136, %147 : vector<8x128xf32>
    %149 = arith.addf %145, %148 : vector<8x128xf32>
    %150 = math.tanh %149 : vector<8x128xf32>
    %cst_32 = arith.constant 1.000000e+00 : f32
    %151 = vector.broadcast %cst_32 : f32 to vector<8x128xf32>
    %152 = arith.subf %151, %144 : vector<8x128xf32>
    %153 = arith.mulf %152, %150 : vector<8x128xf32>
    %154 = arith.mulf %144, %123 : vector<8x128xf32>
    %155 = arith.addf %153, %154 : vector<8x128xf32>
    %c3_i32 = arith.constant 3 : i32
    %156 = arith.addi %8, %c3_i32 : i32
    %157 = vector.broadcast %156 : i32 to vector<8x1xi32>
    %158 = arith.cmpi sgt, %3, %157 : vector<8x1xi32>
    %159 = vector.shape_cast %158 : vector<8x1xi1> to vector<8x1xi1>
    %160 = vector.broadcast %159 : vector<8x1xi1> to vector<8x128xi1>
    %161 = arith.select %160, %155, %123 : vector<8x128xi1>, vector<8x128xf32>
    %c4 = arith.constant 4 : index
    %c0_33 = arith.constant 0 : index
    %c0_34 = arith.constant 0 : index
    %162 = vector.load %arg1[%c4, %c0_33, %c0_34] : memref<8x8x384xbf16, #tpu.memory_space<vmem>>, vector<1x8x384xbf16>
    %163 = vector.shape_cast %162 : vector<1x8x384xbf16> to vector<8x384xbf16>
    %164 = arith.extf %163 : vector<8x384xbf16> to vector<8x384xf32>
    %165 = arith.truncf %161 : vector<8x128xf32> to vector<8x128xbf16>
    %cst_35 = arith.constant dense<0.000000e+00> : vector<8x384xf32>
    %166 = tpu.matmul %165, %4, %cst_35 {dimension_numbers = #tpu.dot_dimension_numbers<[1], [0], [0], [1], [0, 0, 1, 1], [], []>} : vector<8x128xbf16>, vector<128x384xbf16>, vector<8x384xf32> -> vector<8x384xf32>
    %167 = vector.extract_strided_slice %164 {offsets = [0, 0], sizes = [8, 128], strides = [1, 1]} : vector<8x384xf32> to vector<8x128xf32>
    %168 = vector.extract_strided_slice %166 {offsets = [0, 0], sizes = [8, 128], strides = [1, 1]} : vector<8x384xf32> to vector<8x128xf32>
    %169 = arith.addf %167, %168 : vector<8x128xf32>
    %170 = arith.negf %169 : vector<8x128xf32>
    %171 = math.exp %170 : vector<8x128xf32>
    %cst_36 = arith.constant 1.000000e+00 : f32
    %172 = vector.broadcast %cst_36 : f32 to vector<8x128xf32>
    %173 = arith.addf %172, %171 : vector<8x128xf32>
    %174 = arith.divf %172, %173 : vector<8x128xf32>
    %175 = vector.extract_strided_slice %164 {offsets = [0, 128], sizes = [8, 128], strides = [1, 1]} : vector<8x384xf32> to vector<8x128xf32>
    %176 = vector.extract_strided_slice %166 {offsets = [0, 128], sizes = [8, 128], strides = [1, 1]} : vector<8x384xf32> to vector<8x128xf32>
    %177 = arith.addf %175, %176 : vector<8x128xf32>
    %178 = arith.negf %177 : vector<8x128xf32>
    %179 = math.exp %178 : vector<8x128xf32>
    %cst_37 = arith.constant 1.000000e+00 : f32
    %180 = vector.broadcast %cst_37 : f32 to vector<8x128xf32>
    %181 = arith.addf %180, %179 : vector<8x128xf32>
    %182 = arith.divf %180, %181 : vector<8x128xf32>
    %183 = vector.extract_strided_slice %164 {offsets = [0, 256], sizes = [8, 128], strides = [1, 1]} : vector<8x384xf32> to vector<8x128xf32>
    %184 = vector.extract_strided_slice %166 {offsets = [0, 256], sizes = [8, 128], strides = [1, 1]} : vector<8x384xf32> to vector<8x128xf32>
    %185 = arith.addf %184, %7 : vector<8x128xf32>
    %186 = arith.mulf %174, %185 : vector<8x128xf32>
    %187 = arith.addf %183, %186 : vector<8x128xf32>
    %188 = math.tanh %187 : vector<8x128xf32>
    %cst_38 = arith.constant 1.000000e+00 : f32
    %189 = vector.broadcast %cst_38 : f32 to vector<8x128xf32>
    %190 = arith.subf %189, %182 : vector<8x128xf32>
    %191 = arith.mulf %190, %188 : vector<8x128xf32>
    %192 = arith.mulf %182, %161 : vector<8x128xf32>
    %193 = arith.addf %191, %192 : vector<8x128xf32>
    %c4_i32 = arith.constant 4 : i32
    %194 = arith.addi %8, %c4_i32 : i32
    %195 = vector.broadcast %194 : i32 to vector<8x1xi32>
    %196 = arith.cmpi sgt, %3, %195 : vector<8x1xi32>
    %197 = vector.shape_cast %196 : vector<8x1xi1> to vector<8x1xi1>
    %198 = vector.broadcast %197 : vector<8x1xi1> to vector<8x128xi1>
    %199 = arith.select %198, %193, %161 : vector<8x128xi1>, vector<8x128xf32>
    %c5 = arith.constant 5 : index
    %c0_39 = arith.constant 0 : index
    %c0_40 = arith.constant 0 : index
    %200 = vector.load %arg1[%c5, %c0_39, %c0_40] : memref<8x8x384xbf16, #tpu.memory_space<vmem>>, vector<1x8x384xbf16>
    %201 = vector.shape_cast %200 : vector<1x8x384xbf16> to vector<8x384xbf16>
    %202 = arith.extf %201 : vector<8x384xbf16> to vector<8x384xf32>
    %203 = arith.truncf %199 : vector<8x128xf32> to vector<8x128xbf16>
    %cst_41 = arith.constant dense<0.000000e+00> : vector<8x384xf32>
    %204 = tpu.matmul %203, %4, %cst_41 {dimension_numbers = #tpu.dot_dimension_numbers<[1], [0], [0], [1], [0, 0, 1, 1], [], []>} : vector<8x128xbf16>, vector<128x384xbf16>, vector<8x384xf32> -> vector<8x384xf32>
    %205 = vector.extract_strided_slice %202 {offsets = [0, 0], sizes = [8, 128], strides = [1, 1]} : vector<8x384xf32> to vector<8x128xf32>
    %206 = vector.extract_strided_slice %204 {offsets = [0, 0], sizes = [8, 128], strides = [1, 1]} : vector<8x384xf32> to vector<8x128xf32>
    %207 = arith.addf %205, %206 : vector<8x128xf32>
    %208 = arith.negf %207 : vector<8x128xf32>
    %209 = math.exp %208 : vector<8x128xf32>
    %cst_42 = arith.constant 1.000000e+00 : f32
    %210 = vector.broadcast %cst_42 : f32 to vector<8x128xf32>
    %211 = arith.addf %210, %209 : vector<8x128xf32>
    %212 = arith.divf %210, %211 : vector<8x128xf32>
    %213 = vector.extract_strided_slice %202 {offsets = [0, 128], sizes = [8, 128], strides = [1, 1]} : vector<8x384xf32> to vector<8x128xf32>
    %214 = vector.extract_strided_slice %204 {offsets = [0, 128], sizes = [8, 128], strides = [1, 1]} : vector<8x384xf32> to vector<8x128xf32>
    %215 = arith.addf %213, %214 : vector<8x128xf32>
    %216 = arith.negf %215 : vector<8x128xf32>
    %217 = math.exp %216 : vector<8x128xf32>
    %cst_43 = arith.constant 1.000000e+00 : f32
    %218 = vector.broadcast %cst_43 : f32 to vector<8x128xf32>
    %219 = arith.addf %218, %217 : vector<8x128xf32>
    %220 = arith.divf %218, %219 : vector<8x128xf32>
    %221 = vector.extract_strided_slice %202 {offsets = [0, 256], sizes = [8, 128], strides = [1, 1]} : vector<8x384xf32> to vector<8x128xf32>
    %222 = vector.extract_strided_slice %204 {offsets = [0, 256], sizes = [8, 128], strides = [1, 1]} : vector<8x384xf32> to vector<8x128xf32>
    %223 = arith.addf %222, %7 : vector<8x128xf32>
    %224 = arith.mulf %212, %223 : vector<8x128xf32>
    %225 = arith.addf %221, %224 : vector<8x128xf32>
    %226 = math.tanh %225 : vector<8x128xf32>
    %cst_44 = arith.constant 1.000000e+00 : f32
    %227 = vector.broadcast %cst_44 : f32 to vector<8x128xf32>
    %228 = arith.subf %227, %220 : vector<8x128xf32>
    %229 = arith.mulf %228, %226 : vector<8x128xf32>
    %230 = arith.mulf %220, %199 : vector<8x128xf32>
    %231 = arith.addf %229, %230 : vector<8x128xf32>
    %c5_i32 = arith.constant 5 : i32
    %232 = arith.addi %8, %c5_i32 : i32
    %233 = vector.broadcast %232 : i32 to vector<8x1xi32>
    %234 = arith.cmpi sgt, %3, %233 : vector<8x1xi32>
    %235 = vector.shape_cast %234 : vector<8x1xi1> to vector<8x1xi1>
    %236 = vector.broadcast %235 : vector<8x1xi1> to vector<8x128xi1>
    %237 = arith.select %236, %231, %199 : vector<8x128xi1>, vector<8x128xf32>
    %c6 = arith.constant 6 : index
    %c0_45 = arith.constant 0 : index
    %c0_46 = arith.constant 0 : index
    %238 = vector.load %arg1[%c6, %c0_45, %c0_46] : memref<8x8x384xbf16, #tpu.memory_space<vmem>>, vector<1x8x384xbf16>
    %239 = vector.shape_cast %238 : vector<1x8x384xbf16> to vector<8x384xbf16>
    %240 = arith.extf %239 : vector<8x384xbf16> to vector<8x384xf32>
    %241 = arith.truncf %237 : vector<8x128xf32> to vector<8x128xbf16>
    %cst_47 = arith.constant dense<0.000000e+00> : vector<8x384xf32>
    %242 = tpu.matmul %241, %4, %cst_47 {dimension_numbers = #tpu.dot_dimension_numbers<[1], [0], [0], [1], [0, 0, 1, 1], [], []>} : vector<8x128xbf16>, vector<128x384xbf16>, vector<8x384xf32> -> vector<8x384xf32>
    %243 = vector.extract_strided_slice %240 {offsets = [0, 0], sizes = [8, 128], strides = [1, 1]} : vector<8x384xf32> to vector<8x128xf32>
    %244 = vector.extract_strided_slice %242 {offsets = [0, 0], sizes = [8, 128], strides = [1, 1]} : vector<8x384xf32> to vector<8x128xf32>
    %245 = arith.addf %243, %244 : vector<8x128xf32>
    %246 = arith.negf %245 : vector<8x128xf32>
    %247 = math.exp %246 : vector<8x128xf32>
    %cst_48 = arith.constant 1.000000e+00 : f32
    %248 = vector.broadcast %cst_48 : f32 to vector<8x128xf32>
    %249 = arith.addf %248, %247 : vector<8x128xf32>
    %250 = arith.divf %248, %249 : vector<8x128xf32>
    %251 = vector.extract_strided_slice %240 {offsets = [0, 128], sizes = [8, 128], strides = [1, 1]} : vector<8x384xf32> to vector<8x128xf32>
    %252 = vector.extract_strided_slice %242 {offsets = [0, 128], sizes = [8, 128], strides = [1, 1]} : vector<8x384xf32> to vector<8x128xf32>
    %253 = arith.addf %251, %252 : vector<8x128xf32>
    %254 = arith.negf %253 : vector<8x128xf32>
    %255 = math.exp %254 : vector<8x128xf32>
    %cst_49 = arith.constant 1.000000e+00 : f32
    %256 = vector.broadcast %cst_49 : f32 to vector<8x128xf32>
    %257 = arith.addf %256, %255 : vector<8x128xf32>
    %258 = arith.divf %256, %257 : vector<8x128xf32>
    %259 = vector.extract_strided_slice %240 {offsets = [0, 256], sizes = [8, 128], strides = [1, 1]} : vector<8x384xf32> to vector<8x128xf32>
    %260 = vector.extract_strided_slice %242 {offsets = [0, 256], sizes = [8, 128], strides = [1, 1]} : vector<8x384xf32> to vector<8x128xf32>
    %261 = arith.addf %260, %7 : vector<8x128xf32>
    %262 = arith.mulf %250, %261 : vector<8x128xf32>
    %263 = arith.addf %259, %262 : vector<8x128xf32>
    %264 = math.tanh %263 : vector<8x128xf32>
    %cst_50 = arith.constant 1.000000e+00 : f32
    %265 = vector.broadcast %cst_50 : f32 to vector<8x128xf32>
    %266 = arith.subf %265, %258 : vector<8x128xf32>
    %267 = arith.mulf %266, %264 : vector<8x128xf32>
    %268 = arith.mulf %258, %237 : vector<8x128xf32>
    %269 = arith.addf %267, %268 : vector<8x128xf32>
    %c6_i32 = arith.constant 6 : i32
    %270 = arith.addi %8, %c6_i32 : i32
    %271 = vector.broadcast %270 : i32 to vector<8x1xi32>
    %272 = arith.cmpi sgt, %3, %271 : vector<8x1xi32>
    %273 = vector.shape_cast %272 : vector<8x1xi1> to vector<8x1xi1>
    %274 = vector.broadcast %273 : vector<8x1xi1> to vector<8x128xi1>
    %275 = arith.select %274, %269, %237 : vector<8x128xi1>, vector<8x128xf32>
    %c7 = arith.constant 7 : index
    %c0_51 = arith.constant 0 : index
    %c0_52 = arith.constant 0 : index
    %276 = vector.load %arg1[%c7, %c0_51, %c0_52] : memref<8x8x384xbf16, #tpu.memory_space<vmem>>, vector<1x8x384xbf16>
    %277 = vector.shape_cast %276 : vector<1x8x384xbf16> to vector<8x384xbf16>
    %278 = arith.extf %277 : vector<8x384xbf16> to vector<8x384xf32>
    %279 = arith.truncf %275 : vector<8x128xf32> to vector<8x128xbf16>
    %cst_53 = arith.constant dense<0.000000e+00> : vector<8x384xf32>
    %280 = tpu.matmul %279, %4, %cst_53 {dimension_numbers = #tpu.dot_dimension_numbers<[1], [0], [0], [1], [0, 0, 1, 1], [], []>} : vector<8x128xbf16>, vector<128x384xbf16>, vector<8x384xf32> -> vector<8x384xf32>
    %281 = vector.extract_strided_slice %278 {offsets = [0, 0], sizes = [8, 128], strides = [1, 1]} : vector<8x384xf32> to vector<8x128xf32>
    %282 = vector.extract_strided_slice %280 {offsets = [0, 0], sizes = [8, 128], strides = [1, 1]} : vector<8x384xf32> to vector<8x128xf32>
    %283 = arith.addf %281, %282 : vector<8x128xf32>
    %284 = arith.negf %283 : vector<8x128xf32>
    %285 = math.exp %284 : vector<8x128xf32>
    %cst_54 = arith.constant 1.000000e+00 : f32
    %286 = vector.broadcast %cst_54 : f32 to vector<8x128xf32>
    %287 = arith.addf %286, %285 : vector<8x128xf32>
    %288 = arith.divf %286, %287 : vector<8x128xf32>
    %289 = vector.extract_strided_slice %278 {offsets = [0, 128], sizes = [8, 128], strides = [1, 1]} : vector<8x384xf32> to vector<8x128xf32>
    %290 = vector.extract_strided_slice %280 {offsets = [0, 128], sizes = [8, 128], strides = [1, 1]} : vector<8x384xf32> to vector<8x128xf32>
    %291 = arith.addf %289, %290 : vector<8x128xf32>
    %292 = arith.negf %291 : vector<8x128xf32>
    %293 = math.exp %292 : vector<8x128xf32>
    %cst_55 = arith.constant 1.000000e+00 : f32
    %294 = vector.broadcast %cst_55 : f32 to vector<8x128xf32>
    %295 = arith.addf %294, %293 : vector<8x128xf32>
    %296 = arith.divf %294, %295 : vector<8x128xf32>
    %297 = vector.extract_strided_slice %278 {offsets = [0, 256], sizes = [8, 128], strides = [1, 1]} : vector<8x384xf32> to vector<8x128xf32>
    %298 = vector.extract_strided_slice %280 {offsets = [0, 256], sizes = [8, 128], strides = [1, 1]} : vector<8x384xf32> to vector<8x128xf32>
    %299 = arith.addf %298, %7 : vector<8x128xf32>
    %300 = arith.mulf %288, %299 : vector<8x128xf32>
    %301 = arith.addf %297, %300 : vector<8x128xf32>
    %302 = math.tanh %301 : vector<8x128xf32>
    %cst_56 = arith.constant 1.000000e+00 : f32
    %303 = vector.broadcast %cst_56 : f32 to vector<8x128xf32>
    %304 = arith.subf %303, %296 : vector<8x128xf32>
    %305 = arith.mulf %304, %302 : vector<8x128xf32>
    %306 = arith.mulf %296, %275 : vector<8x128xf32>
    %307 = arith.addf %305, %306 : vector<8x128xf32>
    %c7_i32 = arith.constant 7 : i32
    %308 = arith.addi %8, %c7_i32 : i32
    %309 = vector.broadcast %308 : i32 to vector<8x1xi32>
    %310 = arith.cmpi sgt, %3, %309 : vector<8x1xi32>
    %311 = vector.shape_cast %310 : vector<8x1xi1> to vector<8x1xi1>
    %312 = vector.broadcast %311 : vector<8x1xi1> to vector<8x128xi1>
    %313 = arith.select %312, %307, %275 : vector<8x128xi1>, vector<8x128xf32>
    %c0_57 = arith.constant 0 : index
    %c0_58 = arith.constant 0 : index
    %314 = vector.load %arg12[%c0_57, %c0_58] : memref<8x128xf32, #tpu.memory_space<vmem>>, vector<8x128xf32>
    tpu.vector_store %arg12[%c0_57, %c0_58], %313 {strides = array<i32>} : memref<8x128xf32, #tpu.memory_space<vmem>>, vector<8x128xf32>,
    %c1_i32_59 = arith.constant 1 : i32
    %315 = arith.cmpi eq, %arg0, %c1_i32_59 : i32
    %316 = arith.extui %315 : i1 to i32
    %c0_i32_60 = arith.constant 0 : i32
    %317 = arith.cmpi ne, %316, %c0_i32_60 : i32
    scf.if %317 {
      %c0_61 = arith.constant 0 : index
      %c0_62 = arith.constant 0 : index
      %318 = vector.load %arg12[%c0_61, %c0_62] : memref<8x128xf32, #tpu.memory_space<vmem>>, vector<8x128xf32>
      %c0_63 = arith.constant 0 : index
      %c0_64 = arith.constant 0 : index
      %319 = vector.load %arg5[%c0_63, %c0_64] : memref<128x32xf32, #tpu.memory_space<vmem>>, vector<128x32xf32>
      %cst_65 = arith.constant dense<0.000000e+00> : vector<8x32xf32>
      %320 = tpu.matmul %318, %319, %cst_65 {dimension_numbers = #tpu.dot_dimension_numbers<[1], [0], [0], [1], [0, 0, 1, 1], [], []>} : vector<8x128xf32>, vector<128x32xf32>, vector<8x32xf32> -> vector<8x32xf32>
      %c0_66 = arith.constant 0 : index
      %c0_67 = arith.constant 0 : index
      %321 = vector.load %arg6[%c0_66, %c0_67] : memref<1x32xf32, #tpu.memory_space<vmem>>, vector<1x32xf32>
      %322 = vector.broadcast %321 : vector<1x32xf32> to vector<8x32xf32>
      %323 = arith.addf %320, %322 : vector<8x32xf32>
      %324 = vector.extract_strided_slice %323 {offsets = [0, 0], sizes = [8, 16], strides = [1, 1]} : vector<8x32xf32> to vector<8x16xf32>
      %325 = vector.extract_strided_slice %323 {offsets = [0, 16], sizes = [8, 16], strides = [1, 1]} : vector<8x32xf32> to vector<8x16xf32>
      %cst_68 = arith.constant 5.000000e-01 : f32
      %326 = vector.broadcast %cst_68 : f32 to vector<8x16xf32>
      %327 = arith.mulf %326, %325 : vector<8x16xf32>
      %328 = math.exp %327 : vector<8x16xf32>
      %c0_69 = arith.constant 0 : index
      %c0_70 = arith.constant 0 : index
      %329 = vector.load %arg7[%c0_69, %c0_70] : memref<8x16xf32, #tpu.memory_space<vmem>>, vector<8x16xf32>
      %330 = arith.mulf %329, %328 : vector<8x16xf32>
      %331 = arith.addf %330, %324 : vector<8x16xf32>
      %c0_71 = arith.constant 0 : index
      %c0_72 = arith.constant 0 : index
      %332 = vector.load %arg10[%c0_71, %c0_72] : memref<8x48xf32, #tpu.memory_space<vmem>>, vector<8x16xf32>
      tpu.vector_store %arg10[%c0_71, %c0_72], %324 {strides = array<i32>} : memref<8x48xf32, #tpu.memory_space<vmem>>, vector<8x16xf32>,
      %c0_73 = arith.constant 0 : index
      %c16 = arith.constant 16 : index
      %333 = vector.load %arg10[%c0_73, %c16] : memref<8x48xf32, #tpu.memory_space<vmem>>, vector<8x16xf32>
      tpu.vector_store %arg10[%c0_73, %c16], %325 {strides = array<i32>} : memref<8x48xf32, #tpu.memory_space<vmem>>, vector<8x16xf32>,
      %c0_74 = arith.constant 0 : index
      %c32 = arith.constant 32 : index
      %334 = vector.load %arg10[%c0_74, %c32] : memref<8x48xf32, #tpu.memory_space<vmem>>, vector<8x16xf32>
      tpu.vector_store %arg10[%c0_74, %c32], %331 {strides = array<i32>} : memref<8x48xf32, #tpu.memory_space<vmem>>, vector<8x16xf32>,
      %c0_75 = arith.constant 0 : index
      %c0_76 = arith.constant 0 : index
      %335 = vector.load %arg8[%c0_75, %c0_76] : memref<16x128xf32, #tpu.memory_space<vmem>>, vector<16x128xf32>
      %cst_77 = arith.constant dense<0.000000e+00> : vector<8x128xf32>
      %336 = tpu.matmul %331, %335, %cst_77 {dimension_numbers = #tpu.dot_dimension_numbers<[1], [0], [0], [1], [0, 0, 1, 1], [], []>} : vector<8x16xf32>, vector<16x128xf32>, vector<8x128xf32> -> vector<8x128xf32>
      %c0_78 = arith.constant 0 : index
      %c0_79 = arith.constant 0 : index
      %337 = vector.load %arg9[%c0_78, %c0_79] : memref<1x128xf32, #tpu.memory_space<vmem>>, vector<1x128xf32>
      %338 = vector.broadcast %337 : vector<1x128xf32> to vector<8x128xf32>
      %339 = arith.addf %336, %338 : vector<8x128xf32>
      %c0_80 = arith.constant 0 : index
      %c0_81 = arith.constant 0 : index
      %340 = vector.load %arg11[%c0_80, %c0_81] : memref<8x128xf32, #tpu.memory_space<vmem>>, vector<8x128xf32>
      tpu.vector_store %arg11[%c0_80, %c0_81], %339 {strides = array<i32>} : memref<8x128xf32, #tpu.memory_space<vmem>>, vector<8x128xf32>,
    } else {
    }
    return
  }
  func.func @transform_0(%arg0: i32) -> (i32, i32, i32) {
    %c0_i32 = arith.constant 0 : i32
    %c0_i32_0 = arith.constant 0 : i32
    %c0_i32_1 = arith.constant 0 : i32
    return %arg0, %c0_i32, %c0_i32_0 : i32, i32, i32
  }
  func.func @transform_1(%arg0: i32) -> (i32, i32) {
    %c0_i32 = arith.constant 0 : i32
    %c0_i32_0 = arith.constant 0 : i32
    %c0_i32_1 = arith.constant 0 : i32
    return %c0_i32, %c0_i32_0 : i32, i32
  }
  func.func @transform_2(%arg0: i32) -> (i32, i32) {
    %c0_i32 = arith.constant 0 : i32
    %c0_i32_0 = arith.constant 0 : i32
    %c0_i32_1 = arith.constant 0 : i32
    return %c0_i32, %c0_i32_0 : i32, i32
  }
  func.func @transform_3(%arg0: i32) -> (i32, i32) {
    %c0_i32 = arith.constant 0 : i32
    %c0_i32_0 = arith.constant 0 : i32
    %c0_i32_1 = arith.constant 0 : i32
    return %c0_i32, %c0_i32_0 : i32, i32
  }
  func.func @transform_4(%arg0: i32) -> (i32, i32) {
    %c0_i32 = arith.constant 0 : i32
    %c0_i32_0 = arith.constant 0 : i32
    %c0_i32_1 = arith.constant 0 : i32
    return %c0_i32, %c0_i32_0 : i32, i32
  }
  func.func @transform_5(%arg0: i32) -> (i32, i32) {
    %c0_i32 = arith.constant 0 : i32
    %c0_i32_0 = arith.constant 0 : i32
    %c0_i32_1 = arith.constant 0 : i32
    return %c0_i32, %c0_i32_0 : i32, i32
  }
  func.func @transform_6(%arg0: i32) -> (i32, i32) {
    %c0_i32 = arith.constant 0 : i32
    %c0_i32_0 = arith.constant 0 : i32
    %c0_i32_1 = arith.constant 0 : i32
    return %c0_i32, %c0_i32_0 : i32, i32
  }
  func.func @transform_7(%arg0: i32) -> (i32, i32) {
    %c0_i32 = arith.constant 0 : i32
    %c0_i32_0 = arith.constant 0 : i32
    %c0_i32_1 = arith.constant 0 : i32
    return %c0_i32, %c0_i32_0 : i32, i32
  }
  func.func @transform_8(%arg0: i32) -> (i32, i32) {
    %c0_i32 = arith.constant 0 : i32
    %c0_i32_0 = arith.constant 0 : i32
    %c0_i32_1 = arith.constant 0 : i32
    return %c0_i32, %c0_i32_0 : i32, i32
  }
  func.func @transform_9(%arg0: i32) -> (i32, i32) {
    %c0_i32 = arith.constant 0 : i32
    %c0_i32_0 = arith.constant 0 : i32
    %c0_i32_1 = arith.constant 0 : i32
    return %c0_i32, %c0_i32_0 : i32, i32
  }
  func.func @transform_10(%arg0: i32) -> (i32, i32) {
    %c0_i32 = arith.constant 0 : i32
    %c0_i32_0 = arith.constant 0 : i32
    %c0_i32_1 = arith.constant 0 : i32
    return %c0_i32, %c0_i32_0 : i32, i32
  }
}

module attributes {stable_mosaic.version = 11 : i64} {
  func.func @_proj_kernel(%arg0: i32, %arg1: memref<128x64xbf16, #tpu.memory_space<vmem>>, %arg2: memref<64x768xbf16, #tpu.memory_space<vmem>>, %arg3: memref<1x768xf32, #tpu.memory_space<vmem>>, %arg4: memref<128x768xbf16, #tpu.memory_space<vmem>>) attributes {dimension_semantics = [#tpu.dimension_semantics<parallel>], iteration_bounds = array<i64: 1>, scalar_prefetch = 0 : i64, scratch_operands = 0 : i64, tpu.core_type = #tpu.core_type<tc>, window_params = [{transform_indices = @transform_0, window_bounds = array<i64: 128, 64>}, {pipeline_mode = #tpu.pipeline_mode<synchronous>, transform_indices = @transform_1, window_bounds = array<i64: 64, 768>}, {pipeline_mode = #tpu.pipeline_mode<synchronous>, transform_indices = @transform_2, window_bounds = array<i64: 1, 768>}, {transform_indices = @transform_3, window_bounds = array<i64: 128, 768>}]} {
    %c0 = arith.constant 0 : index
    %c0_0 = arith.constant 0 : index
    %0 = vector.load %arg1[%c0, %c0_0] : memref<128x64xbf16, #tpu.memory_space<vmem>>, vector<128x64xbf16>
    %c0_1 = arith.constant 0 : index
    %c0_2 = arith.constant 0 : index
    %1 = vector.load %arg2[%c0_1, %c0_2] : memref<64x768xbf16, #tpu.memory_space<vmem>>, vector<64x768xbf16>
    %cst = arith.constant dense<0.000000e+00> : vector<128x768xf32>
    %2 = tpu.matmul %0, %1, %cst {dimension_numbers = #tpu.dot_dimension_numbers<[1], [0], [0], [1], [0, 0, 1, 1], [], []>} : vector<128x64xbf16>, vector<64x768xbf16>, vector<128x768xf32> -> vector<128x768xf32>
    %c0_3 = arith.constant 0 : index
    %c0_4 = arith.constant 0 : index
    %3 = vector.load %arg3[%c0_3, %c0_4] : memref<1x768xf32, #tpu.memory_space<vmem>>, vector<1x768xf32>
    %4 = vector.broadcast %3 : vector<1x768xf32> to vector<128x768xf32>
    %5 = arith.addf %2, %4 : vector<128x768xf32>
    %6 = arith.truncf %5 : vector<128x768xf32> to vector<128x768xbf16>
    %c0_5 = arith.constant 0 : index
    %c0_6 = arith.constant 0 : index
    %7 = vector.load %arg4[%c0_5, %c0_6] : memref<128x768xbf16, #tpu.memory_space<vmem>>, vector<128x768xbf16>
    tpu.vector_store %arg4[%c0_5, %c0_6], %6 {strides = array<i32>} : memref<128x768xbf16, #tpu.memory_space<vmem>>, vector<128x768xbf16>,
    return
  }
  func.func @transform_0(%arg0: i32) -> (i32, i32) {
    %c0_i32 = arith.constant 0 : i32
    %c0_i32_0 = arith.constant 0 : i32
    return %arg0, %c0_i32 : i32, i32
  }
  func.func @transform_1(%arg0: i32) -> (i32, i32) {
    %c0_i32 = arith.constant 0 : i32
    %c0_i32_0 = arith.constant 0 : i32
    %c0_i32_1 = arith.constant 0 : i32
    return %c0_i32, %c0_i32_0 : i32, i32
  }
  func.func @transform_2(%arg0: i32) -> (i32, i32) {
    %c0_i32 = arith.constant 0 : i32
    %c0_i32_0 = arith.constant 0 : i32
    %c0_i32_1 = arith.constant 0 : i32
    return %c0_i32, %c0_i32_0 : i32, i32
  }
  func.func @transform_3(%arg0: i32) -> (i32, i32) {
    %c0_i32 = arith.constant 0 : i32
    %c0_i32_0 = arith.constant 0 : i32
    return %arg0, %c0_i32 : i32, i32
  }
}

module attributes {stable_mosaic.version = 11 : i64} {
  func.func @_vocab_kernel(%arg0: i32, %arg1: i32, %arg2: memref<4xi32, #tpu.memory_space<smem>>, %arg3: memref<1x16x128xf32, #tpu.memory_space<vmem>>, %arg4: memref<128x256xbf16, #tpu.memory_space<vmem>>, %arg5: memref<1x256xf32, #tpu.memory_space<vmem>>, %arg6: memref<16x256xf32, #tpu.memory_space<vmem>>) attributes {dimension_semantics = [#tpu.dimension_semantics<parallel>, #tpu.dimension_semantics<parallel>], iteration_bounds = array<i64: 4, 1>, scalar_prefetch = 1 : i64, scratch_operands = 0 : i64, tpu.core_type = #tpu.core_type<tc>, window_params = [{transform_indices = @transform_0, window_bounds = array<i64: 1, 16, 128>}, {pipeline_mode = #tpu.pipeline_mode<synchronous>, transform_indices = @transform_1, window_bounds = array<i64: 128, 256>}, {pipeline_mode = #tpu.pipeline_mode<synchronous>, transform_indices = @transform_2, window_bounds = array<i64: 1, 256>}, {transform_indices = @transform_3, window_bounds = array<i64: 16, 256>}]} {
    %c0 = arith.constant 0 : index
    %c0_0 = arith.constant 0 : index
    %c0_1 = arith.constant 0 : index
    %0 = vector.load %arg3[%c0, %c0_0, %c0_1] : memref<1x16x128xf32, #tpu.memory_space<vmem>>, vector<1x16x128xf32>
    %1 = vector.shape_cast %0 : vector<1x16x128xf32> to vector<16x128xf32>
    %2 = arith.truncf %1 : vector<16x128xf32> to vector<16x128xbf16>
    %c0_2 = arith.constant 0 : index
    %c0_3 = arith.constant 0 : index
    %3 = vector.load %arg4[%c0_2, %c0_3] : memref<128x256xbf16, #tpu.memory_space<vmem>>, vector<128x256xbf16>
    %cst = arith.constant dense<0.000000e+00> : vector<16x256xf32>
    %4 = tpu.matmul %2, %3, %cst {dimension_numbers = #tpu.dot_dimension_numbers<[1], [0], [0], [1], [0, 0, 1, 1], [], []>} : vector<16x128xbf16>, vector<128x256xbf16>, vector<16x256xf32> -> vector<16x256xf32>
    %c0_4 = arith.constant 0 : index
    %c0_5 = arith.constant 0 : index
    %5 = vector.load %arg5[%c0_4, %c0_5] : memref<1x256xf32, #tpu.memory_space<vmem>>, vector<1x256xf32>
    %6 = vector.broadcast %5 : vector<1x256xf32> to vector<16x256xf32>
    %7 = arith.addf %4, %6 : vector<16x256xf32>
    %cst_6 = arith.constant dense<0xFF800000> : vector<16xf32>
    %8 = vector.multi_reduction <maximumf>, %7, %cst_6 [1] : vector<16x256xf32> to vector<16xf32>
    %9 = vector.shape_cast %8 : vector<16xf32> to vector<16x1xf32>
    %10 = vector.broadcast %9 : vector<16x1xf32> to vector<16x256xf32>
    %11 = arith.subf %7, %10 : vector<16x256xf32>
    %12 = math.exp %11 : vector<16x256xf32>
    %cst_7 = arith.constant dense<0.000000e+00> : vector<16xf32>
    %13 = vector.multi_reduction <add>, %12, %cst_7 [1] : vector<16x256xf32> to vector<16xf32>
    %14 = vector.shape_cast %13 : vector<16xf32> to vector<16x1xf32>
    %15 = math.log %14 : vector<16x1xf32>
    %16 = arith.addf %15, %9 : vector<16x1xf32>
    %17 = vector.broadcast %16 : vector<16x1xf32> to vector<16x256xf32>
    %18 = arith.subf %7, %17 : vector<16x256xf32>
    %c0_8 = arith.constant 0 : index
    %c0_9 = arith.constant 0 : index
    %19 = vector.load %arg6[%c0_8, %c0_9] : memref<16x256xf32, #tpu.memory_space<vmem>>, vector<16x256xf32>
    tpu.vector_store %arg6[%c0_8, %c0_9], %18 {strides = array<i32>} : memref<16x256xf32, #tpu.memory_space<vmem>>, vector<16x256xf32>,
    return
  }
  func.func @transform_0(%arg0: i32, %arg1: i32, %arg2: memref<4xi32, #tpu.memory_space<smem>>) -> (i32, i32, i32) {
    %0 = arith.index_cast %arg0 : i32 to index
    %1 = memref.load %arg2[%0] : memref<4xi32, #tpu.memory_space<smem>>
    %c0_i32 = arith.constant 0 : i32
    %c0_i32_0 = arith.constant 0 : i32
    return %1, %arg1, %c0_i32 : i32, i32, i32
  }
  func.func @transform_1(%arg0: i32, %arg1: i32, %arg2: memref<4xi32, #tpu.memory_space<smem>>) -> (i32, i32) {
    %c0_i32 = arith.constant 0 : i32
    %c0_i32_0 = arith.constant 0 : i32
    %c0_i32_1 = arith.constant 0 : i32
    return %c0_i32, %c0_i32_0 : i32, i32
  }
  func.func @transform_2(%arg0: i32, %arg1: i32, %arg2: memref<4xi32, #tpu.memory_space<smem>>) -> (i32, i32) {
    %c0_i32 = arith.constant 0 : i32
    %c0_i32_0 = arith.constant 0 : i32
    %c0_i32_1 = arith.constant 0 : i32
    return %c0_i32, %c0_i32_0 : i32, i32
  }
  func.func @transform_3(%arg0: i32, %arg1: i32, %arg2: memref<4xi32, #tpu.memory_space<smem>>) -> (i32, i32) {
    %c1_i32 = arith.constant 1 : i32
    %0 = arith.muli %arg0, %c1_i32 : i32
    %1 = arith.addi %0, %arg1 : i32
    %c0_i32 = arith.constant 0 : i32
    %c0_i32_0 = arith.constant 0 : i32
    return %1, %c0_i32 : i32, i32
  }
}

module attributes {stable_mosaic.version = 11 : i64} {
  func.func @_dec_gru_kernel(%arg0: i32, %arg1: memref<8x8x384xbf16, #tpu.memory_space<vmem>>, %arg2: memref<8x1xi32, #tpu.memory_space<vmem>>, %arg3: memref<8x128xf32, #tpu.memory_space<vmem>>, %arg4: memref<128x384xbf16, #tpu.memory_space<vmem>>, %arg5: memref<1x128xf32, #tpu.memory_space<vmem>>, %arg6: memref<8x8x128xf32, #tpu.memory_space<vmem>>, %arg7: memref<8x128xf32, #tpu.memory_space<vmem>>) attributes {dimension_semantics = [#tpu.dimension_semantics<arbitrary>], iteration_bounds = array<i64: 2>, scalar_prefetch = 0 : i64, scratch_operands = 1 : i64, tpu.core_type = #tpu.core_type<tc>, window_params = [{transform_indices = @transform_0, window_bounds = array<i64: 8, 8, 384>}, {pipeline_mode = #tpu.pipeline_mode<synchronous>, transform_indices = @transform_1, window_bounds = array<i64: 8, 1>}, {pipeline_mode = #tpu.pipeline_mode<synchronous>, transform_indices = @transform_2, window_bounds = array<i64: 8, 128>}, {pipeline_mode = #tpu.pipeline_mode<synchronous>, transform_indices = @transform_3, window_bounds = array<i64: 128, 384>}, {pipeline_mode = #tpu.pipeline_mode<synchronous>, transform_indices = @transform_4, window_bounds = array<i64: 1, 128>}, {transform_indices = @transform_5, window_bounds = array<i64: 8, 8, 128>}]} {
    %c0_i32 = arith.constant 0 : i32
    %0 = arith.cmpi eq, %arg0, %c0_i32 : i32
    %1 = arith.extui %0 : i1 to i32
    %c0_i32_0 = arith.constant 0 : i32
    %2 = arith.cmpi ne, %1, %c0_i32_0 : i32
    scf.if %2 {
      %c0_91 = arith.constant 0 : index
      %c0_92 = arith.constant 0 : index
      %363 = vector.load %arg3[%c0_91, %c0_92] : memref<8x128xf32, #tpu.memory_space<vmem>>, vector<8x128xf32>
      %c0_93 = arith.constant 0 : index
      %c0_94 = arith.constant 0 : index
      %364 = vector.load %arg7[%c0_93, %c0_94] : memref<8x128xf32, #tpu.memory_space<vmem>>, vector<8x128xf32>
      tpu.vector_store %arg7[%c0_93, %c0_94], %363 {strides = array<i32>} : memref<8x128xf32, #tpu.memory_space<vmem>>, vector<8x128xf32>,
    } else {
    }
    %c0 = arith.constant 0 : index
    %c0_1 = arith.constant 0 : index
    %3 = vector.load %arg2[%c0, %c0_1] : memref<8x1xi32, #tpu.memory_space<vmem>>, vector<8x1xi32>
    %c0_2 = arith.constant 0 : index
    %c0_3 = arith.constant 0 : index
    %4 = vector.load %arg4[%c0_2, %c0_3] : memref<128x384xbf16, #tpu.memory_space<vmem>>, vector<128x384xbf16>
    %c0_4 = arith.constant 0 : index
    %c0_5 = arith.constant 0 : index
    %5 = vector.load %arg5[%c0_4, %c0_5] : memref<1x128xf32, #tpu.memory_space<vmem>>, vector<1x128xf32>
    %6 = vector.shape_cast %5 : vector<1x128xf32> to vector<1x128xf32>
    %7 = vector.broadcast %6 : vector<1x128xf32> to vector<8x128xf32>
    %c8_i32 = arith.constant 8 : i32
    %8 = arith.muli %arg0, %c8_i32 : i32
    %c0_6 = arith.constant 0 : index
    %c0_7 = arith.constant 0 : index
    %9 = vector.load %arg7[%c0_6, %c0_7] : memref<8x128xf32, #tpu.memory_space<vmem>>, vector<8x128xf32>
    %c0_8 = arith.constant 0 : index
    %c0_9 = arith.constant 0 : index
    %c0_10 = arith.constant 0 : index
    %10 = vector.load %arg1[%c0_8, %c0_9, %c0_10] : memref<8x8x384xbf16, #tpu.memory_space<vmem>>, vector<1x8x384xbf16>
    %11 = vector.shape_cast %10 : vector<1x8x384xbf16> to vector<8x384xbf16>
    %12 = arith.extf %11 : vector<8x384xbf16> to vector<8x384xf32>
    %13 = arith.truncf %9 : vector<8x128xf32> to vector<8x128xbf16>
    %cst = arith.constant dense<0.000000e+00> : vector<8x384xf32>
    %14 = tpu.matmul %13, %4, %cst {dimension_numbers = #tpu.dot_dimension_numbers<[1], [0], [0], [1], [0, 0, 1, 1], [], []>} : vector<8x128xbf16>, vector<128x384xbf16>, vector<8x384xf32> -> vector<8x384xf32>
    %15 = vector.extract_strided_slice %12 {offsets = [0, 0], sizes = [8, 128], strides = [1, 1]} : vector<8x384xf32> to vector<8x128xf32>
    %16 = vector.extract_strided_slice %14 {offsets = [0, 0], sizes = [8, 128], strides = [1, 1]} : vector<8x384xf32> to vector<8x128xf32>
    %17 = arith.addf %15, %16 : vector<8x128xf32>
    %18 = arith.negf %17 : vector<8x128xf32>
    %19 = math.exp %18 : vector<8x128xf32>
    %cst_11 = arith.constant 1.000000e+00 : f32
    %20 = vector.broadcast %cst_11 : f32 to vector<8x128xf32>
    %21 = arith.addf %20, %19 : vector<8x128xf32>
    %22 = arith.divf %20, %21 : vector<8x128xf32>
    %23 = vector.extract_strided_slice %12 {offsets = [0, 128], sizes = [8, 128], strides = [1, 1]} : vector<8x384xf32> to vector<8x128xf32>
    %24 = vector.extract_strided_slice %14 {offsets = [0, 128], sizes = [8, 128], strides = [1, 1]} : vector<8x384xf32> to vector<8x128xf32>
    %25 = arith.addf %23, %24 : vector<8x128xf32>
    %26 = arith.negf %25 : vector<8x128xf32>
    %27 = math.exp %26 : vector<8x128xf32>
    %cst_12 = arith.constant 1.000000e+00 : f32
    %28 = vector.broadcast %cst_12 : f32 to vector<8x128xf32>
    %29 = arith.addf %28, %27 : vector<8x128xf32>
    %30 = arith.divf %28, %29 : vector<8x128xf32>
    %31 = vector.extract_strided_slice %12 {offsets = [0, 256], sizes = [8, 128], strides = [1, 1]} : vector<8x384xf32> to vector<8x128xf32>
    %32 = vector.extract_strided_slice %14 {offsets = [0, 256], sizes = [8, 128], strides = [1, 1]} : vector<8x384xf32> to vector<8x128xf32>
    %33 = arith.addf %32, %7 : vector<8x128xf32>
    %34 = arith.mulf %22, %33 : vector<8x128xf32>
    %35 = arith.addf %31, %34 : vector<8x128xf32>
    %36 = math.tanh %35 : vector<8x128xf32>
    %cst_13 = arith.constant 1.000000e+00 : f32
    %37 = vector.broadcast %cst_13 : f32 to vector<8x128xf32>
    %38 = arith.subf %37, %30 : vector<8x128xf32>
    %39 = arith.mulf %38, %36 : vector<8x128xf32>
    %40 = arith.mulf %30, %9 : vector<8x128xf32>
    %41 = arith.addf %39, %40 : vector<8x128xf32>
    %c0_i32_14 = arith.constant 0 : i32
    %42 = arith.addi %8, %c0_i32_14 : i32
    %43 = vector.broadcast %42 : i32 to vector<8x1xi32>
    %44 = arith.cmpi sgt, %3, %43 : vector<8x1xi32>
    %cst_15 = arith.constant 0.000000e+00 : f32
    %45 = vector.shape_cast %44 : vector<8x1xi1> to vector<8x1xi1>
    %46 = vector.broadcast %45 : vector<8x1xi1> to vector<8x128xi1>
    %47 = vector.broadcast %cst_15 : f32 to vector<8x128xf32>
    %48 = arith.select %46, %41, %47 : vector<8x128xi1>, vector<8x128xf32>
    %49 = vector.shape_cast %48 : vector<8x128xf32> to vector<8x1x128xf32>
    %c0_16 = arith.constant 0 : index
    %c0_17 = arith.constant 0 : index
    %c0_18 = arith.constant 0 : index
    %50 = vector.load %arg6[%c0_16, %c0_17, %c0_18] : memref<8x8x128xf32, #tpu.memory_space<vmem>>, vector<8x1x128xf32>
    tpu.vector_store %arg6[%c0_16, %c0_17, %c0_18], %49 {strides = array<i32>} : memref<8x8x128xf32, #tpu.memory_space<vmem>>, vector<8x1x128xf32>,
    %51 = vector.shape_cast %44 : vector<8x1xi1> to vector<8x1xi1>
    %52 = vector.broadcast %51 : vector<8x1xi1> to vector<8x128xi1>
    %53 = arith.select %52, %41, %9 : vector<8x128xi1>, vector<8x128xf32>
    %c1 = arith.constant 1 : index
    %c0_19 = arith.constant 0 : index
    %c0_20 = arith.constant 0 : index
    %54 = vector.load %arg1[%c1, %c0_19, %c0_20] : memref<8x8x384xbf16, #tpu.memory_space<vmem>>, vector<1x8x384xbf16>
    %55 = vector.shape_cast %54 : vector<1x8x384xbf16> to vector<8x384xbf16>
    %56 = arith.extf %55 : vector<8x384xbf16> to vector<8x384xf32>
    %57 = arith.truncf %53 : vector<8x128xf32> to vector<8x128xbf16>
    %cst_21 = arith.constant dense<0.000000e+00> : vector<8x384xf32>
    %58 = tpu.matmul %57, %4, %cst_21 {dimension_numbers = #tpu.dot_dimension_numbers<[1], [0], [0], [1], [0, 0, 1, 1], [], []>} : vector<8x128xbf16>, vector<128x384xbf16>, vector<8x384xf32> -> vector<8x384xf32>
    %59 = vector.extract_strided_slice %56 {offsets = [0, 0], sizes = [8, 128], strides = [1, 1]} : vector<8x384xf32> to vector<8x128xf32>
    %60 = vector.extract_strided_slice %58 {offsets = [0, 0], sizes = [8, 128], strides = [1, 1]} : vector<8x384xf32> to vector<8x128xf32>
    %61 = arith.addf %59, %60 : vector<8x128xf32>
    %62 = arith.negf %61 : vector<8x128xf32>
    %63 = math.exp %62 : vector<8x128xf32>
    %cst_22 = arith.constant 1.000000e+00 : f32
    %64 = vector.broadcast %cst_22 : f32 to vector<8x128xf32>
    %65 = arith.addf %64, %63 : vector<8x128xf32>
    %66 = arith.divf %64, %65 : vector<8x128xf32>
    %67 = vector.extract_strided_slice %56 {offsets = [0, 128], sizes = [8, 128], strides = [1, 1]} : vector<8x384xf32> to vector<8x128xf32>
    %68 = vector.extract_strided_slice %58 {offsets = [0, 128], sizes = [8, 128], strides = [1, 1]} : vector<8x384xf32> to vector<8x128xf32>
    %69 = arith.addf %67, %68 : vector<8x128xf32>
    %70 = arith.negf %69 : vector<8x128xf32>
    %71 = math.exp %70 : vector<8x128xf32>
    %cst_23 = arith.constant 1.000000e+00 : f32
    %72 = vector.broadcast %cst_23 : f32 to vector<8x128xf32>
    %73 = arith.addf %72, %71 : vector<8x128xf32>
    %74 = arith.divf %72, %73 : vector<8x128xf32>
    %75 = vector.extract_strided_slice %56 {offsets = [0, 256], sizes = [8, 128], strides = [1, 1]} : vector<8x384xf32> to vector<8x128xf32>
    %76 = vector.extract_strided_slice %58 {offsets = [0, 256], sizes = [8, 128], strides = [1, 1]} : vector<8x384xf32> to vector<8x128xf32>
    %77 = arith.addf %76, %7 : vector<8x128xf32>
    %78 = arith.mulf %66, %77 : vector<8x128xf32>
    %79 = arith.addf %75, %78 : vector<8x128xf32>
    %80 = math.tanh %79 : vector<8x128xf32>
    %cst_24 = arith.constant 1.000000e+00 : f32
    %81 = vector.broadcast %cst_24 : f32 to vector<8x128xf32>
    %82 = arith.subf %81, %74 : vector<8x128xf32>
    %83 = arith.mulf %82, %80 : vector<8x128xf32>
    %84 = arith.mulf %74, %53 : vector<8x128xf32>
    %85 = arith.addf %83, %84 : vector<8x128xf32>
    %c1_i32 = arith.constant 1 : i32
    %86 = arith.addi %8, %c1_i32 : i32
    %87 = vector.broadcast %86 : i32 to vector<8x1xi32>
    %88 = arith.cmpi sgt, %3, %87 : vector<8x1xi32>
    %cst_25 = arith.constant 0.000000e+00 : f32
    %89 = vector.shape_cast %88 : vector<8x1xi1> to vector<8x1xi1>
    %90 = vector.broadcast %89 : vector<8x1xi1> to vector<8x128xi1>
    %91 = vector.broadcast %cst_25 : f32 to vector<8x128xf32>
    %92 = arith.select %90, %85, %91 : vector<8x128xi1>, vector<8x128xf32>
    %93 = vector.shape_cast %92 : vector<8x128xf32> to vector<8x1x128xf32>
    %c0_26 = arith.constant 0 : index
    %c1_27 = arith.constant 1 : index
    %c0_28 = arith.constant 0 : index
    %94 = vector.load %arg6[%c0_26, %c1_27, %c0_28] : memref<8x8x128xf32, #tpu.memory_space<vmem>>, vector<8x1x128xf32>
    tpu.vector_store %arg6[%c0_26, %c1_27, %c0_28], %93 {strides = array<i32>} : memref<8x8x128xf32, #tpu.memory_space<vmem>>, vector<8x1x128xf32>,
    %95 = vector.shape_cast %88 : vector<8x1xi1> to vector<8x1xi1>
    %96 = vector.broadcast %95 : vector<8x1xi1> to vector<8x128xi1>
    %97 = arith.select %96, %85, %53 : vector<8x128xi1>, vector<8x128xf32>
    %c2 = arith.constant 2 : index
    %c0_29 = arith.constant 0 : index
    %c0_30 = arith.constant 0 : index
    %98 = vector.load %arg1[%c2, %c0_29, %c0_30] : memref<8x8x384xbf16, #tpu.memory_space<vmem>>, vector<1x8x384xbf16>
    %99 = vector.shape_cast %98 : vector<1x8x384xbf16> to vector<8x384xbf16>
    %100 = arith.extf %99 : vector<8x384xbf16> to vector<8x384xf32>
    %101 = arith.truncf %97 : vector<8x128xf32> to vector<8x128xbf16>
    %cst_31 = arith.constant dense<0.000000e+00> : vector<8x384xf32>
    %102 = tpu.matmul %101, %4, %cst_31 {dimension_numbers = #tpu.dot_dimension_numbers<[1], [0], [0], [1], [0, 0, 1, 1], [], []>} : vector<8x128xbf16>, vector<128x384xbf16>, vector<8x384xf32> -> vector<8x384xf32>
    %103 = vector.extract_strided_slice %100 {offsets = [0, 0], sizes = [8, 128], strides = [1, 1]} : vector<8x384xf32> to vector<8x128xf32>
    %104 = vector.extract_strided_slice %102 {offsets = [0, 0], sizes = [8, 128], strides = [1, 1]} : vector<8x384xf32> to vector<8x128xf32>
    %105 = arith.addf %103, %104 : vector<8x128xf32>
    %106 = arith.negf %105 : vector<8x128xf32>
    %107 = math.exp %106 : vector<8x128xf32>
    %cst_32 = arith.constant 1.000000e+00 : f32
    %108 = vector.broadcast %cst_32 : f32 to vector<8x128xf32>
    %109 = arith.addf %108, %107 : vector<8x128xf32>
    %110 = arith.divf %108, %109 : vector<8x128xf32>
    %111 = vector.extract_strided_slice %100 {offsets = [0, 128], sizes = [8, 128], strides = [1, 1]} : vector<8x384xf32> to vector<8x128xf32>
    %112 = vector.extract_strided_slice %102 {offsets = [0, 128], sizes = [8, 128], strides = [1, 1]} : vector<8x384xf32> to vector<8x128xf32>
    %113 = arith.addf %111, %112 : vector<8x128xf32>
    %114 = arith.negf %113 : vector<8x128xf32>
    %115 = math.exp %114 : vector<8x128xf32>
    %cst_33 = arith.constant 1.000000e+00 : f32
    %116 = vector.broadcast %cst_33 : f32 to vector<8x128xf32>
    %117 = arith.addf %116, %115 : vector<8x128xf32>
    %118 = arith.divf %116, %117 : vector<8x128xf32>
    %119 = vector.extract_strided_slice %100 {offsets = [0, 256], sizes = [8, 128], strides = [1, 1]} : vector<8x384xf32> to vector<8x128xf32>
    %120 = vector.extract_strided_slice %102 {offsets = [0, 256], sizes = [8, 128], strides = [1, 1]} : vector<8x384xf32> to vector<8x128xf32>
    %121 = arith.addf %120, %7 : vector<8x128xf32>
    %122 = arith.mulf %110, %121 : vector<8x128xf32>
    %123 = arith.addf %119, %122 : vector<8x128xf32>
    %124 = math.tanh %123 : vector<8x128xf32>
    %cst_34 = arith.constant 1.000000e+00 : f32
    %125 = vector.broadcast %cst_34 : f32 to vector<8x128xf32>
    %126 = arith.subf %125, %118 : vector<8x128xf32>
    %127 = arith.mulf %126, %124 : vector<8x128xf32>
    %128 = arith.mulf %118, %97 : vector<8x128xf32>
    %129 = arith.addf %127, %128 : vector<8x128xf32>
    %c2_i32 = arith.constant 2 : i32
    %130 = arith.addi %8, %c2_i32 : i32
    %131 = vector.broadcast %130 : i32 to vector<8x1xi32>
    %132 = arith.cmpi sgt, %3, %131 : vector<8x1xi32>
    %cst_35 = arith.constant 0.000000e+00 : f32
    %133 = vector.shape_cast %132 : vector<8x1xi1> to vector<8x1xi1>
    %134 = vector.broadcast %133 : vector<8x1xi1> to vector<8x128xi1>
    %135 = vector.broadcast %cst_35 : f32 to vector<8x128xf32>
    %136 = arith.select %134, %129, %135 : vector<8x128xi1>, vector<8x128xf32>
    %137 = vector.shape_cast %136 : vector<8x128xf32> to vector<8x1x128xf32>
    %c0_36 = arith.constant 0 : index
    %c2_37 = arith.constant 2 : index
    %c0_38 = arith.constant 0 : index
    %138 = vector.load %arg6[%c0_36, %c2_37, %c0_38] : memref<8x8x128xf32, #tpu.memory_space<vmem>>, vector<8x1x128xf32>
    tpu.vector_store %arg6[%c0_36, %c2_37, %c0_38], %137 {strides = array<i32>} : memref<8x8x128xf32, #tpu.memory_space<vmem>>, vector<8x1x128xf32>,
    %139 = vector.shape_cast %132 : vector<8x1xi1> to vector<8x1xi1>
    %140 = vector.broadcast %139 : vector<8x1xi1> to vector<8x128xi1>
    %141 = arith.select %140, %129, %97 : vector<8x128xi1>, vector<8x128xf32>
    %c3 = arith.constant 3 : index
    %c0_39 = arith.constant 0 : index
    %c0_40 = arith.constant 0 : index
    %142 = vector.load %arg1[%c3, %c0_39, %c0_40] : memref<8x8x384xbf16, #tpu.memory_space<vmem>>, vector<1x8x384xbf16>
    %143 = vector.shape_cast %142 : vector<1x8x384xbf16> to vector<8x384xbf16>
    %144 = arith.extf %143 : vector<8x384xbf16> to vector<8x384xf32>
    %145 = arith.truncf %141 : vector<8x128xf32> to vector<8x128xbf16>
    %cst_41 = arith.constant dense<0.000000e+00> : vector<8x384xf32>
    %146 = tpu.matmul %145, %4, %cst_41 {dimension_numbers = #tpu.dot_dimension_numbers<[1], [0], [0], [1], [0, 0, 1, 1], [], []>} : vector<8x128xbf16>, vector<128x384xbf16>, vector<8x384xf32> -> vector<8x384xf32>
    %147 = vector.extract_strided_slice %144 {offsets = [0, 0], sizes = [8, 128], strides = [1, 1]} : vector<8x384xf32> to vector<8x128xf32>
    %148 = vector.extract_strided_slice %146 {offsets = [0, 0], sizes = [8, 128], strides = [1, 1]} : vector<8x384xf32> to vector<8x128xf32>
    %149 = arith.addf %147, %148 : vector<8x128xf32>
    %150 = arith.negf %149 : vector<8x128xf32>
    %151 = math.exp %150 : vector<8x128xf32>
    %cst_42 = arith.constant 1.000000e+00 : f32
    %152 = vector.broadcast %cst_42 : f32 to vector<8x128xf32>
    %153 = arith.addf %152, %151 : vector<8x128xf32>
    %154 = arith.divf %152, %153 : vector<8x128xf32>
    %155 = vector.extract_strided_slice %144 {offsets = [0, 128], sizes = [8, 128], strides = [1, 1]} : vector<8x384xf32> to vector<8x128xf32>
    %156 = vector.extract_strided_slice %146 {offsets = [0, 128], sizes = [8, 128], strides = [1, 1]} : vector<8x384xf32> to vector<8x128xf32>
    %157 = arith.addf %155, %156 : vector<8x128xf32>
    %158 = arith.negf %157 : vector<8x128xf32>
    %159 = math.exp %158 : vector<8x128xf32>
    %cst_43 = arith.constant 1.000000e+00 : f32
    %160 = vector.broadcast %cst_43 : f32 to vector<8x128xf32>
    %161 = arith.addf %160, %159 : vector<8x128xf32>
    %162 = arith.divf %160, %161 : vector<8x128xf32>
    %163 = vector.extract_strided_slice %144 {offsets = [0, 256], sizes = [8, 128], strides = [1, 1]} : vector<8x384xf32> to vector<8x128xf32>
    %164 = vector.extract_strided_slice %146 {offsets = [0, 256], sizes = [8, 128], strides = [1, 1]} : vector<8x384xf32> to vector<8x128xf32>
    %165 = arith.addf %164, %7 : vector<8x128xf32>
    %166 = arith.mulf %154, %165 : vector<8x128xf32>
    %167 = arith.addf %163, %166 : vector<8x128xf32>
    %168 = math.tanh %167 : vector<8x128xf32>
    %cst_44 = arith.constant 1.000000e+00 : f32
    %169 = vector.broadcast %cst_44 : f32 to vector<8x128xf32>
    %170 = arith.subf %169, %162 : vector<8x128xf32>
    %171 = arith.mulf %170, %168 : vector<8x128xf32>
    %172 = arith.mulf %162, %141 : vector<8x128xf32>
    %173 = arith.addf %171, %172 : vector<8x128xf32>
    %c3_i32 = arith.constant 3 : i32
    %174 = arith.addi %8, %c3_i32 : i32
    %175 = vector.broadcast %174 : i32 to vector<8x1xi32>
    %176 = arith.cmpi sgt, %3, %175 : vector<8x1xi32>
    %cst_45 = arith.constant 0.000000e+00 : f32
    %177 = vector.shape_cast %176 : vector<8x1xi1> to vector<8x1xi1>
    %178 = vector.broadcast %177 : vector<8x1xi1> to vector<8x128xi1>
    %179 = vector.broadcast %cst_45 : f32 to vector<8x128xf32>
    %180 = arith.select %178, %173, %179 : vector<8x128xi1>, vector<8x128xf32>
    %181 = vector.shape_cast %180 : vector<8x128xf32> to vector<8x1x128xf32>
    %c0_46 = arith.constant 0 : index
    %c3_47 = arith.constant 3 : index
    %c0_48 = arith.constant 0 : index
    %182 = vector.load %arg6[%c0_46, %c3_47, %c0_48] : memref<8x8x128xf32, #tpu.memory_space<vmem>>, vector<8x1x128xf32>
    tpu.vector_store %arg6[%c0_46, %c3_47, %c0_48], %181 {strides = array<i32>} : memref<8x8x128xf32, #tpu.memory_space<vmem>>, vector<8x1x128xf32>,
    %183 = vector.shape_cast %176 : vector<8x1xi1> to vector<8x1xi1>
    %184 = vector.broadcast %183 : vector<8x1xi1> to vector<8x128xi1>
    %185 = arith.select %184, %173, %141 : vector<8x128xi1>, vector<8x128xf32>
    %c4 = arith.constant 4 : index
    %c0_49 = arith.constant 0 : index
    %c0_50 = arith.constant 0 : index
    %186 = vector.load %arg1[%c4, %c0_49, %c0_50] : memref<8x8x384xbf16, #tpu.memory_space<vmem>>, vector<1x8x384xbf16>
    %187 = vector.shape_cast %186 : vector<1x8x384xbf16> to vector<8x384xbf16>
    %188 = arith.extf %187 : vector<8x384xbf16> to vector<8x384xf32>
    %189 = arith.truncf %185 : vector<8x128xf32> to vector<8x128xbf16>
    %cst_51 = arith.constant dense<0.000000e+00> : vector<8x384xf32>
    %190 = tpu.matmul %189, %4, %cst_51 {dimension_numbers = #tpu.dot_dimension_numbers<[1], [0], [0], [1], [0, 0, 1, 1], [], []>} : vector<8x128xbf16>, vector<128x384xbf16>, vector<8x384xf32> -> vector<8x384xf32>
    %191 = vector.extract_strided_slice %188 {offsets = [0, 0], sizes = [8, 128], strides = [1, 1]} : vector<8x384xf32> to vector<8x128xf32>
    %192 = vector.extract_strided_slice %190 {offsets = [0, 0], sizes = [8, 128], strides = [1, 1]} : vector<8x384xf32> to vector<8x128xf32>
    %193 = arith.addf %191, %192 : vector<8x128xf32>
    %194 = arith.negf %193 : vector<8x128xf32>
    %195 = math.exp %194 : vector<8x128xf32>
    %cst_52 = arith.constant 1.000000e+00 : f32
    %196 = vector.broadcast %cst_52 : f32 to vector<8x128xf32>
    %197 = arith.addf %196, %195 : vector<8x128xf32>
    %198 = arith.divf %196, %197 : vector<8x128xf32>
    %199 = vector.extract_strided_slice %188 {offsets = [0, 128], sizes = [8, 128], strides = [1, 1]} : vector<8x384xf32> to vector<8x128xf32>
    %200 = vector.extract_strided_slice %190 {offsets = [0, 128], sizes = [8, 128], strides = [1, 1]} : vector<8x384xf32> to vector<8x128xf32>
    %201 = arith.addf %199, %200 : vector<8x128xf32>
    %202 = arith.negf %201 : vector<8x128xf32>
    %203 = math.exp %202 : vector<8x128xf32>
    %cst_53 = arith.constant 1.000000e+00 : f32
    %204 = vector.broadcast %cst_53 : f32 to vector<8x128xf32>
    %205 = arith.addf %204, %203 : vector<8x128xf32>
    %206 = arith.divf %204, %205 : vector<8x128xf32>
    %207 = vector.extract_strided_slice %188 {offsets = [0, 256], sizes = [8, 128], strides = [1, 1]} : vector<8x384xf32> to vector<8x128xf32>
    %208 = vector.extract_strided_slice %190 {offsets = [0, 256], sizes = [8, 128], strides = [1, 1]} : vector<8x384xf32> to vector<8x128xf32>
    %209 = arith.addf %208, %7 : vector<8x128xf32>
    %210 = arith.mulf %198, %209 : vector<8x128xf32>
    %211 = arith.addf %207, %210 : vector<8x128xf32>
    %212 = math.tanh %211 : vector<8x128xf32>
    %cst_54 = arith.constant 1.000000e+00 : f32
    %213 = vector.broadcast %cst_54 : f32 to vector<8x128xf32>
    %214 = arith.subf %213, %206 : vector<8x128xf32>
    %215 = arith.mulf %214, %212 : vector<8x128xf32>
    %216 = arith.mulf %206, %185 : vector<8x128xf32>
    %217 = arith.addf %215, %216 : vector<8x128xf32>
    %c4_i32 = arith.constant 4 : i32
    %218 = arith.addi %8, %c4_i32 : i32
    %219 = vector.broadcast %218 : i32 to vector<8x1xi32>
    %220 = arith.cmpi sgt, %3, %219 : vector<8x1xi32>
    %cst_55 = arith.constant 0.000000e+00 : f32
    %221 = vector.shape_cast %220 : vector<8x1xi1> to vector<8x1xi1>
    %222 = vector.broadcast %221 : vector<8x1xi1> to vector<8x128xi1>
    %223 = vector.broadcast %cst_55 : f32 to vector<8x128xf32>
    %224 = arith.select %222, %217, %223 : vector<8x128xi1>, vector<8x128xf32>
    %225 = vector.shape_cast %224 : vector<8x128xf32> to vector<8x1x128xf32>
    %c0_56 = arith.constant 0 : index
    %c4_57 = arith.constant 4 : index
    %c0_58 = arith.constant 0 : index
    %226 = vector.load %arg6[%c0_56, %c4_57, %c0_58] : memref<8x8x128xf32, #tpu.memory_space<vmem>>, vector<8x1x128xf32>
    tpu.vector_store %arg6[%c0_56, %c4_57, %c0_58], %225 {strides = array<i32>} : memref<8x8x128xf32, #tpu.memory_space<vmem>>, vector<8x1x128xf32>,
    %227 = vector.shape_cast %220 : vector<8x1xi1> to vector<8x1xi1>
    %228 = vector.broadcast %227 : vector<8x1xi1> to vector<8x128xi1>
    %229 = arith.select %228, %217, %185 : vector<8x128xi1>, vector<8x128xf32>
    %c5 = arith.constant 5 : index
    %c0_59 = arith.constant 0 : index
    %c0_60 = arith.constant 0 : index
    %230 = vector.load %arg1[%c5, %c0_59, %c0_60] : memref<8x8x384xbf16, #tpu.memory_space<vmem>>, vector<1x8x384xbf16>
    %231 = vector.shape_cast %230 : vector<1x8x384xbf16> to vector<8x384xbf16>
    %232 = arith.extf %231 : vector<8x384xbf16> to vector<8x384xf32>
    %233 = arith.truncf %229 : vector<8x128xf32> to vector<8x128xbf16>
    %cst_61 = arith.constant dense<0.000000e+00> : vector<8x384xf32>
    %234 = tpu.matmul %233, %4, %cst_61 {dimension_numbers = #tpu.dot_dimension_numbers<[1], [0], [0], [1], [0, 0, 1, 1], [], []>} : vector<8x128xbf16>, vector<128x384xbf16>, vector<8x384xf32> -> vector<8x384xf32>
    %235 = vector.extract_strided_slice %232 {offsets = [0, 0], sizes = [8, 128], strides = [1, 1]} : vector<8x384xf32> to vector<8x128xf32>
    %236 = vector.extract_strided_slice %234 {offsets = [0, 0], sizes = [8, 128], strides = [1, 1]} : vector<8x384xf32> to vector<8x128xf32>
    %237 = arith.addf %235, %236 : vector<8x128xf32>
    %238 = arith.negf %237 : vector<8x128xf32>
    %239 = math.exp %238 : vector<8x128xf32>
    %cst_62 = arith.constant 1.000000e+00 : f32
    %240 = vector.broadcast %cst_62 : f32 to vector<8x128xf32>
    %241 = arith.addf %240, %239 : vector<8x128xf32>
    %242 = arith.divf %240, %241 : vector<8x128xf32>
    %243 = vector.extract_strided_slice %232 {offsets = [0, 128], sizes = [8, 128], strides = [1, 1]} : vector<8x384xf32> to vector<8x128xf32>
    %244 = vector.extract_strided_slice %234 {offsets = [0, 128], sizes = [8, 128], strides = [1, 1]} : vector<8x384xf32> to vector<8x128xf32>
    %245 = arith.addf %243, %244 : vector<8x128xf32>
    %246 = arith.negf %245 : vector<8x128xf32>
    %247 = math.exp %246 : vector<8x128xf32>
    %cst_63 = arith.constant 1.000000e+00 : f32
    %248 = vector.broadcast %cst_63 : f32 to vector<8x128xf32>
    %249 = arith.addf %248, %247 : vector<8x128xf32>
    %250 = arith.divf %248, %249 : vector<8x128xf32>
    %251 = vector.extract_strided_slice %232 {offsets = [0, 256], sizes = [8, 128], strides = [1, 1]} : vector<8x384xf32> to vector<8x128xf32>
    %252 = vector.extract_strided_slice %234 {offsets = [0, 256], sizes = [8, 128], strides = [1, 1]} : vector<8x384xf32> to vector<8x128xf32>
    %253 = arith.addf %252, %7 : vector<8x128xf32>
    %254 = arith.mulf %242, %253 : vector<8x128xf32>
    %255 = arith.addf %251, %254 : vector<8x128xf32>
    %256 = math.tanh %255 : vector<8x128xf32>
    %cst_64 = arith.constant 1.000000e+00 : f32
    %257 = vector.broadcast %cst_64 : f32 to vector<8x128xf32>
    %258 = arith.subf %257, %250 : vector<8x128xf32>
    %259 = arith.mulf %258, %256 : vector<8x128xf32>
    %260 = arith.mulf %250, %229 : vector<8x128xf32>
    %261 = arith.addf %259, %260 : vector<8x128xf32>
    %c5_i32 = arith.constant 5 : i32
    %262 = arith.addi %8, %c5_i32 : i32
    %263 = vector.broadcast %262 : i32 to vector<8x1xi32>
    %264 = arith.cmpi sgt, %3, %263 : vector<8x1xi32>
    %cst_65 = arith.constant 0.000000e+00 : f32
    %265 = vector.shape_cast %264 : vector<8x1xi1> to vector<8x1xi1>
    %266 = vector.broadcast %265 : vector<8x1xi1> to vector<8x128xi1>
    %267 = vector.broadcast %cst_65 : f32 to vector<8x128xf32>
    %268 = arith.select %266, %261, %267 : vector<8x128xi1>, vector<8x128xf32>
    %269 = vector.shape_cast %268 : vector<8x128xf32> to vector<8x1x128xf32>
    %c0_66 = arith.constant 0 : index
    %c5_67 = arith.constant 5 : index
    %c0_68 = arith.constant 0 : index
    %270 = vector.load %arg6[%c0_66, %c5_67, %c0_68] : memref<8x8x128xf32, #tpu.memory_space<vmem>>, vector<8x1x128xf32>
    tpu.vector_store %arg6[%c0_66, %c5_67, %c0_68], %269 {strides = array<i32>} : memref<8x8x128xf32, #tpu.memory_space<vmem>>, vector<8x1x128xf32>,
    %271 = vector.shape_cast %264 : vector<8x1xi1> to vector<8x1xi1>
    %272 = vector.broadcast %271 : vector<8x1xi1> to vector<8x128xi1>
    %273 = arith.select %272, %261, %229 : vector<8x128xi1>, vector<8x128xf32>
    %c6 = arith.constant 6 : index
    %c0_69 = arith.constant 0 : index
    %c0_70 = arith.constant 0 : index
    %274 = vector.load %arg1[%c6, %c0_69, %c0_70] : memref<8x8x384xbf16, #tpu.memory_space<vmem>>, vector<1x8x384xbf16>
    %275 = vector.shape_cast %274 : vector<1x8x384xbf16> to vector<8x384xbf16>
    %276 = arith.extf %275 : vector<8x384xbf16> to vector<8x384xf32>
    %277 = arith.truncf %273 : vector<8x128xf32> to vector<8x128xbf16>
    %cst_71 = arith.constant dense<0.000000e+00> : vector<8x384xf32>
    %278 = tpu.matmul %277, %4, %cst_71 {dimension_numbers = #tpu.dot_dimension_numbers<[1], [0], [0], [1], [0, 0, 1, 1], [], []>} : vector<8x128xbf16>, vector<128x384xbf16>, vector<8x384xf32> -> vector<8x384xf32>
    %279 = vector.extract_strided_slice %276 {offsets = [0, 0], sizes = [8, 128], strides = [1, 1]} : vector<8x384xf32> to vector<8x128xf32>
    %280 = vector.extract_strided_slice %278 {offsets = [0, 0], sizes = [8, 128], strides = [1, 1]} : vector<8x384xf32> to vector<8x128xf32>
    %281 = arith.addf %279, %280 : vector<8x128xf32>
    %282 = arith.negf %281 : vector<8x128xf32>
    %283 = math.exp %282 : vector<8x128xf32>
    %cst_72 = arith.constant 1.000000e+00 : f32
    %284 = vector.broadcast %cst_72 : f32 to vector<8x128xf32>
    %285 = arith.addf %284, %283 : vector<8x128xf32>
    %286 = arith.divf %284, %285 : vector<8x128xf32>
    %287 = vector.extract_strided_slice %276 {offsets = [0, 128], sizes = [8, 128], strides = [1, 1]} : vector<8x384xf32> to vector<8x128xf32>
    %288 = vector.extract_strided_slice %278 {offsets = [0, 128], sizes = [8, 128], strides = [1, 1]} : vector<8x384xf32> to vector<8x128xf32>
    %289 = arith.addf %287, %288 : vector<8x128xf32>
    %290 = arith.negf %289 : vector<8x128xf32>
    %291 = math.exp %290 : vector<8x128xf32>
    %cst_73 = arith.constant 1.000000e+00 : f32
    %292 = vector.broadcast %cst_73 : f32 to vector<8x128xf32>
    %293 = arith.addf %292, %291 : vector<8x128xf32>
    %294 = arith.divf %292, %293 : vector<8x128xf32>
    %295 = vector.extract_strided_slice %276 {offsets = [0, 256], sizes = [8, 128], strides = [1, 1]} : vector<8x384xf32> to vector<8x128xf32>
    %296 = vector.extract_strided_slice %278 {offsets = [0, 256], sizes = [8, 128], strides = [1, 1]} : vector<8x384xf32> to vector<8x128xf32>
    %297 = arith.addf %296, %7 : vector<8x128xf32>
    %298 = arith.mulf %286, %297 : vector<8x128xf32>
    %299 = arith.addf %295, %298 : vector<8x128xf32>
    %300 = math.tanh %299 : vector<8x128xf32>
    %cst_74 = arith.constant 1.000000e+00 : f32
    %301 = vector.broadcast %cst_74 : f32 to vector<8x128xf32>
    %302 = arith.subf %301, %294 : vector<8x128xf32>
    %303 = arith.mulf %302, %300 : vector<8x128xf32>
    %304 = arith.mulf %294, %273 : vector<8x128xf32>
    %305 = arith.addf %303, %304 : vector<8x128xf32>
    %c6_i32 = arith.constant 6 : i32
    %306 = arith.addi %8, %c6_i32 : i32
    %307 = vector.broadcast %306 : i32 to vector<8x1xi32>
    %308 = arith.cmpi sgt, %3, %307 : vector<8x1xi32>
    %cst_75 = arith.constant 0.000000e+00 : f32
    %309 = vector.shape_cast %308 : vector<8x1xi1> to vector<8x1xi1>
    %310 = vector.broadcast %309 : vector<8x1xi1> to vector<8x128xi1>
    %311 = vector.broadcast %cst_75 : f32 to vector<8x128xf32>
    %312 = arith.select %310, %305, %311 : vector<8x128xi1>, vector<8x128xf32>
    %313 = vector.shape_cast %312 : vector<8x128xf32> to vector<8x1x128xf32>
    %c0_76 = arith.constant 0 : index
    %c6_77 = arith.constant 6 : index
    %c0_78 = arith.constant 0 : index
    %314 = vector.load %arg6[%c0_76, %c6_77, %c0_78] : memref<8x8x128xf32, #tpu.memory_space<vmem>>, vector<8x1x128xf32>
    tpu.vector_store %arg6[%c0_76, %c6_77, %c0_78], %313 {strides = array<i32>} : memref<8x8x128xf32, #tpu.memory_space<vmem>>, vector<8x1x128xf32>,
    %315 = vector.shape_cast %308 : vector<8x1xi1> to vector<8x1xi1>
    %316 = vector.broadcast %315 : vector<8x1xi1> to vector<8x128xi1>
    %317 = arith.select %316, %305, %273 : vector<8x128xi1>, vector<8x128xf32>
    %c7 = arith.constant 7 : index
    %c0_79 = arith.constant 0 : index
    %c0_80 = arith.constant 0 : index
    %318 = vector.load %arg1[%c7, %c0_79, %c0_80] : memref<8x8x384xbf16, #tpu.memory_space<vmem>>, vector<1x8x384xbf16>
    %319 = vector.shape_cast %318 : vector<1x8x384xbf16> to vector<8x384xbf16>
    %320 = arith.extf %319 : vector<8x384xbf16> to vector<8x384xf32>
    %321 = arith.truncf %317 : vector<8x128xf32> to vector<8x128xbf16>
    %cst_81 = arith.constant dense<0.000000e+00> : vector<8x384xf32>
    %322 = tpu.matmul %321, %4, %cst_81 {dimension_numbers = #tpu.dot_dimension_numbers<[1], [0], [0], [1], [0, 0, 1, 1], [], []>} : vector<8x128xbf16>, vector<128x384xbf16>, vector<8x384xf32> -> vector<8x384xf32>
    %323 = vector.extract_strided_slice %320 {offsets = [0, 0], sizes = [8, 128], strides = [1, 1]} : vector<8x384xf32> to vector<8x128xf32>
    %324 = vector.extract_strided_slice %322 {offsets = [0, 0], sizes = [8, 128], strides = [1, 1]} : vector<8x384xf32> to vector<8x128xf32>
    %325 = arith.addf %323, %324 : vector<8x128xf32>
    %326 = arith.negf %325 : vector<8x128xf32>
    %327 = math.exp %326 : vector<8x128xf32>
    %cst_82 = arith.constant 1.000000e+00 : f32
    %328 = vector.broadcast %cst_82 : f32 to vector<8x128xf32>
    %329 = arith.addf %328, %327 : vector<8x128xf32>
    %330 = arith.divf %328, %329 : vector<8x128xf32>
    %331 = vector.extract_strided_slice %320 {offsets = [0, 128], sizes = [8, 128], strides = [1, 1]} : vector<8x384xf32> to vector<8x128xf32>
    %332 = vector.extract_strided_slice %322 {offsets = [0, 128], sizes = [8, 128], strides = [1, 1]} : vector<8x384xf32> to vector<8x128xf32>
    %333 = arith.addf %331, %332 : vector<8x128xf32>
    %334 = arith.negf %333 : vector<8x128xf32>
    %335 = math.exp %334 : vector<8x128xf32>
    %cst_83 = arith.constant 1.000000e+00 : f32
    %336 = vector.broadcast %cst_83 : f32 to vector<8x128xf32>
    %337 = arith.addf %336, %335 : vector<8x128xf32>
    %338 = arith.divf %336, %337 : vector<8x128xf32>
    %339 = vector.extract_strided_slice %320 {offsets = [0, 256], sizes = [8, 128], strides = [1, 1]} : vector<8x384xf32> to vector<8x128xf32>
    %340 = vector.extract_strided_slice %322 {offsets = [0, 256], sizes = [8, 128], strides = [1, 1]} : vector<8x384xf32> to vector<8x128xf32>
    %341 = arith.addf %340, %7 : vector<8x128xf32>
    %342 = arith.mulf %330, %341 : vector<8x128xf32>
    %343 = arith.addf %339, %342 : vector<8x128xf32>
    %344 = math.tanh %343 : vector<8x128xf32>
    %cst_84 = arith.constant 1.000000e+00 : f32
    %345 = vector.broadcast %cst_84 : f32 to vector<8x128xf32>
    %346 = arith.subf %345, %338 : vector<8x128xf32>
    %347 = arith.mulf %346, %344 : vector<8x128xf32>
    %348 = arith.mulf %338, %317 : vector<8x128xf32>
    %349 = arith.addf %347, %348 : vector<8x128xf32>
    %c7_i32 = arith.constant 7 : i32
    %350 = arith.addi %8, %c7_i32 : i32
    %351 = vector.broadcast %350 : i32 to vector<8x1xi32>
    %352 = arith.cmpi sgt, %3, %351 : vector<8x1xi32>
    %cst_85 = arith.constant 0.000000e+00 : f32
    %353 = vector.shape_cast %352 : vector<8x1xi1> to vector<8x1xi1>
    %354 = vector.broadcast %353 : vector<8x1xi1> to vector<8x128xi1>
    %355 = vector.broadcast %cst_85 : f32 to vector<8x128xf32>
    %356 = arith.select %354, %349, %355 : vector<8x128xi1>, vector<8x128xf32>
    %357 = vector.shape_cast %356 : vector<8x128xf32> to vector<8x1x128xf32>
    %c0_86 = arith.constant 0 : index
    %c7_87 = arith.constant 7 : index
    %c0_88 = arith.constant 0 : index
    %358 = vector.load %arg6[%c0_86, %c7_87, %c0_88] : memref<8x8x128xf32, #tpu.memory_space<vmem>>, vector<8x1x128xf32>
    tpu.vector_store %arg6[%c0_86, %c7_87, %c0_88], %357 {strides = array<i32>} : memref<8x8x128xf32, #tpu.memory_space<vmem>>, vector<8x1x128xf32>,
    %359 = vector.shape_cast %352 : vector<8x1xi1> to vector<8x1xi1>
    %360 = vector.broadcast %359 : vector<8x1xi1> to vector<8x128xi1>
    %361 = arith.select %360, %349, %317 : vector<8x128xi1>, vector<8x128xf32>
    %c0_89 = arith.constant 0 : index
    %c0_90 = arith.constant 0 : index
    %362 = vector.load %arg7[%c0_89, %c0_90] : memref<8x128xf32, #tpu.memory_space<vmem>>, vector<8x128xf32>
    tpu.vector_store %arg7[%c0_89, %c0_90], %361 {strides = array<i32>} : memref<8x128xf32, #tpu.memory_space<vmem>>, vector<8x128xf32>,
    return
  }
  func.func @transform_0(%arg0: i32) -> (i32, i32, i32) {
    %c0_i32 = arith.constant 0 : i32
    %c1_i32 = arith.constant 1 : i32
    %c0_i32_0 = arith.constant 0 : i32
    return %arg0, %c0_i32, %c1_i32 : i32, i32, i32
  }
  func.func @transform_1(%arg0: i32) -> (i32, i32) {
    %c0_i32 = arith.constant 0 : i32
    %c0_i32_0 = arith.constant 0 : i32
    %c0_i32_1 = arith.constant 0 : i32
    return %c0_i32, %c0_i32_0 : i32, i32
  }
  func.func @transform_2(%arg0: i32) -> (i32, i32) {
    %c0_i32 = arith.constant 0 : i32
    %c0_i32_0 = arith.constant 0 : i32
    %c0_i32_1 = arith.constant 0 : i32
    return %c0_i32, %c0_i32_0 : i32, i32
  }
  func.func @transform_3(%arg0: i32) -> (i32, i32) {
    %c0_i32 = arith.constant 0 : i32
    %c0_i32_0 = arith.constant 0 : i32
    %c0_i32_1 = arith.constant 0 : i32
    return %c0_i32, %c0_i32_0 : i32, i32
  }
  func.func @transform_4(%arg0: i32) -> (i32, i32) {
    %c0_i32 = arith.constant 0 : i32
    %c0_i32_0 = arith.constant 0 : i32
    %c0_i32_1 = arith.constant 0 : i32
    return %c0_i32, %c0_i32_0 : i32, i32
  }
  func.func @transform_5(%arg0: i32) -> (i32, i32, i32) {
    %c0_i32 = arith.constant 0 : i32
    %c0_i32_0 = arith.constant 0 : i32
    %c0_i32_1 = arith.constant 0 : i32
    return %c0_i32, %arg0, %c0_i32_0 : i32, i32, i32
  }
}

</mosaic_0001>

<llo_original>
// kernel: neg.1
$region0: #{neg.1}
  #allocation0 [shape = 's32[1]{0}', space=sflag, size = 0x4, scoped, tag = 'scoped memory for neg.1']
  %s0 = inlined_call_operand.vmem [shape: s32[4], index: 0, kind: input, shape index: {}]
  %s1 = inlined_call_operand.vmem [shape: s32[4], index: 1, kind: output, shape index: {}]
  %v2 = vld [vmem:[%s0] sm:$0x1]
  %3 = xla_tuple %v2
  %4 = xla_tuple %3
  %v5 = vsub.s32 0, %v2
  %6 = xla_tuple %v5
  %7 = vst [vmem:[%s1] sm:$0x1] %v5

// kernel: sentence_vae_forward.7
$region0: #{sentence_vae_forward.7}
  #allocation0 [shape = 'u32[]', space=smem, size = 0x4, offset = 0x4, fixed_abs, tag = 'smem constant byte address 0x4 - core index']
  #allocation1 [shape = 'u32[72,128]{1,0:T(1,128)}', space=vmem, size = 0x9000, scoped, tag = 'internal scratch']
  #allocation2 [shape = 's32[1]{0}', space=sflag, size = 0x4, scoped, tag = 'scoped memory for sentence_vae_forward.7']
  #allocation3 [shape = 'u8[512]{0}', space=smem, size = 0x200, scoped, tag = 'prefetched SMEM operand 0']
  %s0 = inlined_call_operand.vmem [shape: s32[4], index: 0, kind: input, shape index: {}]
  %s1 = inlined_call_operand.vmem [shape: f32[8,16,128], index: 1, kind: input, shape index: {}]
  %s2 = inlined_call_operand.vmem [shape: bf16[128,256], index: 2, kind: input, shape index: {}]
  %s3 = inlined_call_operand.vmem [shape: f32[1,256], index: 3, kind: input, shape index: {}]
  %s4 = inlined_call_operand.hbm [shape: f32[64,256], index: 4, kind: output, shape index: {}]
  %s5 = sld [smem:[#allocation0]]
  $region45: #{sentence_vae_forward.7} parent=0
    _
  %s7 = ssub.s32 1, %s5
  %s8 = scalar_select 0, %s7, %s5
  %s10 = sshll.u32 %s0, 4
  %s11 = int_to_ptr.vmem [resolvable:$true] %s10
  %13 = dma.vmem_to_smem %s11, 16, [#allocation3], [#allocation2]
  %15 = dma.done [#allocation2], 16
  %16 = sfence
  $region1: #{sentence_vae_forward.7} parent=0
    #allocation4 [shape = 'u8[32768]{0}', space=vmem, size = 0x8000, scoped, tag = 'output window, operand 0']
    #allocation5 [shape = 's32[2]{0}', space=sflag, size = 0x8, scoped, tag = 'scoped memory for sentence_vae_forward.7']
    %17 = vsyncpa [#allocation5], 0
    %s18 = scalar_lea.sflag [#allocation5], 1
    %19 = vsyncpa %s18, 0
    loop: start=0, step=1, limit=6
    $region2: #{sentence_vae_forward.7} parent=1 // loop_pre_header
      _
    $region3: #{sentence_vae_forward.7} parent=1 // loop_header
      %s21 = sphi 0, %s25
      %p22 = scmp.ge.s32.totalorder %s21, 6
      %s28 = sphi 0, %s40
      %s29 = sphi 0, %s36
      %s30 = sphi 0, %s28
      %s31 = sphi 0, %s29
      %s32 = sphi 0, %s30
      %s33 = sphi 0, %s31
      %s47 = sphi 0, %s49
      %s50 = sphi 0, %s47
      %s51 = sphi 0, %s50
      %s67 = sphi 0, %s51
      %s71 = sphi 0, %s71
      %s73 = sphi 0, %s71
      %s74 = sphi 0, %s73
      %s88 = sphi 0, %s74
      %s92 = sphi 0, %s92
      %s94 = sphi 0, %s92
      %s95 = sphi 0, %s94
      %s109 = sphi 0, %s95
      %s117 = sphi 0, %s119
      %s120 = sphi 0, %s117
      %s121 = sphi 0, %s120
      %s137 = sphi 0, %s121
    $region4: #{sentence_vae_forward.7} parent=1 // loop_header_branch
      %24 = sbr.rel (%p22) target = $region8
    $region5: #{sentence_vae_forward.7} parent=1 // loop_body
      %s26 = ssub.s32 %s21, 1
      %s27 = ssub.s32 %s21, 2
      %s34 = sadd.s32 1, %s29
      %p35 = scmp.ge.s32.totalorder %s34, 1
      %s36 = scalar_select %p35, 0, %s34
      %s37 = sadd.s32 1, %s28
      %s38 = scalar_select %p35, %s37, %s28
      %p39 = scmp.ge.s32.totalorder %s38, 4
      %s40 = scalar_select %p39, 0, %s38
      %s41 = sld [smem:[#allocation3 + %s28]]
      %s42 = sld [smem:[#allocation3 + %s40]]
      %s43 = ssub.s32 %s41, %s42
      %s44 = ssub.s32 %s29, %s36
      %s45 = sor.u32 %s43, %s44
      %p46 = scmp.eq.s32.totalorder %s45, 0
      %s48 = sadd.s32 %s47, 1
      %s49 = scalar_select %p46, %s47, %s48
      %p52 = pneg %p46
      %p53 = scmp.eq.s32.totalorder %s21, 3
      %p54 = por %p52, %p53
      %p55 = scmp.ne.s32.totalorder %s47, %s50
      %p56 = scmp.eq.s32.totalorder %s21, 0
      %p57 = por %p55, %p56
      %p58 = scmp.ne.s32.totalorder %s47, %s50
      %p59 = scmp.eq.s32.totalorder %s26, 3
      %p60 = por %p58, %p59
      %p61 = scmp.ne.s32.totalorder %s50, %s51
      %p62 = scmp.eq.s32.totalorder %s26, 0
      %p63 = por %p61, %p62
      %p64 = scmp.ne.s32.totalorder %s50, %s51
      %p65 = scmp.eq.s32.totalorder %s27, 3
      %p66 = por %p64, %p65
      %p68 = scmp.ne.s32.totalorder %s51, %s67
      %p69 = scmp.eq.s32.totalorder %s27, 0
      %p70 = por %p68, %p69
      %s72 = sadd.s32 %s71, 1
      %p75 = scmp.eq.s32.totalorder %s21, 3
      %p76 = scmp.ne.s32.totalorder %s71, %s73
      %p77 = scmp.eq.s32.totalorder %s21, 0
      %p78 = por %p76, %p77
      %p79 = scmp.ne.s32.totalorder %s71, %s73
      %p80 = scmp.eq.s32.totalorder %s26, 3
      %p81 = por %p79, %p80
      %p82 = scmp.ne.s32.totalorder %s73, %s74
      %p83 = scmp.eq.s32.totalorder %s26, 0
      %p84 = por %p82, %p83
      %p85 = scmp.ne.s32.totalorder %s73, %s74
      %p86 = scmp.eq.s32.totalorder %s27, 3
      %p87 = por %p85, %p86
      %p89 = scmp.ne.s32.totalorder %s74, %s88
      %p90 = scmp.eq.s32.totalorder %s27, 0
      %p91 = por %p89, %p90
      %s93 = sadd.s32 %s92, 1
      %p96 = scmp.eq.s32.totalorder %s21, 3
      %p97 = scmp.ne.s32.totalorder %s92, %s94
      %p98 = scmp.eq.s32.totalorder %s21, 0
      %p99 = por %p97, %p98
      %p100 = scmp.ne.s32.totalorder %s92, %s94
      %p101 = scmp.eq.s32.totalorder %s26, 3
      %p102 = por %p100, %p101
      %p103 = scmp.ne.s32.totalorder %s94, %s95
      %p104 = scmp.eq.s32.totalorder %s26, 0
      %p105 = por %p103, %p104
      %p106 = scmp.ne.s32.totalorder %s94, %s95
      %p107 = scmp.eq.s32.totalorder %s27, 3
      %p108 = por %p106, %p107
      %p110 = scmp.ne.s32.totalorder %s95, %s109
      %p111 = scmp.eq.s32.totalorder %s27, 0
      %p112 = por %p110, %p111
      %s113 = sadd.s32 %s28, %s29
      %s114 = sadd.s32 %s40, %s36
      %s115 = ssub.s32 %s113, %s114
      %p116 = scmp.eq.s32.totalorder %s115, 0
      %s118 = sadd.s32 %s117, 1
      %s119 = scalar_select %p116, %s117, %s118
      %p122 = pneg %p116
      %p123 = scmp.eq.s32.totalorder %s21, 3
      %p124 = por %p122, %p123
      %p125 = scmp.ne.s32.totalorder %s117, %s120
      %p126 = scmp.eq.s32.totalorder %s21, 0
      %p127 = por %p125, %p126
      %p128 = scmp.ne.s32.totalorder %s117, %s120
      %p129 = scmp.eq.s32.totalorder %s26, 3
      %p130 = por %p128, %p129
      %p131 = scmp.ne.s32.totalorder %s120, %s121
      %p132 = scmp.eq.s32.totalorder %s26, 0
      %p133 = por %p131, %p132
      %p134 = scmp.ne.s32.totalorder %s120, %s121
      %p135 = scmp.eq.s32.totalorder %s27, 3
      %p136 = por %p134, %p135
      %p138 = scmp.ne.s32.totalorder %s121, %s137
      %p139 = scmp.eq.s32.totalorder %s27, 0
      %p140 = por %p138, %p139
      %p141 = scmp.le.s32.totalorder 1, %s21
      %p142 = scmp.lt.s32.totalorder %s21, 5
      %p143 = pnand %p141, %p142
      %p144 = pneg %p143
      // Predicated region
      $region9: #{sentence_vae_forward.7} parent=5 // pred_check
        _
      $region10: #{sentence_vae_forward.7} parent=5 // pred_check_branch
        %146 = sbr.rel (%p143) target = $region12
      $region11: #{sentence_vae_forward.7} parent=5 // pred_region
        %s147 = ssub.s32 %s21, 1
        // Predicated region
        $region13: #{sentence_vae_forward.7} parent=11 // pred_check
          %p148 = pneg %p84
        $region14: #{sentence_vae_forward.7} parent=11 // pred_check_branch
          %150 = sbr.rel (%p148) target = $region16
        $region15: #{sentence_vae_forward.7} parent=11 // pred_region
          _
        $region16: #{sentence_vae_forward.7} parent=11 // pred_fallthru
          _
        // Predicated region
        $region17: #{sentence_vae_forward.7} parent=11 // pred_check
          %p151 = pneg %p105
        $region18: #{sentence_vae_forward.7} parent=11 // pred_check_branch
          %153 = sbr.rel (%p151) target = $region20
        $region19: #{sentence_vae_forward.7} parent=11 // pred_region
          _
        $region20: #{sentence_vae_forward.7} parent=11 // pred_fallthru
          _
      $region12: #{sentence_vae_forward.7} parent=5 // pred_fallthru
        _
      %p154 = scmp.lt.s32.totalorder %s21, 4
      // Predicated region
      $region21: #{sentence_vae_forward.7} parent=5 // pred_check
        %p155 = pneg %p154
      $region22: #{sentence_vae_forward.7} parent=5 // pred_check_branch
        %157 = sbr.rel (%p155) target = $region24
      $region23: #{sentence_vae_forward.7} parent=5 // pred_region
        // Predicated region
        $region25: #{sentence_vae_forward.7} parent=23 // pred_check
          %p158 = pneg %p57
        $region26: #{sentence_vae_forward.7} parent=23 // pred_check_branch
          %160 = sbr.rel (%p158) target = $region28
        $region27: #{sentence_vae_forward.7} parent=23 // pred_region
          %s161 = sld [smem:[#allocation3 + %s28]]
          %s162 = smul.u32 2, %s29
          %p163 = scmp.lt.s32.totalorder %s161, 7
          %s164 = scalar_select %p163, %s161, 7
          %p165 = scmp.lt.s32.totalorder %s162, 1
          %s166 = scalar_select %p165, %s162, 1
          %s167 = smul.addr %s164, 2
          %s168 = sadd.s32 %s166, %s167
          %s169 = smul.addr %s168, 8
          %s170 = scalar_lea.vmem %s1, %s169
          %s171 = sld [smem:[#allocation3 + %s28]]
          %s172 = smul.u32 2, %s29
        $region28: #{sentence_vae_forward.7} parent=23 // pred_fallthru
          _
      $region24: #{sentence_vae_forward.7} parent=5 // pred_fallthru
        _
      %p173 = scmp.le.s32.totalorder 1, %s21
      %p174 = scmp.lt.s32.totalorder %s21, 5
      %p175 = pnand %p173, %p174
      %p176 = pneg %p175
      // Predicated region
      $region29: #{sentence_vae_forward.7} parent=5 // pred_check
        _
      $region30: #{sentence_vae_forward.7} parent=5 // pred_check_branch
        %178 = sbr.rel (%p175) target = $region32
      $region31: #{sentence_vae_forward.7} parent=5 // pred_region
        %s179 = ssub.s32 %s21, 1
        %s180 = sld [smem:[#allocation3 + %s30]]
        %s181 = smul.u32 2, %s31
        %p182 = scmp.lt.s32.totalorder %s180, 7
        %s183 = scalar_select %p182, %s180, 7
        %p184 = scmp.lt.s32.totalorder %s181, 1
        %s185 = scalar_select %p184, %s181, 1
        %s186 = smul.addr %s183, 2
        %s187 = sadd.s32 %s185, %s186
        %s188 = smul.addr %s187, 8
        %s189 = scalar_lea.vmem %s1, %s188
        %p190 = pneg %p63
        %p191 = pneg %p60
        %p192 = pneg %p84
        %p193 = pneg %p81
        %p194 = pneg %p105
        %p195 = pneg %p102
        %p196 = pneg %p133
        %p197 = pneg %p130
        %s198 = sand.u32 %s120, 1
        %s199 = scalar_lea.sflag [#allocation5], %s198
        %s200 = sand.u32 %s120, 1
        %s201 = smul.addr %s200, 32
        %s202 = scalar_lea.vmem [#allocation4], %s201
        %s203 = sld [smem:[#allocation3 + %s30]]
        %s204 = smul.u32 2, %s31
        %p205 = scmp.lt.s32.totalorder %s203, 7
        %s206 = scalar_select %p205, %s203, 7
        %p207 = scmp.lt.s32.totalorder %s204, 1
        %s208 = scalar_select %p207, %s204, 1
        %s209 = smul.addr %s206, 2
        %s210 = sadd.s32 %s208, %s209
        %s211 = smul.addr %s210, 8
        %s212 = scalar_lea.vmem %s1, %s211
        %s213 = sld [smem:[#allocation3 + %s30]]
        %s214 = smul.u32 2, %s31
        %s215 = sadd.s32 %s30, %s31
        %s216 = smul.u32 2, %s215
        %v217 = vld [vmem:[%s212] sm:$0xff]
        %v218 = vld [vmem:[%s212 + $0x8] sm:$0xff]
        %v219 = vpack.c.bf16 %v218, %v217
        %v220 = vld [vmem:[%s2] sm:$0xff]
        %v221 = vld [vmem:[%s2 + $0x8] sm:$0xff]
        %v222 = vld [vmem:[%s2 + $0x10] sm:$0xff]
        %v223 = vld [vmem:[%s2 + $0x18] sm:$0xff]
        %v224 = vld [vmem:[%s2 + $0x20] sm:$0xff]
        %v225 = vld [vmem:[%s2 + $0x28] sm:$0xff]
        %v226 = vld [vmem:[%s2 + $0x30] sm:$0xff]
        %v227 = vld [vmem:[%s2 + $0x38] sm:$0xff]
        %v228 = vld [vmem:[%s2 + $0x40] sm:$0xff]
        %v229 = vld [vmem:[%s2 + $0x48] sm:$0xff]
        %v230 = vld [vmem:[%s2 + $0x50] sm:$0xff]
        %v231 = vld [vmem:[%s2 + $0x58] sm:$0xff]
        %v232 = vld [vmem:[%s2 + $0x60] sm:$0xff]
        %v233 = vld [vmem:[%s2 + $0x68] sm:$0xff]
        %v234 = vld [vmem:[%s2 + $0x70] sm:$0xff]
        %v235 = vld [vmem:[%s2 + $0x78] sm:$0xff]
        %v236 = vld [vmem:[%s3] sm:$0x3]
        %v238 = vperm.slane %v236, 0
        %v239 = vperm.slane %v236, 1
        %v258 = vunpack.c.l.b16 %v220
        %v259 = vunpack.c.h.b16 %v220
        %v260 = vunpack.c.l.b16 %v221
        %v261 = vunpack.c.h.b16 %v221
        %v262 = vunpack.c.l.b16 %v222
        %v263 = vunpack.c.h.b16 %v222
        %v264 = vunpack.c.l.b16 %v223
        %v265 = vunpack.c.h.b16 %v223
        %v266 = vunpack.c.l.b16 %v224
        %v267 = vunpack.c.h.b16 %v224
        %v268 = vunpack.c.l.b16 %v225
        %v269 = vunpack.c.h.b16 %v225
        %v270 = vunpack.c.l.b16 %v226
        %v271 = vunpack.c.h.b16 %v226
        %v272 = vunpack.c.l.b16 %v227
        %v273 = vunpack.c.h.b16 %v227
        %v274 = vunpack.c.l.b16 %v228
        %v275 = vunpack.c.h.b16 %v228
        %v276 = vunpack.c.l.b16 %v229
        %v277 = vunpack.c.h.b16 %v229
        %v278 = vunpack.c.l.b16 %v230
        %v279 = vunpack.c.h.b16 %v230
        %v280 = vunpack.c.l.b16 %v231
        %v281 = vunpack.c.h.b16 %v231
        %v282 = vunpack.c.l.b16 %v232
        %v283 = vunpack.c.h.b16 %v232
        %v284 = vunpack.c.l.b16 %v233
        %v285 = vunpack.c.h.b16 %v233
        %v286 = vunpack.c.l.b16 %v234
        %v287 = vunpack.c.h.b16 %v234
        %v288 = vunpack.c.l.b16 %v235
        %v289 = vunpack.c.h.b16 %v235
        %v290 = vpack.c.b16 %v260, %v258
        %v291 = vpack.c.b16 %v261, %v259
        %v292 = vpack.c.b16 %v264, %v262
        %v293 = vpack.c.b16 %v265, %v263
        %v294 = vpack.c.b16 %v268, %v266
        %v295 = vpack.c.b16 %v269, %v267
        %v296 = vpack.c.b16 %v272, %v270
        %v297 = vpack.c.b16 %v273, %v271
        %v298 = vpack.c.b16 %v276, %v274
        %v299 = vpack.c.b16 %v277, %v275
        %v300 = vpack.c.b16 %v280, %v278
        %v301 = vpack.c.b16 %v281, %v279
        %v302 = vpack.c.b16 %v284, %v282
        %v303 = vpack.c.b16 %v285, %v283
        %v304 = vpack.c.b16 %v288, %v286
        %v305 = vpack.c.b16 %v289, %v287
        %322 = vmatpush.bf16.msra.mxu0 %v304
        %323 = vmatpush.bf16.msra.mxu0 %v302
        %324 = vmatpush.bf16.msra.mxu0 %v300
        %325 = vmatpush.bf16.msra.mxu0 %v298
        %326 = vmatpush.bf16.msra.mxu0 %v296
        %327 = vmatpush.bf16.msra.mxu0 %v294
        %328 = vmatpush.bf16.msra.mxu0 %v292
        %329 = vmatpush.bf16.msra.mxu0 %v290
        %330 = vmatmul.bf16.gmra.mxu0 %v219
        %v331 = vpop.f32.mrf.mxu0
        %v332 = vadd.f32 %v238, %v331
        %v333 = vpop.f32.mrf.mxu0
        %v334 = vadd.f32 %v238, %v333
        %335 = vdwg.mxu0
        %336 = vmatpush.bf16.msra.mxu0 %v305
        %337 = vmatpush.bf16.msra.mxu0 %v303
        %338 = vmatpush.bf16.msra.mxu0 %v301
        %339 = vmatpush.bf16.msra.mxu0 %v299
        %340 = vmatpush.bf16.msra.mxu0 %v297
        %341 = vmatpush.bf16.msra.mxu0 %v295
        %342 = vmatpush.bf16.msra.mxu0 %v293
        %343 = vmatpush.bf16.msra.mxu0 %v291
        %344 = vmatmul.bf16.gmra.mxu0 %v219
        %v345 = vpop.f32.mrf.mxu0
        %v346 = vadd.f32 %v239, %v345
        %v347 = vpop.f32.mrf.mxu0
        %v348 = vadd.f32 %v239, %v347
        %349 = vdwg.mxu0
        %v350 = vmax.f32 %v332, %v346
        %351 = vmax.xlane.f32.xlu0 %v350
        %v352 = vpop.xlane.xlu0 %351
        %v353 = vmax.f32 %v334, %v348
        %354 = vmax.xlane.f32.xlu0 %v353
        %v355 = vpop.xlane.xlu0 %354
        %v356 = vsub.f32 %v332, %v352
        %v357 = vsub.f32 %v346, %v352
        %v358 = vsub.f32 %v334, %v355
        %v359 = vsub.f32 %v348, %v355
        %v360 = vmul.f32 %v356, 1.442695
        %v361 = vpow.pop %v360
        %v362 = vmul.f32 %v357, 1.442695
        %v363 = vpow.pop %v362
        %v364 = vmul.f32 %v358, 1.442695
        %v365 = vpow.pop %v364
        %v366 = vmul.f32 %v359, 1.442695
        %v367 = vpow.pop %v366
        %v368 = vadd.f32 %v361, %v363
        %369 = vadd.xlane.f32.xlu0 %v368
        %v370 = vpop.xlane.xlu0 %369
        %v371 = vadd.f32 %v365, %v367
        %372 = vadd.xlane.f32.xlu0 %v371
        %v373 = vpop.xlane.xlu0 %372
        %v374 = vlog2.pop %v370
        %v375 = vmul.f32 %v374, 0.6931472
        %v376 = vlog2.pop %v373
        %v377 = vmul.f32 %v376, 0.6931472
        %v378 = vadd.f32 %v375, %v352
        %v379 = vadd.f32 %v377, %v355
        %v380 = vsub.f32 %v332, %v378
        %v381 = vsub.f32 %v346, %v378
        %v382 = vsub.f32 %v334, %v379
        %v383 = vsub.f32 %v348, %v379
        %384 = vst [vmem:[%s202] sm:$0xff] %v380
        %385 = vst [vmem:[%s202 + $0x8] sm:$0xff] %v381
        %386 = vst [vmem:[%s202 + $0x10] sm:$0xff] %v382
        %387 = vst [vmem:[%s202 + $0x18] sm:$0xff] %v383
        %s388 = sand.u32 %s120, 1
        %s389 = scalar_lea.sflag [#allocation5], %s388
        %s390 = sand.u32 %s120, 1
        %s391 = smul.addr %s390, 32
        %s392 = scalar_lea.vmem [#allocation4], %s391
        // Predicated region
        $region33: #{sentence_vae_forward.7} parent=31 // pred_check
          %p393 = pneg %p130
        $region34: #{sentence_vae_forward.7} parent=31 // pred_check_branch
          %395 = sbr.rel (%p393) target = $region36
        $region35: #{sentence_vae_forward.7} parent=31 // pred_region
          %s396 = sadd.s32 %s30, %s31
          %s397 = smul.u32 2, %s396
          %399 = vsyncadd %s389, 0
          %s400 = smul.addr %s397, 2
          %s401 = smul.addr %s400, 8
          %s402 = scalar_lea.hbm %s4, %s401
          %s403 = sshll.u32 %s392, 4
          %s404 = int_to_ptr.vmem [resolvable:$true] %s403
          %s405 = sshll.u32 %s402, 4
          %s406 = int_to_ptr.hbm [resolvable:$true] %s405
          %411 = dma.vmem_to_hbm [thread:$0]  %s404, 512, %s406, %s389, 256, 256, 16
        $region36: #{sentence_vae_forward.7} parent=31 // pred_fallthru
          _
      $region32: #{sentence_vae_forward.7} parent=5 // pred_fallthru
        _
      %p412 = scmp.le.s32.totalorder 2, %s21
      // Predicated region
      $region37: #{sentence_vae_forward.7} parent=5 // pred_check
        %p413 = pneg %p412
      $region38: #{sentence_vae_forward.7} parent=5 // pred_check_branch
        %415 = sbr.rel (%p413) target = $region40
      $region39: #{sentence_vae_forward.7} parent=5 // pred_region
        %s416 = ssub.s32 %s21, 2
        // Predicated region
        $region41: #{sentence_vae_forward.7} parent=39 // pred_check
          %p417 = pneg %p136
        $region42: #{sentence_vae_forward.7} parent=39 // pred_check_branch
          %419 = sbr.rel (%p417) target = $region44
        $region43: #{sentence_vae_forward.7} parent=39 // pred_region
          %s420 = sand.u32 %s121, 1
          %s421 = scalar_lea.sflag [#allocation5], %s420
          %s422 = sand.u32 %s121, 1
          %s423 = smul.addr %s422, 32
          %s424 = scalar_lea.vmem [#allocation4], %s423
          %426 = dma.done %s421, 512
        $region44: #{sentence_vae_forward.7} parent=39 // pred_fallthru
          _
      $region40: #{sentence_vae_forward.7} parent=5 // pred_fallthru
        _
    $region6: #{sentence_vae_forward.7} parent=1 // loop_footer
      %s25 = sadd.s32 1, %s21
    $region7: #{sentence_vae_forward.7} parent=1 // loop_footer_branch
      %20 = sbr.rel target = $region3
    $region8: #{sentence_vae_forward.7} parent=1 // loop_exit
      _
    %427 = vsyncpa [#allocation5], 1
    %s428 = scalar_lea.sflag [#allocation5], 1
    %429 = vsyncpa %s428, 1

// kernel: sentence_vae_forward.4
$region0: #{sentence_vae_forward.4}
  #allocation0 [shape = 'u32[]', space=smem, size = 0x4, offset = 0x4, fixed_abs, tag = 'smem constant byte address 0x4 - core index']
  #allocation1 [shape = 'u32[72,128]{1,0:T(1,128)}', space=vmem, size = 0x9000, scoped, tag = 'internal scratch']
  %s0 = inlined_call_operand.vmem [shape: bf16[128,64], index: 0, kind: input, shape index: {}]
  %s1 = inlined_call_operand.vmem [shape: bf16[64,768], index: 1, kind: input, shape index: {}]
  %s2 = inlined_call_operand.vmem [shape: f32[1,768], index: 2, kind: input, shape index: {}]
  %s3 = inlined_call_operand.vmem [shape: bf16[128,768], index: 3, kind: output, shape index: {}]
  %s4 = sld [smem:[#allocation0]]
  $region22: #{sentence_vae_forward.4} parent=0
    _
  %s6 = ssub.s32 1, %s4
  %s7 = scalar_select 0, %s6, %s4
  // Predicated region
  $region2: #{sentence_vae_forward.4} parent=0 // pred_check
    _
  $region3: #{sentence_vae_forward.4} parent=0 // pred_check_branch
    %9 = sbr.rel (0) target = $region5
  $region4: #{sentence_vae_forward.4} parent=0 // pred_region
    _
  $region5: #{sentence_vae_forward.4} parent=0 // pred_fallthru
    _
  // Predicated region
  $region6: #{sentence_vae_forward.4} parent=0 // pred_check
    _
  $region7: #{sentence_vae_forward.4} parent=0 // pred_check_branch
    %11 = sbr.rel (0) target = $region9
  $region8: #{sentence_vae_forward.4} parent=0 // pred_region
    _
  $region9: #{sentence_vae_forward.4} parent=0 // pred_fallthru
    _
  // Predicated region
  $region10: #{sentence_vae_forward.4} parent=0 // pred_check
    _
  $region11: #{sentence_vae_forward.4} parent=0 // pred_check_branch
    %13 = sbr.rel (0) target = $region13
  $region12: #{sentence_vae_forward.4} parent=0 // pred_region
    _
  $region13: #{sentence_vae_forward.4} parent=0 // pred_fallthru
    _
  %v15 = vld [vmem:[%s0] sm:$0xf]
  %v16 = vld [vmem:[%s0 + $0x4] sm:$0xf]
  %v17 = vld [vmem:[%s0 + $0x8] sm:$0xf]
  %v18 = vld [vmem:[%s0 + $0xc] sm:$0xf]
  %v19 = vld [vmem:[%s0 + $0x10] sm:$0xf]
  %v20 = vld [vmem:[%s0 + $0x14] sm:$0xf]
  %v21 = vld [vmem:[%s0 + $0x18] sm:$0xf]
  %v22 = vld [vmem:[%s0 + $0x1c] sm:$0xf]
  %v23 = vld [vmem:[%s0 + $0x20] sm:$0xf]
  %v24 = vld [vmem:[%s0 + $0x24] sm:$0xf]
  %v25 = vld [vmem:[%s0 + $0x28] sm:$0xf]
  %v26 = vld [vmem:[%s0 + $0x2c] sm:$0xf]
  %v27 = vld [vmem:[%s0 + $0x30] sm:$0xf]
  %v28 = vld [vmem:[%s0 + $0x34] sm:$0xf]
  %v29 = vld [vmem:[%s0 + $0x38] sm:$0xf]
  %v30 = vld [vmem:[%s0 + $0x3c] sm:$0xf]
  %v31 = vld [vmem:[%s1] sm:$0xff]
  %v32 = vld [vmem:[%s1 + $0x8] sm:$0xff]
  %v33 = vld [vmem:[%s1 + $0x10] sm:$0xff]
  %v34 = vld [vmem:[%s1 + $0x18] sm:$0xff]
  %v35 = vld [vmem:[%s1 + $0x20] sm:$0xff]
  %v36 = vld [vmem:[%s1 + $0x28] sm:$0xff]
  %v37 = vld [vmem:[%s1 + $0x30] sm:$0xff]
  %v38 = vld [vmem:[%s1 + $0x38] sm:$0xff]
  %v39 = vld [vmem:[%s1 + $0x40] sm:$0xff]
  %v40 = vld [vmem:[%s1 + $0x48] sm:$0xff]
  %v41 = vld [vmem:[%s1 + $0x50] sm:$0xff]
  %v42 = vld [vmem:[%s1 + $0x58] sm:$0xff]
  %v43 = vld [vmem:[%s1 + $0x60] sm:$0xff]
  %v44 = vld [vmem:[%s1 + $0x68] sm:$0xff]
  %v45 = vld [vmem:[%s1 + $0x70] sm:$0xff]
  %v46 = vld [vmem:[%s1 + $0x78] sm:$0xff]
  %v47 = vld [vmem:[%s1 + $0x80] sm:$0xff]
  %v48 = vld [vmem:[%s1 + $0x88] sm:$0xff]
  %v49 = vld [vmem:[%s1 + $0x90] sm:$0xff]
  %v50 = vld [vmem:[%s1 + $0x98] sm:$0xff]
  %v51 = vld [vmem:[%s1 + $0xa0] sm:$0xff]
  %v52 = vld [vmem:[%s1 + $0xa8] sm:$0xff]
  %v53 = vld [vmem:[%s1 + $0xb0] sm:$0xff]
  %v54 = vld [vmem:[%s1 + $0xb8] sm:$0xff]
  %v55 = vld [vmem:[%s2] sm:$0x3f]
  %v57 = vperm.slane %v55, 0
  %v58 = vperm.slane %v55, 1
  %v59 = vperm.slane %v55, 2
  %v60 = vperm.slane %v55, 3
  %v61 = vperm.slane %v55, 4
  %v62 = vperm.slane %v55, 5
  %v85 = vunpack.c.l.b16 %v15
  %v86 = vunpack.c.l.b16 %v16
  %v87 = vunpack.c.l.b16 %v17
  %v88 = vunpack.c.l.b16 %v18
  %v89 = vunpack.c.l.b16 %v19
  %v90 = vunpack.c.l.b16 %v20
  %v91 = vunpack.c.l.b16 %v21
  %v92 = vunpack.c.l.b16 %v22
  %v93 = vunpack.c.l.b16 %v23
  %v94 = vunpack.c.l.b16 %v24
  %v95 = vunpack.c.l.b16 %v25
  %v96 = vunpack.c.l.b16 %v26
  %v97 = vunpack.c.l.b16 %v27
  %v98 = vunpack.c.l.b16 %v28
  %v99 = vunpack.c.l.b16 %v29
  %v100 = vunpack.c.l.b16 %v30
  %v101 = vpack.c.b16 %v86, %v85
  %v102 = vpack.c.b16 %v88, %v87
  %v103 = vpack.c.b16 %v90, %v89
  %v104 = vpack.c.b16 %v92, %v91
  %v105 = vpack.c.b16 %v94, %v93
  %v106 = vpack.c.b16 %v96, %v95
  %v107 = vpack.c.b16 %v98, %v97
  %v108 = vpack.c.b16 %v100, %v99
  %v133 = vunpack.c.l.b16 %v31
  %v134 = vunpack.c.h.b16 %v31
  %v135 = vunpack.c.l.b16 %v32
  %v136 = vunpack.c.h.b16 %v32
  %v137 = vunpack.c.l.b16 %v33
  %v138 = vunpack.c.h.b16 %v33
  %v139 = vunpack.c.l.b16 %v34
  %v140 = vunpack.c.h.b16 %v34
  %v141 = vunpack.c.l.b16 %v35
  %v142 = vunpack.c.h.b16 %v35
  %v143 = vunpack.c.l.b16 %v36
  %v144 = vunpack.c.h.b16 %v36
  %v145 = vunpack.c.l.b16 %v37
  %v146 = vunpack.c.h.b16 %v37
  %v147 = vunpack.c.l.b16 %v38
  %v148 = vunpack.c.h.b16 %v38
  %v149 = vunpack.c.l.b16 %v39
  %v150 = vunpack.c.h.b16 %v39
  %v151 = vunpack.c.l.b16 %v40
  %v152 = vunpack.c.h.b16 %v40
  %v153 = vunpack.c.l.b16 %v41
  %v154 = vunpack.c.h.b16 %v41
  %v155 = vunpack.c.l.b16 %v42
  %v156 = vunpack.c.h.b16 %v42
  %v157 = vunpack.c.l.b16 %v43
  %v158 = vunpack.c.h.b16 %v43
  %v159 = vunpack.c.l.b16 %v44
  %v160 = vunpack.c.h.b16 %v44
  %v161 = vunpack.c.l.b16 %v45
  %v162 = vunpack.c.h.b16 %v45
  %v163 = vunpack.c.l.b16 %v46
  %v164 = vunpack.c.h.b16 %v46
  %v165 = vunpack.c.l.b16 %v47
  %v166 = vunpack.c.h.b16 %v47
  %v167 = vunpack.c.l.b16 %v48
  %v168 = vunpack.c.h.b16 %v48
  %v169 = vunpack.c.l.b16 %v49
  %v170 = vunpack.c.h.b16 %v49
  %v171 = vunpack.c.l.b16 %v50
  %v172 = vunpack.c.h.b16 %v50
  %v173 = vunpack.c.l.b16 %v51
  %v174 = vunpack.c.h.b16 %v51
  %v175 = vunpack.c.l.b16 %v52
  %v176 = vunpack.c.h.b16 %v52
  %v177 = vunpack.c.l.b16 %v53
  %v178 = vunpack.c.h.b16 %v53
  %v179 = vunpack.c.l.b16 %v54
  %v180 = vunpack.c.h.b16 %v54
  %v181 = vpack.c.b16 %v139, %v133
  %v182 = vpack.c.b16 %v140, %v134
  %v183 = vpack.c.b16 %v141, %v135
  %v184 = vpack.c.b16 %v142, %v136
  %v185 = vpack.c.b16 %v143, %v137
  %v186 = vpack.c.b16 %v144, %v138
  %v187 = vpack.c.b16 %v151, %v145
  %v188 = vpack.c.b16 %v152, %v146
  %v189 = vpack.c.b16 %v153, %v147
  %v190 = vpack.c.b16 %v154, %v148
  %v191 = vpack.c.b16 %v155, %v149
  %v192 = vpack.c.b16 %v156, %v150
  %v193 = vpack.c.b16 %v163, %v157
  %v194 = vpack.c.b16 %v164, %v158
  %v195 = vpack.c.b16 %v165, %v159
  %v196 = vpack.c.b16 %v166, %v160
  %v197 = vpack.c.b16 %v167, %v161
  %v198 = vpack.c.b16 %v168, %v162
  %v199 = vpack.c.b16 %v175, %v169
  %v200 = vpack.c.b16 %v176, %v170
  %v201 = vpack.c.b16 %v177, %v171
  %v202 = vpack.c.b16 %v178, %v172
  %v203 = vpack.c.b16 %v179, %v173
  %v204 = vpack.c.b16 %v180, %v174
  %vm229 = vcmask 523264
  %v231 = vsel %vm229, %v101, 0
  %v234 = vsel %vm229, %v102, 0
  %v237 = vsel %vm229, %v103, 0
  %v240 = vsel %vm229, %v104, 0
  %v243 = vsel %vm229, %v105, 0
  %v246 = vsel %vm229, %v106, 0
  %v249 = vsel %vm229, %v107, 0
  %v252 = vsel %vm229, %v108, 0
  %254 = vmatpush.bf16.msra.mxu0 0
  %255 = vmatpush.bf16.msra.mxu0 0
  %256 = vmatpush.bf16.msra.mxu0 0
  %257 = vmatpush.bf16.msra.mxu0 0
  %258 = vmatpush.bf16.msra.mxu0 %v199
  %259 = vmatpush.bf16.msra.mxu0 %v193
  %260 = vmatpush.bf16.msra.mxu0 %v187
  %261 = vmatpush.bf16.msra.mxu0 %v181
  %262 = vmatmul.bf16.gmra.mxu0 %v231
  %v263 = vpop.f32.mrf.mxu0
  %v264 = vadd.f32 %v57, %v263
  %v265 = vpop.f32.mrf.mxu0
  %v266 = vadd.f32 %v57, %v265
  %267 = vmatmul.bf16.gmra.mxu0 %v234
  %v268 = vpop.f32.mrf.mxu0
  %v269 = vadd.f32 %v57, %v268
  %v270 = vpop.f32.mrf.mxu0
  %v271 = vadd.f32 %v57, %v270
  %272 = vmatmul.bf16.gmra.mxu0 %v237
  %v273 = vpop.f32.mrf.mxu0
  %v274 = vadd.f32 %v57, %v273
  %v275 = vpop.f32.mrf.mxu0
  %v276 = vadd.f32 %v57, %v275
  %277 = vmatmul.bf16.gmra.mxu0 %v240
  %v278 = vpop.f32.mrf.mxu0
  %v279 = vadd.f32 %v57, %v278
  %v280 = vpop.f32.mrf.mxu0
  %v281 = vadd.f32 %v57, %v280
  %282 = vmatmul.bf16.gmra.mxu0 %v243
  %v283 = vpop.f32.mrf.mxu0
  %v284 = vadd.f32 %v57, %v283
  %v285 = vpop.f32.mrf.mxu0
  %v286 = vadd.f32 %v57, %v285
  %287 = vmatmul.bf16.gmra.mxu0 %v246
  %v288 = vpop.f32.mrf.mxu0
  %v289 = vadd.f32 %v57, %v288
  %v290 = vpop.f32.mrf.mxu0
  %v291 = vadd.f32 %v57, %v290
  %292 = vmatmul.bf16.gmra.mxu0 %v249
  %v293 = vpop.f32.mrf.mxu0
  %v294 = vadd.f32 %v57, %v293
  %v295 = vpop.f32.mrf.mxu0
  %v296 = vadd.f32 %v57, %v295
  %297 = vmatmul.bf16.gmra.mxu0 %v252
  %v298 = vpop.f32.mrf.mxu0
  %v299 = vadd.f32 %v57, %v298
  %v300 = vpop.f32.mrf.mxu0
  %v301 = vadd.f32 %v57, %v300
  %302 = vdwg.mxu0
  %303 = vmatpush.bf16.msra.mxu0 0
  %304 = vmatpush.bf16.msra.mxu0 0
  %305 = vmatpush.bf16.msra.mxu0 0
  %306 = vmatpush.bf16.msra.mxu0 0
  %307 = vmatpush.bf16.msra.mxu0 %v200
  %308 = vmatpush.bf16.msra.mxu0 %v194
  %309 = vmatpush.bf16.msra.mxu0 %v188
  %310 = vmatpush.bf16.msra.mxu0 %v182
  %311 = vmatmul.bf16.gmra.mxu0 %v231
  %v312 = vpop.f32.mrf.mxu0
  %v313 = vadd.f32 %v58, %v312
  %v314 = vpop.f32.mrf.mxu0
  %v315 = vadd.f32 %v58, %v314
  %316 = vmatmul.bf16.gmra.mxu0 %v234
  %v317 = vpop.f32.mrf.mxu0
  %v318 = vadd.f32 %v58, %v317
  %v319 = vpop.f32.mrf.mxu0
  %v320 = vadd.f32 %v58, %v319
  %321 = vmatmul.bf16.gmra.mxu0 %v237
  %v322 = vpop.f32.mrf.mxu0
  %v323 = vadd.f32 %v58, %v322
  %v324 = vpop.f32.mrf.mxu0
  %v325 = vadd.f32 %v58, %v324
  %326 = vmatmul.bf16.gmra.mxu0 %v240
  %v327 = vpop.f32.mrf.mxu0
  %v328 = vadd.f32 %v58, %v327
  %v329 = vpop.f32.mrf.mxu0
  %v330 = vadd.f32 %v58, %v329
  %331 = vmatmul.bf16.gmra.mxu0 %v243
  %v332 = vpop.f32.mrf.mxu0
  %v333 = vadd.f32 %v58, %v332
  %v334 = vpop.f32.mrf.mxu0
  %v335 = vadd.f32 %v58, %v334
  %336 = vmatmul.bf16.gmra.mxu0 %v246
  %v337 = vpop.f32.mrf.mxu0
  %v338 = vadd.f32 %v58, %v337
  %v339 = vpop.f32.mrf.mxu0
  %v340 = vadd.f32 %v58, %v339
  %341 = vmatmul.bf16.gmra.mxu0 %v249
  %v342 = vpop.f32.mrf.mxu0
  %v343 = vadd.f32 %v58, %v342
  %v344 = vpop.f32.mrf.mxu0
  %v345 = vadd.f32 %v58, %v344
  %346 = vmatmul.bf16.gmra.mxu0 %v252
  %v347 = vpop.f32.mrf.mxu0
  %v348 = vadd.f32 %v58, %v347
  %v349 = vpop.f32.mrf.mxu0
  %v350 = vadd.f32 %v58, %v349
  %351 = vdwg.mxu0
  %352 = vmatpush.bf16.msra.mxu0 0
  %353 = vmatpush.bf16.msra.mxu0 0
  %354 = vmatpush.bf16.msra.mxu0 0
  %355 = vmatpush.bf16.msra.mxu0 0
  %356 = vmatpush.bf16.msra.mxu0 %v201
  %357 = vmatpush.bf16.msra.mxu0 %v195
  %358 = vmatpush.bf16.msra.mxu0 %v189
  %359 = vmatpush.bf16.msra.mxu0 %v183
  %360 = vmatmul.bf16.gmra.mxu0 %v231
  %v361 = vpop.f32.mrf.mxu0
  %v362 = vadd.f32 %v59, %v361
  %v363 = vpop.f32.mrf.mxu0
  %v364 = vadd.f32 %v59, %v363
  %365 = vmatmul.bf16.gmra.mxu0 %v234
  %v366 = vpop.f32.mrf.mxu0
  %v367 = vadd.f32 %v59, %v366
  %v368 = vpop.f32.mrf.mxu0
  %v369 = vadd.f32 %v59, %v368
  %370 = vmatmul.bf16.gmra.mxu0 %v237
  %v371 = vpop.f32.mrf.mxu0
  %v372 = vadd.f32 %v59, %v371
  %v373 = vpop.f32.mrf.mxu0
  %v374 = vadd.f32 %v59, %v373
  %375 = vmatmul.bf16.gmra.mxu0 %v240
  %v376 = vpop.f32.mrf.mxu0
  %v377 = vadd.f32 %v59, %v376
  %v378 = vpop.f32.mrf.mxu0
  %v379 = vadd.f32 %v59, %v378
  %380 = vmatmul.bf16.gmra.mxu0 %v243
  %v381 = vpop.f32.mrf.mxu0
  %v382 = vadd.f32 %v59, %v381
  %v383 = vpop.f32.mrf.mxu0
  %v384 = vadd.f32 %v59, %v383
  %385 = vmatmul.bf16.gmra.mxu0 %v246
  %v386 = vpop.f32.mrf.mxu0
  %v387 = vadd.f32 %v59, %v386
  %v388 = vpop.f32.mrf.mxu0
  %v389 = vadd.f32 %v59, %v388
  %390 = vmatmul.bf16.gmra.mxu0 %v249
  %v391 = vpop.f32.mrf.mxu0
  %v392 = vadd.f32 %v59, %v391
  %v393 = vpop.f32.mrf.mxu0
  %v394 = vadd.f32 %v59, %v393
  %395 = vmatmul.bf16.gmra.mxu0 %v252
  %v396 = vpop.f32.mrf.mxu0
  %v397 = vadd.f32 %v59, %v396
  %v398 = vpop.f32.mrf.mxu0
  %v399 = vadd.f32 %v59, %v398
  %400 = vdwg.mxu0
  %401 = vmatpush.bf16.msra.mxu0 0
  %402 = vmatpush.bf16.msra.mxu0 0
  %403 = vmatpush.bf16.msra.mxu0 0
  %404 = vmatpush.bf16.msra.mxu0 0
  %405 = vmatpush.bf16.msra.mxu0 %v202
  %406 = vmatpush.bf16.msra.mxu0 %v196
  %407 = vmatpush.bf16.msra.mxu0 %v190
  %408 = vmatpush.bf16.msra.mxu0 %v184
  %409 = vmatmul.bf16.gmra.mxu0 %v231
  %v410 = vpop.f32.mrf.mxu0
  %v411 = vadd.f32 %v60, %v410
  %v412 = vpop.f32.mrf.mxu0
  %v413 = vadd.f32 %v60, %v412
  %414 = vmatmul.bf16.gmra.mxu0 %v234
  %v415 = vpop.f32.mrf.mxu0
  %v416 = vadd.f32 %v60, %v415
  %v417 = vpop.f32.mrf.mxu0
  %v418 = vadd.f32 %v60, %v417
  %419 = vmatmul.bf16.gmra.mxu0 %v237
  %v420 = vpop.f32.mrf.mxu0
  %v421 = vadd.f32 %v60, %v420
  %v422 = vpop.f32.mrf.mxu0
  %v423 = vadd.f32 %v60, %v422
  %424 = vmatmul.bf16.gmra.mxu0 %v240
  %v425 = vpop.f32.mrf.mxu0
  %v426 = vadd.f32 %v60, %v425
  %v427 = vpop.f32.mrf.mxu0
  %v428 = vadd.f32 %v60, %v427
  %429 = vmatmul.bf16.gmra.mxu0 %v243
  %v430 = vpop.f32.mrf.mxu0
  %v431 = vadd.f32 %v60, %v430
  %v432 = vpop.f32.mrf.mxu0
  %v433 = vadd.f32 %v60, %v432
  %434 = vmatmul.bf16.gmra.mxu0 %v246
  %v435 = vpop.f32.mrf.mxu0
  %v436 = vadd.f32 %v60, %v435
  %v437 = vpop.f32.mrf.mxu0
  %v438 = vadd.f32 %v60, %v437
  %439 = vmatmul.bf16.gmra.mxu0 %v249
  %v440 = vpop.f32.mrf.mxu0
  %v441 = vadd.f32 %v60, %v440
  %v442 = vpop.f32.mrf.mxu0
  %v443 = vadd.f32 %v60, %v442
  %444 = vmatmul.bf16.gmra.mxu0 %v252
  %v445 = vpop.f32.mrf.mxu0
  %v446 = vadd.f32 %v60, %v445
  %v447 = vpop.f32.mrf.mxu0
  %v448 = vadd.f32 %v60, %v447
  %449 = vdwg.mxu0
  %450 = vmatpush.bf16.msra.mxu0 0
  %451 = vmatpush.bf16.msra.mxu0 0
  %452 = vmatpush.bf16.msra.mxu0 0
  %453 = vmatpush.bf16.msra.mxu0 0
  %454 = vmatpush.bf16.msra.mxu0 %v203
  %455 = vmatpush.bf16.msra.mxu0 %v197
  %456 = vmatpush.bf16.msra.mxu0 %v191
  %457 = vmatpush.bf16.msra.mxu0 %v185
  %458 = vmatmul.bf16.gmra.mxu0 %v231
  %v459 = vpop.f32.mrf.mxu0
  %v460 = vadd.f32 %v61, %v459
  %v461 = vpop.f32.mrf.mxu0
  %v462 = vadd.f32 %v61, %v461
  %463 = vmatmul.bf16.gmra.mxu0 %v234
  %v464 = vpop.f32.mrf.mxu0
  %v465 = vadd.f32 %v61, %v464
  %v466 = vpop.f32.mrf.mxu0
  %v467 = vadd.f32 %v61, %v466
  %468 = vmatmul.bf16.gmra.mxu0 %v237
  %v469 = vpop.f32.mrf.mxu0
  %v470 = vadd.f32 %v61, %v469
  %v471 = vpop.f32.mrf.mxu0
  %v472 = vadd.f32 %v61, %v471
  %473 = vmatmul.bf16.gmra.mxu0 %v240
  %v474 = vpop.f32.mrf.mxu0
  %v475 = vadd.f32 %v61, %v474
  %v476 = vpop.f32.mrf.mxu0
  %v477 = vadd.f32 %v61, %v476
  %478 = vmatmul.bf16.gmra.mxu0 %v243
  %v479 = vpop.f32.mrf.mxu0
  %v480 = vadd.f32 %v61, %v479
  %v481 = vpop.f32.mrf.mxu0
  %v482 = vadd.f32 %v61, %v481
  %483 = vmatmul.bf16.gmra.mxu0 %v246
  %v484 = vpop.f32.mrf.mxu0
  %v485 = vadd.f32 %v61, %v484
  %v486 = vpop.f32.mrf.mxu0
  %v487 = vadd.f32 %v61, %v486
  %488 = vmatmul.bf16.gmra.mxu0 %v249
  %v489 = vpop.f32.mrf.mxu0
  %v490 = vadd.f32 %v61, %v489
  %v491 = vpop.f32.mrf.mxu0
  %v492 = vadd.f32 %v61, %v491
  %493 = vmatmul.bf16.gmra.mxu0 %v252
  %v494 = vpop.f32.mrf.mxu0
  %v495 = vadd.f32 %v61, %v494
  %v496 = vpop.f32.mrf.mxu0
  %v497 = vadd.f32 %v61, %v496
  %498 = vdwg.mxu0
  %499 = vmatpush.bf16.msra.mxu0 0
  %500 = vmatpush.bf16.msra.mxu0 0
  %501 = vmatpush.bf16.msra.mxu0 0
  %502 = vmatpush.bf16.msra.mxu0 0
  %503 = vmatpush.bf16.msra.mxu0 %v204
  %504 = vmatpush.bf16.msra.mxu0 %v198
  %505 = vmatpush.bf16.msra.mxu0 %v192
  %506 = vmatpush.bf16.msra.mxu0 %v186
  %507 = vmatmul.bf16.gmra.mxu0 %v231
  %v508 = vpop.f32.mrf.mxu0
  %v509 = vadd.f32 %v62, %v508
  %v510 = vpop.f32.mrf.mxu0
  %v511 = vadd.f32 %v62, %v510
  %512 = vmatmul.bf16.gmra.mxu0 %v234
  %v513 = vpop.f32.mrf.mxu0
  %v514 = vadd.f32 %v62, %v513
  %v515 = vpop.f32.mrf.mxu0
  %v516 = vadd.f32 %v62, %v515
  %517 = vmatmul.bf16.gmra.mxu0 %v237
  %v518 = vpop.f32.mrf.mxu0
  %v519 = vadd.f32 %v62, %v518
  %v520 = vpop.f32.mrf.mxu0
  %v521 = vadd.f32 %v62, %v520
  %522 = vmatmul.bf16.gmra.mxu0 %v240
  %v523 = vpop.f32.mrf.mxu0
  %v524 = vadd.f32 %v62, %v523
  %v525 = vpop.f32.mrf.mxu0
  %v526 = vadd.f32 %v62, %v525
  %527 = vmatmul.bf16.gmra.mxu0 %v243
  %v528 = vpop.f32.mrf.mxu0
  %v529 = vadd.f32 %v62, %v528
  %v530 = vpop.f32.mrf.mxu0
  %v531 = vadd.f32 %v62, %v530
  %532 = vmatmul.bf16.gmra.mxu0 %v246
  %v533 = vpop.f32.mrf.mxu0
  %v534 = vadd.f32 %v62, %v533
  %v535 = vpop.f32.mrf.mxu0
  %v536 = vadd.f32 %v62, %v535
  %537 = vmatmul.bf16.gmra.mxu0 %v249
  %v538 = vpop.f32.mrf.mxu0
  %v539 = vadd.f32 %v62, %v538
  %v540 = vpop.f32.mrf.mxu0
  %v541 = vadd.f32 %v62, %v540
  %542 = vmatmul.bf16.gmra.mxu0 %v252
  %v543 = vpop.f32.mrf.mxu0
  %v544 = vadd.f32 %v62, %v543
  %v545 = vpop.f32.mrf.mxu0
  %v546 = vadd.f32 %v62, %v545
  %547 = vdwg.mxu0
  %v548 = vpack.c.bf16 %v313, %v264
  %v549 = vpack.c.bf16 %v411, %v362
  %v550 = vpack.c.bf16 %v509, %v460
  %v551 = vpack.c.bf16 %v315, %v266
  %v552 = vpack.c.bf16 %v413, %v364
  %v553 = vpack.c.bf16 %v511, %v462
  %v554 = vpack.c.bf16 %v318, %v269
  %v555 = vpack.c.bf16 %v416, %v367
  %v556 = vpack.c.bf16 %v514, %v465
  %v557 = vpack.c.bf16 %v320, %v271
  %v558 = vpack.c.bf16 %v418, %v369
  %v559 = vpack.c.bf16 %v516, %v467
  %v560 = vpack.c.bf16 %v323, %v274
  %v561 = vpack.c.bf16 %v421, %v372
  %v562 = vpack.c.bf16 %v519, %v470
  %v563 = vpack.c.bf16 %v325, %v276
  %v564 = vpack.c.bf16 %v423, %v374
  %v565 = vpack.c.bf16 %v521, %v472
  %v566 = vpack.c.bf16 %v328, %v279
  %v567 = vpack.c.bf16 %v426, %v377
  %v568 = vpack.c.bf16 %v524, %v475
  %v569 = vpack.c.bf16 %v330, %v281
  %v570 = vpack.c.bf16 %v428, %v379
  %v571 = vpack.c.bf16 %v526, %v477
  %v572 = vpack.c.bf16 %v333, %v284
  %v573 = vpack.c.bf16 %v431, %v382
  %v574 = vpack.c.bf16 %v529, %v480
  %v575 = vpack.c.bf16 %v335, %v286
  %v576 = vpack.c.bf16 %v433, %v384
  %v577 = vpack.c.bf16 %v531, %v482
  %v578 = vpack.c.bf16 %v338, %v289
  %v579 = vpack.c.bf16 %v436, %v387
  %v580 = vpack.c.bf16 %v534, %v485
  %v581 = vpack.c.bf16 %v340, %v291
  %v582 = vpack.c.bf16 %v438, %v389
  %v583 = vpack.c.bf16 %v536, %v487
  %v584 = vpack.c.bf16 %v343, %v294
  %v585 = vpack.c.bf16 %v441, %v392
  %v586 = vpack.c.bf16 %v539, %v490
  %v587 = vpack.c.bf16 %v345, %v296
  %v588 = vpack.c.bf16 %v443, %v394
  %v589 = vpack.c.bf16 %v541, %v492
  %v590 = vpack.c.bf16 %v348, %v299
  %v591 = vpack.c.bf16 %v446, %v397
  %v592 = vpack.c.bf16 %v544, %v495
  %v593 = vpack.c.bf16 %v350, %v301
  %v594 = vpack.c.bf16 %v448, %v399
  %v595 = vpack.c.bf16 %v546, %v497
  %596 = vst [vmem:[%s3] sm:$0xff] %v548
  %597 = vst [vmem:[%s3 + $0x8] sm:$0xff] %v549
  %598 = vst [vmem:[%s3 + $0x10] sm:$0xff] %v550
  %599 = vst [vmem:[%s3 + $0x18] sm:$0xff] %v551
  %600 = vst [vmem:[%s3 + $0x20] sm:$0xff] %v552
  %601 = vst [vmem:[%s3 + $0x28] sm:$0xff] %v553
  %602 = vst [vmem:[%s3 + $0x30] sm:$0xff] %v554
  %603 = vst [vmem:[%s3 + $0x38] sm:$0xff] %v555
  %604 = vst [vmem:[%s3 + $0x40] sm:$0xff] %v556
  %605 = vst [vmem:[%s3 + $0x48] sm:$0xff] %v557
  %606 = vst [vmem:[%s3 + $0x50] sm:$0xff] %v558
  %607 = vst [vmem:[%s3 + $0x58] sm:$0xff] %v559
  %608 = vst [vmem:[%s3 + $0x60] sm:$0xff] %v560
  %609 = vst [vmem:[%s3 + $0x68] sm:$0xff] %v561
  %610 = vst [vmem:[%s3 + $0x70] sm:$0xff] %v562
  %611 = vst [vmem:[%s3 + $0x78] sm:$0xff] %v563
  %612 = vst [vmem:[%s3 + $0x80] sm:$0xff] %v564
  %613 = vst [vmem:[%s3 + $0x88] sm:$0xff] %v565
  %614 = vst [vmem:[%s3 + $0x90] sm:$0xff] %v566
  %615 = vst [vmem:[%s3 + $0x98] sm:$0xff] %v567
  %616 = vst [vmem:[%s3 + $0xa0] sm:$0xff] %v568
  %617 = vst [vmem:[%s3 + $0xa8] sm:$0xff] %v569
  %618 = vst [vmem:[%s3 + $0xb0] sm:$0xff] %v570
  %619 = vst [vmem:[%s3 + $0xb8] sm:$0xff] %v571
  %620 = vst [vmem:[%s3 + $0xc0] sm:$0xff] %v572
  %621 = vst [vmem:[%s3 + $0xc8] sm:$0xff] %v573
  %622 = vst [vmem:[%s3 + $0xd0] sm:$0xff] %v574
  %623 = vst [vmem:[%s3 + $0xd8] sm:$0xff] %v575
  %624 = vst [vmem:[%s3 + $0xe0] sm:$0xff] %v576
  %625 = vst [vmem:[%s3 + $0xe8] sm:$0xff] %v577
  %626 = vst [vmem:[%s3 + $0xf0] sm:$0xff] %v578
  %627 = vst [vmem:[%s3 + $0xf8] sm:$0xff] %v579
  %628 = vst [vmem:[%s3 + $0x100] sm:$0xff] %v580
  %629 = vst [vmem:[%s3 + $0x108] sm:$0xff] %v581
  %630 = vst [vmem:[%s3 + $0x110] sm:$0xff] %v582
  %631 = vst [vmem:[%s3 + $0x118] sm:$0xff] %v583
  %632 = vst [vmem:[%s3 + $0x120] sm:$0xff] %v584
  %633 = vst [vmem:[%s3 + $0x128] sm:$0xff] %v585
  %634 = vst [vmem:[%s3 + $0x130] sm:$0xff] %v586
  %635 = vst [vmem:[%s3 + $0x138] sm:$0xff] %v587
  %636 = vst [vmem:[%s3 + $0x140] sm:$0xff] %v588
  %637 = vst [vmem:[%s3 + $0x148] sm:$0xff] %v589
  %638 = vst [vmem:[%s3 + $0x150] sm:$0xff] %v590
  %639 = vst [vmem:[%s3 + $0x158] sm:$0xff] %v591
  %640 = vst [vmem:[%s3 + $0x160] sm:$0xff] %v592
  %641 = vst [vmem:[%s3 + $0x168] sm:$0xff] %v593
  %642 = vst [vmem:[%s3 + $0x170] sm:$0xff] %v594
  %643 = vst [vmem:[%s3 + $0x178] sm:$0xff] %v595
  // Predicated region
  $region14: #{sentence_vae_forward.4} parent=0 // pred_check
    _
  $region15: #{sentence_vae_forward.4} parent=0 // pred_check_branch
    %645 = sbr.rel (0) target = $region17
  $region16: #{sentence_vae_forward.4} parent=0 // pred_region
    _
  $region17: #{sentence_vae_forward.4} parent=0 // pred_fallthru
    _
  // Predicated region
  $region18: #{sentence_vae_forward.4} parent=0 // pred_check
    _
  $region19: #{sentence_vae_forward.4} parent=0 // pred_check_branch
    %647 = sbr.rel (0) target = $region21
  $region20: #{sentence_vae_forward.4} parent=0 // pred_region
    _
  $region21: #{sentence_vae_forward.4} parent=0 // pred_fallthru
    _

// kernel: sentence_vae_forward.5
$region0: #{sentence_vae_forward.5}
  #allocation0 [shape = 'u32[]', space=smem, size = 0x4, offset = 0x4, fixed_abs, tag = 'smem constant byte address 0x4 - core index']
  #allocation1 [shape = 'u32[72,128]{1,0:T(1,128)}', space=vmem, size = 0x9000, scoped, tag = 'internal scratch']
  #allocation2 [shape = 'f32[8,128]{1,0:T(8,128)}', space=vmem, size = 0x1000, scoped, tag = 'scratch operand']
  %s0 = inlined_call_operand.vmem [shape: bf16[16,8,768], index: 0, kind: input, shape index: {}]
  %s1 = inlined_call_operand.vmem [shape: s32[8,1], index: 1, kind: input, shape index: {}]
  %s2 = inlined_call_operand.vmem [shape: bf16[128,384], index: 2, kind: input, shape index: {}]
  %s3 = inlined_call_operand.vmem [shape: f32[1,128], index: 3, kind: input, shape index: {}]
  %s4 = inlined_call_operand.vmem [shape: f32[128,32], index: 4, kind: input, shape index: {}]
  %s5 = inlined_call_operand.vmem [shape: f32[1,32], index: 5, kind: input, shape index: {}]
  %s6 = inlined_call_operand.vmem [shape: f32[8,16], index: 6, kind: input, shape index: {}]
  %s7 = inlined_call_operand.vmem [shape: f32[16,128], index: 7, kind: input, shape index: {}]
  %s8 = inlined_call_operand.vmem [shape: f32[1,128], index: 8, kind: input, shape index: {}]
  %s9 = inlined_call_operand.vmem [shape: f32[8,48], index: 9, kind: output, shape index: {0}]
  %s10 = inlined_call_operand.vmem [shape: f32[8,128], index: 10, kind: output, shape index: {1}]
  %11 = xla_tuple %s9, %s10
  %s12 = sld [smem:[#allocation0]]
  $region111: #{sentence_vae_forward.5} parent=0
    _
  %s14 = ssub.s32 1, %s12
  %s15 = scalar_select 0, %s14, %s12
  $region1: #{sentence_vae_forward.5} parent=0
    #allocation3 [shape = 'u8[98304]{0}', space=vmem, size = 0x18000, scoped, tag = 'input window, operand 0']
    loop: start=0, step=1, limit=4
    $region2: #{sentence_vae_forward.5} parent=1 // loop_pre_header
      _
    $region3: #{sentence_vae_forward.5} parent=1 // loop_header
      %s17 = sphi 0, %s21
      %p18 = scmp.ge.s32.totalorder %s17, 4
      %s27 = sphi 0, %s29
      %s30 = sphi 0, %s27
      %s31 = sphi 0, %s30
      %s47 = sphi 0, %s31
      %s51 = sphi 0, %s51
      %s53 = sphi 0, %s51
      %s54 = sphi 0, %s53
      %s68 = sphi 0, %s54
      %s72 = sphi 0, %s72
      %s74 = sphi 0, %s72
      %s75 = sphi 0, %s74
      %s89 = sphi 0, %s75
      %s93 = sphi 0, %s93
      %s95 = sphi 0, %s93
      %s96 = sphi 0, %s95
      %s110 = sphi 0, %s96
      %s114 = sphi 0, %s114
      %s116 = sphi 0, %s114
      %s117 = sphi 0, %s116
      %s131 = sphi 0, %s117
      %s135 = sphi 0, %s135
      %s137 = sphi 0, %s135
      %s138 = sphi 0, %s137
      %s152 = sphi 0, %s138
      %s156 = sphi 0, %s156
      %s158 = sphi 0, %s156
      %s159 = sphi 0, %s158
      %s173 = sphi 0, %s159
      %s177 = sphi 0, %s177
      %s179 = sphi 0, %s177
      %s180 = sphi 0, %s179
      %s194 = sphi 0, %s180
      %s198 = sphi 0, %s198
      %s200 = sphi 0, %s198
      %s201 = sphi 0, %s200
      %s215 = sphi 0, %s201
      %s219 = sphi 0, %s219
      %s221 = sphi 0, %s219
      %s222 = sphi 0, %s221
      %s236 = sphi 0, %s222
      %s240 = sphi 0, %s240
      %s242 = sphi 0, %s240
      %s243 = sphi 0, %s242
      %s257 = sphi 0, %s243
    $region4: #{sentence_vae_forward.5} parent=1 // loop_header_branch
      %20 = sbr.rel (%p18) target = $region8
    $region5: #{sentence_vae_forward.5} parent=1 // loop_body
      %s22 = ssub.s32 %s17, 1
      %s23 = ssub.s32 %s17, 2
      %s24 = sadd.s32 %s17, 1
      %s25 = ssub.s32 %s17, %s24
      %p26 = scmp.eq.s32.totalorder %s25, 0
      %s28 = sadd.s32 %s27, 1
      %s29 = scalar_select %p26, %s27, %s28
      %p32 = pneg %p26
      %p33 = scmp.eq.s32.totalorder %s17, 1
      %p34 = por %p32, %p33
      %p35 = scmp.ne.s32.totalorder %s27, %s30
      %p36 = scmp.eq.s32.totalorder %s17, 0
      %p37 = por %p35, %p36
      %p38 = scmp.ne.s32.totalorder %s27, %s30
      %p39 = scmp.eq.s32.totalorder %s22, 1
      %p40 = por %p38, %p39
      %p41 = scmp.ne.s32.totalorder %s30, %s31
      %p42 = scmp.eq.s32.totalorder %s22, 0
      %p43 = por %p41, %p42
      %p44 = scmp.ne.s32.totalorder %s30, %s31
      %p45 = scmp.eq.s32.totalorder %s23, 1
      %p46 = por %p44, %p45
      %p48 = scmp.ne.s32.totalorder %s31, %s47
      %p49 = scmp.eq.s32.totalorder %s23, 0
      %p50 = por %p48, %p49
      %s52 = sadd.s32 %s51, 1
      %p55 = scmp.eq.s32.totalorder %s17, 1
      %p56 = scmp.ne.s32.totalorder %s51, %s53
      %p57 = scmp.eq.s32.totalorder %s17, 0
      %p58 = por %p56, %p57
      %p59 = scmp.ne.s32.totalorder %s51, %s53
      %p60 = scmp.eq.s32.totalorder %s22, 1
      %p61 = por %p59, %p60
      %p62 = scmp.ne.s32.totalorder %s53, %s54
      %p63 = scmp.eq.s32.totalorder %s22, 0
      %p64 = por %p62, %p63
      %p65 = scmp.ne.s32.totalorder %s53, %s54
      %p66 = scmp.eq.s32.totalorder %s23, 1
      %p67 = por %p65, %p66
      %p69 = scmp.ne.s32.totalorder %s54, %s68
      %p70 = scmp.eq.s32.totalorder %s23, 0
      %p71 = por %p69, %p70
      %s73 = sadd.s32 %s72, 1
      %p76 = scmp.eq.s32.totalorder %s17, 1
      %p77 = scmp.ne.s32.totalorder %s72, %s74
      %p78 = scmp.eq.s32.totalorder %s17, 0
      %p79 = por %p77, %p78
      %p80 = scmp.ne.s32.totalorder %s72, %s74
      %p81 = scmp.eq.s32.totalorder %s22, 1
      %p82 = por %p80, %p81
      %p83 = scmp.ne.s32.totalorder %s74, %s75
      %p84 = scmp.eq.s32.totalorder %s22, 0
      %p85 = por %p83, %p84
      %p86 = scmp.ne.s32.totalorder %s74, %s75
      %p87 = scmp.eq.s32.totalorder %s23, 1
      %p88 = por %p86, %p87
      %p90 = scmp.ne.s32.totalorder %s75, %s89
      %p91 = scmp.eq.s32.totalorder %s23, 0
      %p92 = por %p90, %p91
      %s94 = sadd.s32 %s93, 1
      %p97 = scmp.eq.s32.totalorder %s17, 1
      %p98 = scmp.ne.s32.totalorder %s93, %s95
      %p99 = scmp.eq.s32.totalorder %s17, 0
      %p100 = por %p98, %p99
      %p101 = scmp.ne.s32.totalorder %s93, %s95
      %p102 = scmp.eq.s32.totalorder %s22, 1
      %p103 = por %p101, %p102
      %p104 = scmp.ne.s32.totalorder %s95, %s96
      %p105 = scmp.eq.s32.totalorder %s22, 0
      %p106 = por %p104, %p105
      %p107 = scmp.ne.s32.totalorder %s95, %s96
      %p108 = scmp.eq.s32.totalorder %s23, 1
      %p109 = por %p107, %p108
      %p111 = scmp.ne.s32.totalorder %s96, %s110
      %p112 = scmp.eq.s32.totalorder %s23, 0
      %p113 = por %p111, %p112
      %s115 = sadd.s32 %s114, 1
      %p118 = scmp.eq.s32.totalorder %s17, 1
      %p119 = scmp.ne.s32.totalorder %s114, %s116
      %p120 = scmp.eq.s32.totalorder %s17, 0
      %p121 = por %p119, %p120
      %p122 = scmp.ne.s32.totalorder %s114, %s116
      %p123 = scmp.eq.s32.totalorder %s22, 1
      %p124 = por %p122, %p123
      %p125 = scmp.ne.s32.totalorder %s116, %s117
      %p126 = scmp.eq.s32.totalorder %s22, 0
      %p127 = por %p125, %p126
      %p128 = scmp.ne.s32.totalorder %s116, %s117
      %p129 = scmp.eq.s32.totalorder %s23, 1
      %p130 = por %p128, %p129
      %p132 = scmp.ne.s32.totalorder %s117, %s131
      %p133 = scmp.eq.s32.totalorder %s23, 0
      %p134 = por %p132, %p133
      %s136 = sadd.s32 %s135, 1
      %p139 = scmp.eq.s32.totalorder %s17, 1
      %p140 = scmp.ne.s32.totalorder %s135, %s137
      %p141 = scmp.eq.s32.totalorder %s17, 0
      %p142 = por %p140, %p141
      %p143 = scmp.ne.s32.totalorder %s135, %s137
      %p144 = scmp.eq.s32.totalorder %s22, 1
      %p145 = por %p143, %p144
      %p146 = scmp.ne.s32.totalorder %s137, %s138
      %p147 = scmp.eq.s32.totalorder %s22, 0
      %p148 = por %p146, %p147
      %p149 = scmp.ne.s32.totalorder %s137, %s138
      %p150 = scmp.eq.s32.totalorder %s23, 1
      %p151 = por %p149, %p150
      %p153 = scmp.ne.s32.totalorder %s138, %s152
      %p154 = scmp.eq.s32.totalorder %s23, 0
      %p155 = por %p153, %p154
      %s157 = sadd.s32 %s156, 1
      %p160 = scmp.eq.s32.totalorder %s17, 1
      %p161 = scmp.ne.s32.totalorder %s156, %s158
      %p162 = scmp.eq.s32.totalorder %s17, 0
      %p163 = por %p161, %p162
      %p164 = scmp.ne.s32.totalorder %s156, %s158
      %p165 = scmp.eq.s32.totalorder %s22, 1
      %p166 = por %p164, %p165
      %p167 = scmp.ne.s32.totalorder %s158, %s159
      %p168 = scmp.eq.s32.totalorder %s22, 0
      %p169 = por %p167, %p168
      %p170 = scmp.ne.s32.totalorder %s158, %s159
      %p171 = scmp.eq.s32.totalorder %s23, 1
      %p172 = por %p170, %p171
      %p174 = scmp.ne.s32.totalorder %s159, %s173
      %p175 = scmp.eq.s32.totalorder %s23, 0
      %p176 = por %p174, %p175
      %s178 = sadd.s32 %s177, 1
      %p181 = scmp.eq.s32.totalorder %s17, 1
      %p182 = scmp.ne.s32.totalorder %s177, %s179
      %p183 = scmp.eq.s32.totalorder %s17, 0
      %p184 = por %p182, %p183
      %p185 = scmp.ne.s32.totalorder %s177, %s179
      %p186 = scmp.eq.s32.totalorder %s22, 1
      %p187 = por %p185, %p186
      %p188 = scmp.ne.s32.totalorder %s179, %s180
      %p189 = scmp.eq.s32.totalorder %s22, 0
      %p190 = por %p188, %p189
      %p191 = scmp.ne.s32.totalorder %s179, %s180
      %p192 = scmp.eq.s32.totalorder %s23, 1
      %p193 = por %p191, %p192
      %p195 = scmp.ne.s32.totalorder %s180, %s194
      %p196 = scmp.eq.s32.totalorder %s23, 0
      %p197 = por %p195, %p196
      %s199 = sadd.s32 %s198, 1
      %p202 = scmp.eq.s32.totalorder %s17, 1
      %p203 = scmp.ne.s32.totalorder %s198, %s200
      %p204 = scmp.eq.s32.totalorder %s17, 0
      %p205 = por %p203, %p204
      %p206 = scmp.ne.s32.totalorder %s198, %s200
      %p207 = scmp.eq.s32.totalorder %s22, 1
      %p208 = por %p206, %p207
      %p209 = scmp.ne.s32.totalorder %s200, %s201
      %p210 = scmp.eq.s32.totalorder %s22, 0
      %p211 = por %p209, %p210
      %p212 = scmp.ne.s32.totalorder %s200, %s201
      %p213 = scmp.eq.s32.totalorder %s23, 1
      %p214 = por %p212, %p213
      %p216 = scmp.ne.s32.totalorder %s201, %s215
      %p217 = scmp.eq.s32.totalorder %s23, 0
      %p218 = por %p216, %p217
      %s220 = sadd.s32 %s219, 1
      %p223 = scmp.eq.s32.totalorder %s17, 1
      %p224 = scmp.ne.s32.totalorder %s219, %s221
      %p225 = scmp.eq.s32.totalorder %s17, 0
      %p226 = por %p224, %p225
      %p227 = scmp.ne.s32.totalorder %s219, %s221
      %p228 = scmp.eq.s32.totalorder %s22, 1
      %p229 = por %p227, %p228
      %p230 = scmp.ne.s32.totalorder %s221, %s222
      %p231 = scmp.eq.s32.totalorder %s22, 0
      %p232 = por %p230, %p231
      %p233 = scmp.ne.s32.totalorder %s221, %s222
      %p234 = scmp.eq.s32.totalorder %s23, 1
      %p235 = por %p233, %p234
      %p237 = scmp.ne.s32.totalorder %s222, %s236
      %p238 = scmp.eq.s32.totalorder %s23, 0
      %p239 = por %p237, %p238
      %s241 = sadd.s32 %s240, 1
      %p244 = scmp.eq.s32.totalorder %s17, 1
      %p245 = scmp.ne.s32.totalorder %s240, %s242
      %p246 = scmp.eq.s32.totalorder %s17, 0
      %p247 = por %p245, %p246
      %p248 = scmp.ne.s32.totalorder %s240, %s242
      %p249 = scmp.eq.s32.totalorder %s22, 1
      %p250 = por %p248, %p249
      %p251 = scmp.ne.s32.totalorder %s242, %s243
      %p252 = scmp.eq.s32.totalorder %s22, 0
      %p253 = por %p251, %p252
      %p254 = scmp.ne.s32.totalorder %s242, %s243
      %p255 = scmp.eq.s32.totalorder %s23, 1
      %p256 = por %p254, %p255
      %p258 = scmp.ne.s32.totalorder %s243, %s257
      %p259 = scmp.eq.s32.totalorder %s23, 0
      %p260 = por %p258, %p259
      %p261 = scmp.le.s32.totalorder 1, %s17
      %p262 = scmp.lt.s32.totalorder %s17, 3
      %p263 = pnand %p261, %p262
      %p264 = pneg %p263
      // Predicated region
      $region9: #{sentence_vae_forward.5} parent=5 // pred_check
        _
      $region10: #{sentence_vae_forward.5} parent=5 // pred_check_branch
        %266 = sbr.rel (%p263) target = $region12
      $region11: #{sentence_vae_forward.5} parent=5 // pred_region
        %s267 = ssub.s32 %s17, 1
        // Predicated region
        $region13: #{sentence_vae_forward.5} parent=11 // pred_check
          %p268 = pneg %p64
        $region14: #{sentence_vae_forward.5} parent=11 // pred_check_branch
          %270 = sbr.rel (%p268) target = $region16
        $region15: #{sentence_vae_forward.5} parent=11 // pred_region
          _
        $region16: #{sentence_vae_forward.5} parent=11 // pred_fallthru
          _
        // Predicated region
        $region17: #{sentence_vae_forward.5} parent=11 // pred_check
          %p271 = pneg %p85
        $region18: #{sentence_vae_forward.5} parent=11 // pred_check_branch
          %273 = sbr.rel (%p271) target = $region20
        $region19: #{sentence_vae_forward.5} parent=11 // pred_region
          _
        $region20: #{sentence_vae_forward.5} parent=11 // pred_fallthru
          _
        // Predicated region
        $region21: #{sentence_vae_forward.5} parent=11 // pred_check
          %p274 = pneg %p106
        $region22: #{sentence_vae_forward.5} parent=11 // pred_check_branch
          %276 = sbr.rel (%p274) target = $region24
        $region23: #{sentence_vae_forward.5} parent=11 // pred_region
          _
        $region24: #{sentence_vae_forward.5} parent=11 // pred_fallthru
          _
        // Predicated region
        $region25: #{sentence_vae_forward.5} parent=11 // pred_check
          %p277 = pneg %p127
        $region26: #{sentence_vae_forward.5} parent=11 // pred_check_branch
          %279 = sbr.rel (%p277) target = $region28
        $region27: #{sentence_vae_forward.5} parent=11 // pred_region
          _
        $region28: #{sentence_vae_forward.5} parent=11 // pred_fallthru
          _
        // Predicated region
        $region29: #{sentence_vae_forward.5} parent=11 // pred_check
          %p280 = pneg %p148
        $region30: #{sentence_vae_forward.5} parent=11 // pred_check_branch
          %282 = sbr.rel (%p280) target = $region32
        $region31: #{sentence_vae_forward.5} parent=11 // pred_region
          _
        $region32: #{sentence_vae_forward.5} parent=11 // pred_fallthru
          _
        // Predicated region
        $region33: #{sentence_vae_forward.5} parent=11 // pred_check
          %p283 = pneg %p169
        $region34: #{sentence_vae_forward.5} parent=11 // pred_check_branch
          %285 = sbr.rel (%p283) target = $region36
        $region35: #{sentence_vae_forward.5} parent=11 // pred_region
          _
        $region36: #{sentence_vae_forward.5} parent=11 // pred_fallthru
          _
        // Predicated region
        $region37: #{sentence_vae_forward.5} parent=11 // pred_check
          %p286 = pneg %p190
        $region38: #{sentence_vae_forward.5} parent=11 // pred_check_branch
          %288 = sbr.rel (%p286) target = $region40
        $region39: #{sentence_vae_forward.5} parent=11 // pred_region
          _
        $region40: #{sentence_vae_forward.5} parent=11 // pred_fallthru
          _
        // Predicated region
        $region41: #{sentence_vae_forward.5} parent=11 // pred_check
          %p289 = pneg %p211
        $region42: #{sentence_vae_forward.5} parent=11 // pred_check_branch
          %291 = sbr.rel (%p289) target = $region44
        $region43: #{sentence_vae_forward.5} parent=11 // pred_region
          _
        $region44: #{sentence_vae_forward.5} parent=11 // pred_fallthru
          _
      $region12: #{sentence_vae_forward.5} parent=5 // pred_fallthru
        _
      %p292 = scmp.lt.s32.totalorder %s17, 2
      // Predicated region
      $region45: #{sentence_vae_forward.5} parent=5 // pred_check
        %p293 = pneg %p292
      $region46: #{sentence_vae_forward.5} parent=5 // pred_check_branch
        %295 = sbr.rel (%p293) target = $region48
      $region47: #{sentence_vae_forward.5} parent=5 // pred_region
        // Predicated region
        $region49: #{sentence_vae_forward.5} parent=47 // pred_check
          %p296 = pneg %p37
        $region50: #{sentence_vae_forward.5} parent=47 // pred_check_branch
          %298 = sbr.rel (%p296) target = $region52
        $region51: #{sentence_vae_forward.5} parent=47 // pred_region
          %s299 = sand.u32 %s27, 1
          %s300 = sand.u32 %s27, 1
          %s301 = smul.addr %s300, 96
          %s302 = scalar_lea.vmem [#allocation3], %s301
          %s303 = smul.u32 8, %s17
          %s304 = smul.addr %s303, 6
          %s305 = smul.addr %s304, 4
          %s306 = scalar_lea.vmem %s0, %s305
          // Predicated region
          $region53: #{sentence_vae_forward.5} parent=51 // pred_check
            _
          $region54: #{sentence_vae_forward.5} parent=51 // pred_check_branch
            %308 = sbr.rel (0) target = $region56
          $region55: #{sentence_vae_forward.5} parent=51 // pred_region
            // Predicated region
            $region57: #{sentence_vae_forward.5} parent=55 // pred_check
              _
            $region58: #{sentence_vae_forward.5} parent=55 // pred_check_branch
              %310 = sbr.rel (0) target = $region60
            $region59: #{sentence_vae_forward.5} parent=55 // pred_region
              %s311 = scalar_lea.vmem %s306, 8
              %s312 = scalar_lea.vmem %s302, 8 [#allocation3]
              loop: start=0, step=1, limit=1
              $region61: #{sentence_vae_forward.5} parent=59 // loop_pre_header
                _
              $region62: #{sentence_vae_forward.5} parent=59 // loop_header
                %s314 = sphi 0, %s318
                %p315 = scmp.ge.s32.totalorder %s314, 1
                %s319 = sphi %s306, %s306
                %s320 = sphi %s302, %s302
              $region63: #{sentence_vae_forward.5} parent=59 // loop_header_branch
                %317 = sbr.rel (%p315) target = $region67
              $region64: #{sentence_vae_forward.5} parent=59 // loop_body
                %v321 = vld [vmem:[%s319] sm:$0xff]
                %322 = vst [vmem:[%s320] sm:$0xff] %v321
                %v323 = vld [vmem:[%s319 + $0x18] sm:$0xff]
                %324 = vst [vmem:[%s320 + $0xc] sm:$0xff] %v323
                %v325 = vld [vmem:[%s319 + $0x30] sm:$0xff]
                %326 = vst [vmem:[%s320 + $0x18] sm:$0xff] %v325
                %v327 = vld [vmem:[%s319 + $0x48] sm:$0xff]
                %328 = vst [vmem:[%s320 + $0x24] sm:$0xff] %v327
                %v329 = vld [vmem:[%s319 + $0x60] sm:$0xff]
                %330 = vst [vmem:[%s320 + $0x30] sm:$0xff] %v329
                %v331 = vld [vmem:[%s319 + $0x78] sm:$0xff]
                %332 = vst [vmem:[%s320 + $0x3c] sm:$0xff] %v331
                %v333 = vld [vmem:[%s319 + $0x90] sm:$0xff]
                %334 = vst [vmem:[%s320 + $0x48] sm:$0xff] %v333
                %v335 = vld [vmem:[%s319 + $0xa8] sm:$0xff]
                %336 = vst [vmem:[%s320 + $0x54] sm:$0xff] %v335
              $region65: #{sentence_vae_forward.5} parent=59 // loop_footer
                %s318 = sadd.s32 1, %s314
              $region66: #{sentence_vae_forward.5} parent=59 // loop_footer_branch
                %313 = sbr.rel target = $region62
              $region67: #{sentence_vae_forward.5} parent=59 // loop_exit
                _
              %s338 = ssub.s32 16, 1
              loop: start=0, step=1, limit=1
              $region68: #{sentence_vae_forward.5} parent=59 // loop_pre_header
                _
              $region69: #{sentence_vae_forward.5} parent=59 // loop_header
                %s340 = sphi 0, %s344
                %p341 = scmp.ge.s32.totalorder %s340, 1
                %s345 = sphi %s311, %s311
                %s346 = sphi %s312, %s312
              $region70: #{sentence_vae_forward.5} parent=59 // loop_header_branch
                %343 = sbr.rel (%p341) target = $region74
              $region71: #{sentence_vae_forward.5} parent=59 // loop_body
                %v347 = vld [vmem:[%s345] sm:%s338]
                %348 = vst [vmem:[%s346] sm:%s338] %v347
                %v349 = vld [vmem:[%s345 + $0x18] sm:%s338]
                %350 = vst [vmem:[%s346 + $0xc] sm:%s338] %v349
                %v351 = vld [vmem:[%s345 + $0x30] sm:%s338]
                %352 = vst [vmem:[%s346 + $0x18] sm:%s338] %v351
                %v353 = vld [vmem:[%s345 + $0x48] sm:%s338]
                %354 = vst [vmem:[%s346 + $0x24] sm:%s338] %v353
                %v355 = vld [vmem:[%s345 + $0x60] sm:%s338]
                %356 = vst [vmem:[%s346 + $0x30] sm:%s338] %v355
                %v357 = vld [vmem:[%s345 + $0x78] sm:%s338]
                %358 = vst [vmem:[%s346 + $0x3c] sm:%s338] %v357
                %v359 = vld [vmem:[%s345 + $0x90] sm:%s338]
                %360 = vst [vmem:[%s346 + $0x48] sm:%s338] %v359
                %v361 = vld [vmem:[%s345 + $0xa8] sm:%s338]
                %362 = vst [vmem:[%s346 + $0x54] sm:%s338] %v361
              $region72: #{sentence_vae_forward.5} parent=59 // loop_footer
                %s344 = sadd.s32 1, %s340
              $region73: #{sentence_vae_forward.5} parent=59 // loop_footer_branch
                %339 = sbr.rel target = $region69
              $region74: #{sentence_vae_forward.5} parent=59 // loop_exit
                _
            $region60: #{sentence_vae_forward.5} parent=55 // pred_fallthru
              _
          $region56: #{sentence_vae_forward.5} parent=51 // pred_fallthru
            _
          %363 = vnop
        $region52: #{sentence_vae_forward.5} parent=47 // pred_fallthru
          _
      $region48: #{sentence_vae_forward.5} parent=5 // pred_fallthru
        _
      %p364 = scmp.le.s32.totalorder 1, %s17
      %p365 = scmp.lt.s32.totalorder %s17, 3
      %p366 = pnand %p364, %p365
      %p367 = pneg %p366
      // Predicated region
      $region75: #{sentence_vae_forward.5} parent=5 // pred_check
        _
      $region76: #{sentence_vae_forward.5} parent=5 // pred_check_branch
        %369 = sbr.rel (%p366) target = $region78
      $region77: #{sentence_vae_forward.5} parent=5 // pred_region
        %s370 = ssub.s32 %s17, 1
        %s371 = sand.u32 %s30, 1
        %s372 = sand.u32 %s30, 1
        %s373 = smul.addr %s372, 96
        %s374 = scalar_lea.vmem [#allocation3], %s373
        // Predicated region
        $region79: #{sentence_vae_forward.5} parent=77 // pred_check
          %p375 = pneg %p43
        $region80: #{sentence_vae_forward.5} parent=77 // pred_check_branch
          %377 = sbr.rel (%p375) target = $region82
        $region81: #{sentence_vae_forward.5} parent=77 // pred_region
          _
        $region82: #{sentence_vae_forward.5} parent=77 // pred_fallthru
          _
        %s378 = sand.u32 %s30, 1
        %s379 = sand.u32 %s30, 1
        %s380 = smul.addr %s379, 96
        %s381 = scalar_lea.vmem [#allocation3], %s380
        %p382 = pneg %p43
        %p383 = pneg %p40
        %p384 = pneg %p64
        %p385 = pneg %p61
        %p386 = pneg %p85
        %p387 = pneg %p82
        %p388 = pneg %p106
        %p389 = pneg %p103
        %p390 = pneg %p127
        %p391 = pneg %p124
        %p392 = pneg %p148
        %p393 = pneg %p145
        %p394 = pneg %p169
        %p395 = pneg %p166
        %p396 = pneg %p190
        %p397 = pneg %p187
        %p398 = pneg %p211
        %p399 = pneg %p208
        %p400 = pneg %p232
        %p401 = pneg %p229
        %p402 = pneg %p253
        %p403 = pneg %p250
        %s404 = smul.u32 8, %s22
        %p405 = scmp.eq.s32.totalorder %s22, 0
        // Predicated region
        $region83: #{sentence_vae_forward.5} parent=77 // pred_check
          %p406 = pneg %p405
        $region84: #{sentence_vae_forward.5} parent=77 // pred_check_branch
          %408 = sbr.rel (%p406) target = $region86
        $region85: #{sentence_vae_forward.5} parent=77 // pred_region
          %409 = vst [vmem:[#allocation2] sm:$0xff] 0.0
        $region86: #{sentence_vae_forward.5} parent=77 // pred_fallthru
          _
        %v410 = vld [vmem:[%s1] sm:$0xff]
        %v411 = vld [vmem:[%s2] sm:$0xff]
        %v412 = vld [vmem:[%s2 + $0x8] sm:$0xf]
        %v413 = vld [vmem:[%s2 + $0xc] sm:$0xff]
        %v414 = vld [vmem:[%s2 + $0x14] sm:$0xf]
        %v415 = vld [vmem:[%s2 + $0x18] sm:$0xff]
        %v416 = vld [vmem:[%s2 + $0x20] sm:$0xf]
        %v417 = vld [vmem:[%s2 + $0x24] sm:$0xff]
        %v418 = vld [vmem:[%s2 + $0x2c] sm:$0xf]
        %v419 = vld [vmem:[%s2 + $0x30] sm:$0xff]
        %v420 = vld [vmem:[%s2 + $0x38] sm:$0xf]
        %v421 = vld [vmem:[%s2 + $0x3c] sm:$0xff]
        %v422 = vld [vmem:[%s2 + $0x44] sm:$0xf]
        %v423 = vld [vmem:[%s2 + $0x48] sm:$0xff]
        %v424 = vld [vmem:[%s2 + $0x50] sm:$0xf]
        %v425 = vld [vmem:[%s2 + $0x54] sm:$0xff]
        %v426 = vld [vmem:[%s2 + $0x5c] sm:$0xf]
        %v427 = vld [vmem:[%s2 + $0x60] sm:$0xff]
        %v428 = vld [vmem:[%s2 + $0x68] sm:$0xf]
        %v429 = vld [vmem:[%s2 + $0x6c] sm:$0xff]
        %v430 = vld [vmem:[%s2 + $0x74] sm:$0xf]
        %v431 = vld [vmem:[%s2 + $0x78] sm:$0xff]
        %v432 = vld [vmem:[%s2 + $0x80] sm:$0xf]
        %v433 = vld [vmem:[%s2 + $0x84] sm:$0xff]
        %v434 = vld [vmem:[%s2 + $0x8c] sm:$0xf]
        %v435 = vld [vmem:[%s2 + $0x90] sm:$0xff]
        %v436 = vld [vmem:[%s2 + $0x98] sm:$0xf]
        %v437 = vld [vmem:[%s2 + $0x9c] sm:$0xff]
        %v438 = vld [vmem:[%s2 + $0xa4] sm:$0xf]
        %v439 = vld [vmem:[%s2 + $0xa8] sm:$0xff]
        %v440 = vld [vmem:[%s2 + $0xb0] sm:$0xf]
        %v441 = vld [vmem:[%s2 + $0xb4] sm:$0xff]
        %v442 = vld [vmem:[%s2 + $0xbc] sm:$0xf]
        %v443 = vld [vmem:[%s3] sm:$0x1]
        %v445 = vperm.slane %v443, 0
        %s447 = smul.u32 %s22, 8
        %v448 = vld [vmem:[#allocation2] sm:$0xff]
        %v449 = vld [vmem:[%s374] sm:$0xff]
        %v450 = vld [vmem:[%s374 + $0x8] sm:$0xf]
        %v451 = vunpack.c.l.bf16 %v449
        %v452 = vunpack.c.h.bf16 %v449
        %v453 = vunpack.c.l.bf16 %v450
        %v454 = vpack.c.bf16 %v448, %v448
        %v487 = vunpack.c.l.b16 %v411
        %v488 = vunpack.c.h.b16 %v411
        %v489 = vunpack.c.l.b16 %v412
        %v490 = vunpack.c.l.b16 %v413
        %v491 = vunpack.c.h.b16 %v413
        %v492 = vunpack.c.l.b16 %v414
        %v493 = vunpack.c.l.b16 %v415
        %v494 = vunpack.c.h.b16 %v415
        %v495 = vunpack.c.l.b16 %v416
        %v496 = vunpack.c.l.b16 %v417
        %v497 = vunpack.c.h.b16 %v417
        %v498 = vunpack.c.l.b16 %v418
        %v499 = vunpack.c.l.b16 %v419
        %v500 = vunpack.c.h.b16 %v419
        %v501 = vunpack.c.l.b16 %v420
        %v502 = vunpack.c.l.b16 %v421
        %v503 = vunpack.c.h.b16 %v421
        %v504 = vunpack.c.l.b16 %v422
        %v505 = vunpack.c.l.b16 %v423
        %v506 = vunpack.c.h.b16 %v423
        %v507 = vunpack.c.l.b16 %v424
        %v508 = vunpack.c.l.b16 %v425
        %v509 = vunpack.c.h.b16 %v425
        %v510 = vunpack.c.l.b16 %v426
        %v511 = vunpack.c.l.b16 %v427
        %v512 = vunpack.c.h.b16 %v427
        %v513 = vunpack.c.l.b16 %v428
        %v514 = vunpack.c.l.b16 %v429
        %v515 = vunpack.c.h.b16 %v429
        %v516 = vunpack.c.l.b16 %v430
        %v517 = vunpack.c.l.b16 %v431
        %v518 = vunpack.c.h.b16 %v431
        %v519 = vunpack.c.l.b16 %v432
        %v520 = vunpack.c.l.b16 %v433
        %v521 = vunpack.c.h.b16 %v433
        %v522 = vunpack.c.l.b16 %v434
        %v523 = vunpack.c.l.b16 %v435
        %v524 = vunpack.c.h.b16 %v435
        %v525 = vunpack.c.l.b16 %v436
        %v526 = vunpack.c.l.b16 %v437
        %v527 = vunpack.c.h.b16 %v437
        %v528 = vunpack.c.l.b16 %v438
        %v529 = vunpack.c.l.b16 %v439
        %v530 = vunpack.c.h.b16 %v439
        %v531 = vunpack.c.l.b16 %v440
        %v532 = vunpack.c.l.b16 %v441
        %v533 = vunpack.c.h.b16 %v441
        %v534 = vunpack.c.l.b16 %v442
        %v535 = vpack.c.b16 %v490, %v487
        %v536 = vpack.c.b16 %v491, %v488
        %v537 = vpack.c.b16 %v492, %v489
        %v538 = vpack.c.b16 %v496, %v493
        %v539 = vpack.c.b16 %v497, %v494
        %v540 = vpack.c.b16 %v498, %v495
        %v541 = vpack.c.b16 %v502, %v499
        %v542 = vpack.c.b16 %v503, %v500
        %v543 = vpack.c.b16 %v504, %v501
        %v544 = vpack.c.b16 %v508, %v505
        %v545 = vpack.c.b16 %v509, %v506
        %v546 = vpack.c.b16 %v510, %v507
        %v547 = vpack.c.b16 %v514, %v511
        %v548 = vpack.c.b16 %v515, %v512
        %v549 = vpack.c.b16 %v516, %v513
        %v550 = vpack.c.b16 %v520, %v517
        %v551 = vpack.c.b16 %v521, %v518
        %v552 = vpack.c.b16 %v522, %v519
        %v553 = vpack.c.b16 %v526, %v523
        %v554 = vpack.c.b16 %v527, %v524
        %v555 = vpack.c.b16 %v528, %v525
        %v556 = vpack.c.b16 %v532, %v529
        %v557 = vpack.c.b16 %v533, %v530
        %v558 = vpack.c.b16 %v534, %v531
        %583 = vmatpush.bf16.msra.mxu0 %v556
        %584 = vmatpush.bf16.msra.mxu0 %v553
        %585 = vmatpush.bf16.msra.mxu0 %v550
        %586 = vmatpush.bf16.msra.mxu0 %v547
        %587 = vmatpush.bf16.msra.mxu0 %v544
        %588 = vmatpush.bf16.msra.mxu0 %v541
        %589 = vmatpush.bf16.msra.mxu0 %v538
        %590 = vmatpush.bf16.msra.mxu0 %v535
        %591 = vmatmul.bf16.gmra.mxu0 %v454
        %v592 = vpop.f32.mrf.mxu0
        %v593 = vadd.f32 0.0, %v592
        %v594 = vpop.f32.mrf.mxu0
        %595 = vdwg.mxu0
        %596 = vmatpush.bf16.msra.mxu0 %v557
        %597 = vmatpush.bf16.msra.mxu0 %v554
        %598 = vmatpush.bf16.msra.mxu0 %v551
        %599 = vmatpush.bf16.msra.mxu0 %v548
        %600 = vmatpush.bf16.msra.mxu0 %v545
        %601 = vmatpush.bf16.msra.mxu0 %v542
        %602 = vmatpush.bf16.msra.mxu0 %v539
        %603 = vmatpush.bf16.msra.mxu0 %v536
        %604 = vmatmul.bf16.gmra.mxu0 %v454
        %v605 = vpop.f32.mrf.mxu0
        %v606 = vadd.f32 0.0, %v605
        %v607 = vpop.f32.mrf.mxu0
        %608 = vdwg.mxu0
        %609 = vmatpush.bf16.msra.mxu0 %v558
        %610 = vmatpush.bf16.msra.mxu0 %v555
        %611 = vmatpush.bf16.msra.mxu0 %v552
        %612 = vmatpush.bf16.msra.mxu0 %v549
        %613 = vmatpush.bf16.msra.mxu0 %v546
        %614 = vmatpush.bf16.msra.mxu0 %v543
        %615 = vmatpush.bf16.msra.mxu0 %v540
        %616 = vmatpush.bf16.msra.mxu0 %v537
        %617 = vmatmul.bf16.gmra.mxu0 %v454
        %v618 = vpop.f32.mrf.mxu0
        %v619 = vadd.f32 0.0, %v618
        %v620 = vpop.f32.mrf.mxu0
        %621 = vdwg.mxu0
        %v622 = vadd.f32 %v451, %v593
        %v623 = vxor.u32 %v622, 2147483648
        %v624 = vmul.f32 %v623, 1.442695
        %v625 = vpow.pop %v624
        %v626 = vadd.f32 %v625, 1.0
        %v627 = vrcp.pop %v626
        %v628 = vmul.f32 %v626, %v627
        %v629 = vsub.f32 1.0, %v628
        %v630 = vmul.f32 %v627, %v629
        %v631 = vadd.f32 %v627, %v630
        %vm632 = vweird.f32 %v626
        %vm633 = vweird.f32 %v627
        %vm634 = vmor %vm632, %vm633
        %v635 = vsel %vm634, %v627, %v631
        %v636 = vand.u32 2147483647, %v626
        %vm637 = vcmp.eq.f32.partialorder %v636, 8.507059e+37
        %v638 = vand.u32 %v626, 2147483648
        %v639 = vor.u32 1.1754944e-38, %v638
        %v640 = vsel %vm637, %v639, %v635
        %v641 = vmul.f32 1.0, %v640
        %v642 = vadd.f32 %v452, %v606
        %v643 = vxor.u32 %v642, 2147483648
        %v644 = vmul.f32 %v643, 1.442695
        %v645 = vpow.pop %v644
        %v646 = vadd.f32 %v645, 1.0
        %v647 = vrcp.pop %v646
        %v648 = vmul.f32 %v646, %v647
        %v649 = vsub.f32 1.0, %v648
        %v650 = vmul.f32 %v647, %v649
        %v651 = vadd.f32 %v647, %v650
        %vm652 = vweird.f32 %v646
        %vm653 = vweird.f32 %v647
        %vm654 = vmor %vm652, %vm653
        %v655 = vsel %vm654, %v647, %v651
        %v656 = vand.u32 2147483647, %v646
        %vm657 = vcmp.eq.f32.partialorder %v656, 8.507059e+37
        %v658 = vand.u32 %v646, 2147483648
        %v659 = vor.u32 1.1754944e-38, %v658
        %v660 = vsel %vm657, %v659, %v655
        %v661 = vmul.f32 1.0, %v660
        %v662 = vadd.f32 %v619, %v445
        %v663 = vmul.f32 %v641, %v662
        %v664 = vadd.f32 %v453, %v663
        %v665 = vtanh.pop %v664
        %v666 = vsub.f32 1.0, %v661
        %v667 = vmul.f32 %v666, %v665
        %v668 = vmul.f32 %v661, %v448
        %v669 = vadd.f32 %v667, %v668
        %v670 = vstv %s447
        %vm671 = vcmp.gt.s32.totalorder %v410, %v670
        %v672 = vsel %vm671, 1, 0
        %673 = vset.pattern.permute.xlu0 0
        %674 = vperm.xlu0 %673, %v672
        %v675 = vpop.permute.xlu0 %674
        %vm676 = vcmp.eq.s32.totalorder %v675, 1
        %v677 = vsel %vm676, %v669, %v448
        %s678 = scalar_lea.vmem %s374, 12 [#allocation3]
        %v679 = vld [vmem:[%s678] sm:$0xff]
        %v680 = vld [vmem:[%s678 + $0x8] sm:$0xf]
        %v681 = vunpack.c.l.bf16 %v679
        %v682 = vunpack.c.h.bf16 %v679
        %v683 = vunpack.c.l.bf16 %v680
        %v684 = vpack.c.bf16 %v677, %v677
        %685 = vmatpush.bf16.msra.mxu0 %v556
        %686 = vmatpush.bf16.msra.mxu0 %v553
        %687 = vmatpush.bf16.msra.mxu0 %v550
        %688 = vmatpush.bf16.msra.mxu0 %v547
        %689 = vmatpush.bf16.msra.mxu0 %v544
        %690 = vmatpush.bf16.msra.mxu0 %v541
        %691 = vmatpush.bf16.msra.mxu0 %v538
        %692 = vmatpush.bf16.msra.mxu0 %v535
        %693 = vmatmul.bf16.gmra.mxu0 %v684
        %v694 = vpop.f32.mrf.mxu0
        %v695 = vadd.f32 0.0, %v694
        %v696 = vpop.f32.mrf.mxu0
        %697 = vdwg.mxu0
        %698 = vmatpush.bf16.msra.mxu0 %v557
        %699 = vmatpush.bf16.msra.mxu0 %v554
        %700 = vmatpush.bf16.msra.mxu0 %v551
        %701 = vmatpush.bf16.msra.mxu0 %v548
        %702 = vmatpush.bf16.msra.mxu0 %v545
        %703 = vmatpush.bf16.msra.mxu0 %v542
        %704 = vmatpush.bf16.msra.mxu0 %v539
        %705 = vmatpush.bf16.msra.mxu0 %v536
        %706 = vmatmul.bf16.gmra.mxu0 %v684
        %v707 = vpop.f32.mrf.mxu0
        %v708 = vadd.f32 0.0, %v707
        %v709 = vpop.f32.mrf.mxu0
        %710 = vdwg.mxu0
        %711 = vmatpush.bf16.msra.mxu0 %v558
        %712 = vmatpush.bf16.msra.mxu0 %v555
        %713 = vmatpush.bf16.msra.mxu0 %v552
        %714 = vmatpush.bf16.msra.mxu0 %v549
        %715 = vmatpush.bf16.msra.mxu0 %v546
        %716 = vmatpush.bf16.msra.mxu0 %v543
        %717 = vmatpush.bf16.msra.mxu0 %v540
        %718 = vmatpush.bf16.msra.mxu0 %v537
        %719 = vmatmul.bf16.gmra.mxu0 %v684
        %v720 = vpop.f32.mrf.mxu0
        %v721 = vadd.f32 0.0, %v720
        %v722 = vpop.f32.mrf.mxu0
        %723 = vdwg.mxu0
        %v724 = vadd.f32 %v681, %v695
        %v725 = vxor.u32 %v724, 2147483648
        %v726 = vmul.f32 %v725, 1.442695
        %v727 = vpow.pop %v726
        %v728 = vadd.f32 %v727, 1.0
        %v729 = vrcp.pop %v728
        %v730 = vmul.f32 %v728, %v729
        %v731 = vsub.f32 1.0, %v730
        %v732 = vmul.f32 %v729, %v731
        %v733 = vadd.f32 %v729, %v732
        %vm734 = vweird.f32 %v728
        %vm735 = vweird.f32 %v729
        %vm736 = vmor %vm734, %vm735
        %v737 = vsel %vm736, %v729, %v733
        %v738 = vand.u32 2147483647, %v728
        %vm739 = vcmp.eq.f32.partialorder %v738, 8.507059e+37
        %v740 = vand.u32 %v728, 2147483648
        %v741 = vor.u32 1.1754944e-38, %v740
        %v742 = vsel %vm739, %v741, %v737
        %v743 = vmul.f32 1.0, %v742
        %v744 = vadd.f32 %v682, %v708
        %v745 = vxor.u32 %v744, 2147483648
        %v746 = vmul.f32 %v745, 1.442695
        %v747 = vpow.pop %v746
        %v748 = vadd.f32 %v747, 1.0
        %v749 = vrcp.pop %v748
        %v750 = vmul.f32 %v748, %v749
        %v751 = vsub.f32 1.0, %v750
        %v752 = vmul.f32 %v749, %v751
        %v753 = vadd.f32 %v749, %v752
        %vm754 = vweird.f32 %v748
        %vm755 = vweird.f32 %v749
        %vm756 = vmor %vm754, %vm755
        %v757 = vsel %vm756, %v749, %v753
        %v758 = vand.u32 2147483647, %v748
        %vm759 = vcmp.eq.f32.partialorder %v758, 8.507059e+37
        %v760 = vand.u32 %v748, 2147483648
        %v761 = vor.u32 1.1754944e-38, %v760
        %v762 = vsel %vm759, %v761, %v757
        %v763 = vmul.f32 1.0, %v762
        %v764 = vadd.f32 %v721, %v445
        %v765 = vmul.f32 %v743, %v764
        %v766 = vadd.f32 %v683, %v765
        %v767 = vtanh.pop %v766
        %v768 = vsub.f32 1.0, %v763
        %v769 = vmul.f32 %v768, %v767
        %v770 = vmul.f32 %v763, %v677
        %v771 = vadd.f32 %v769, %v770
        %s772 = sadd.s32 %s447, 1
        %v773 = vstv %s772
        %vm774 = vcmp.gt.s32.totalorder %v410, %v773
        %v775 = vsel %vm774, 1, 0
        %776 = vset.pattern.permute.xlu0 0
        %777 = vperm.xlu0 %776, %v775
        %v778 = vpop.permute.xlu0 %777
        %vm779 = vcmp.eq.s32.totalorder %v778, 1
        %v780 = vsel %vm779, %v771, %v677
        %s781 = scalar_lea.vmem %s374, 24 [#allocation3]
        %v782 = vld [vmem:[%s781] sm:$0xff]
        %v783 = vld [vmem:[%s781 + $0x8] sm:$0xf]
        %v784 = vunpack.c.l.bf16 %v782
        %v785 = vunpack.c.h.bf16 %v782
        %v786 = vunpack.c.l.bf16 %v783
        %v787 = vpack.c.bf16 %v780, %v780
        %788 = vmatpush.bf16.msra.mxu0 %v556
        %789 = vmatpush.bf16.msra.mxu0 %v553
        %790 = vmatpush.bf16.msra.mxu0 %v550
        %791 = vmatpush.bf16.msra.mxu0 %v547
        %792 = vmatpush.bf16.msra.mxu0 %v544
        %793 = vmatpush.bf16.msra.mxu0 %v541
        %794 = vmatpush.bf16.msra.mxu0 %v538
        %795 = vmatpush.bf16.msra.mxu0 %v535
        %796 = vmatmul.bf16.gmra.mxu0 %v787
        %v797 = vpop.f32.mrf.mxu0
        %v798 = vadd.f32 0.0, %v797
        %v799 = vpop.f32.mrf.mxu0
        %800 = vdwg.mxu0
        %801 = vmatpush.bf16.msra.mxu0 %v557
        %802 = vmatpush.bf16.msra.mxu0 %v554
        %803 = vmatpush.bf16.msra.mxu0 %v551
        %804 = vmatpush.bf16.msra.mxu0 %v548
        %805 = vmatpush.bf16.msra.mxu0 %v545
        %806 = vmatpush.bf16.msra.mxu0 %v542
        %807 = vmatpush.bf16.msra.mxu0 %v539
        %808 = vmatpush.bf16.msra.mxu0 %v536
        %809 = vmatmul.bf16.gmra.mxu0 %v787
        %v810 = vpop.f32.mrf.mxu0
        %v811 = vadd.f32 0.0, %v810
        %v812 = vpop.f32.mrf.mxu0
        %813 = vdwg.mxu0
        %814 = vmatpush.bf16.msra.mxu0 %v558
        %815 = vmatpush.bf16.msra.mxu0 %v555
        %816 = vmatpush.bf16.msra.mxu0 %v552
        %817 = vmatpush.bf16.msra.mxu0 %v549
        %818 = vmatpush.bf16.msra.mxu0 %v546
        %819 = vmatpush.bf16.msra.mxu0 %v543
        %820 = vmatpush.bf16.msra.mxu0 %v540
        %821 = vmatpush.bf16.msra.mxu0 %v537
        %822 = vmatmul.bf16.gmra.mxu0 %v787
        %v823 = vpop.f32.mrf.mxu0
        %v824 = vadd.f32 0.0, %v823
        %v825 = vpop.f32.mrf.mxu0
        %826 = vdwg.mxu0
        %v827 = vadd.f32 %v784, %v798
        %v828 = vxor.u32 %v827, 2147483648
        %v829 = vmul.f32 %v828, 1.442695
        %v830 = vpow.pop %v829
        %v831 = vadd.f32 %v830, 1.0
        %v832 = vrcp.pop %v831
        %v833 = vmul.f32 %v831, %v832
        %v834 = vsub.f32 1.0, %v833
        %v835 = vmul.f32 %v832, %v834
        %v836 = vadd.f32 %v832, %v835
        %vm837 = vweird.f32 %v831
        %vm838 = vweird.f32 %v832
        %vm839 = vmor %vm837, %vm838
        %v840 = vsel %vm839, %v832, %v836
        %v841 = vand.u32 2147483647, %v831
        %vm842 = vcmp.eq.f32.partialorder %v841, 8.507059e+37
        %v843 = vand.u32 %v831, 2147483648
        %v844 = vor.u32 1.1754944e-38, %v843
        %v845 = vsel %vm842, %v844, %v840
        %v846 = vmul.f32 1.0, %v845
        %v847 = vadd.f32 %v785, %v811
        %v848 = vxor.u32 %v847, 2147483648
        %v849 = vmul.f32 %v848, 1.442695
        %v850 = vpow.pop %v849
        %v851 = vadd.f32 %v850, 1.0
        %v852 = vrcp.pop %v851
        %v853 = vmul.f32 %v851, %v852
        %v854 = vsub.f32 1.0, %v853
        %v855 = vmul.f32 %v852, %v854
        %v856 = vadd.f32 %v852, %v855
        %vm857 = vweird.f32 %v851
        %vm858 = vweird.f32 %v852
        %vm859 = vmor %vm857, %vm858
        %v860 = vsel %vm859, %v852, %v856
        %v861 = vand.u32 2147483647, %v851
        %vm862 = vcmp.eq.f32.partialorder %v861, 8.507059e+37
        %v863 = vand.u32 %v851, 2147483648
        %v864 = vor.u32 1.1754944e-38, %v863
        %v865 = vsel %vm862, %v864, %v860
        %v866 = vmul.f32 1.0, %v865
        %v867 = vadd.f32 %v824, %v445
        %v868 = vmul.f32 %v846, %v867
        %v869 = vadd.f32 %v786, %v868
        %v870 = vtanh.pop %v869
        %v871 = vsub.f32 1.0, %v866
        %v872 = vmul.f32 %v871, %v870
        %v873 = vmul.f32 %v866, %v780
        %v874 = vadd.f32 %v872, %v873
        %s875 = sadd.s32 %s447, 2
        %v876 = vstv %s875
        %vm877 = vcmp.gt.s32.totalorder %v410, %v876
        %v878 = vsel %vm877, 1, 0
        %879 = vset.pattern.permute.xlu0 0
        %880 = vperm.xlu0 %879, %v878
        %v881 = vpop.permute.xlu0 %880
        %vm882 = vcmp.eq.s32.totalorder %v881, 1
        %v883 = vsel %vm882, %v874, %v780
        %s884 = scalar_lea.vmem %s374, 36 [#allocation3]
        %v885 = vld [vmem:[%s884] sm:$0xff]
        %v886 = vld [vmem:[%s884 + $0x8] sm:$0xf]
        %v887 = vunpack.c.l.bf16 %v885
        %v888 = vunpack.c.h.bf16 %v885
        %v889 = vunpack.c.l.bf16 %v886
        %v890 = vpack.c.bf16 %v883, %v883
        %891 = vmatpush.bf16.msra.mxu0 %v556
        %892 = vmatpush.bf16.msra.mxu0 %v553
        %893 = vmatpush.bf16.msra.mxu0 %v550
        %894 = vmatpush.bf16.msra.mxu0 %v547
        %895 = vmatpush.bf16.msra.mxu0 %v544
        %896 = vmatpush.bf16.msra.mxu0 %v541
        %897 = vmatpush.bf16.msra.mxu0 %v538
        %898 = vmatpush.bf16.msra.mxu0 %v535
        %899 = vmatmul.bf16.gmra.mxu0 %v890
        %v900 = vpop.f32.mrf.mxu0
        %v901 = vadd.f32 0.0, %v900
        %v902 = vpop.f32.mrf.mxu0
        %903 = vdwg.mxu0
        %904 = vmatpush.bf16.msra.mxu0 %v557
        %905 = vmatpush.bf16.msra.mxu0 %v554
        %906 = vmatpush.bf16.msra.mxu0 %v551
        %907 = vmatpush.bf16.msra.mxu0 %v548
        %908 = vmatpush.bf16.msra.mxu0 %v545
        %909 = vmatpush.bf16.msra.mxu0 %v542
        %910 = vmatpush.bf16.msra.mxu0 %v539
        %911 = vmatpush.bf16.msra.mxu0 %v536
        %912 = vmatmul.bf16.gmra.mxu0 %v890
        %v913 = vpop.f32.mrf.mxu0
        %v914 = vadd.f32 0.0, %v913
        %v915 = vpop.f32.mrf.mxu0
        %916 = vdwg.mxu0
        %917 = vmatpush.bf16.msra.mxu0 %v558
        %918 = vmatpush.bf16.msra.mxu0 %v555
        %919 = vmatpush.bf16.msra.mxu0 %v552
        %920 = vmatpush.bf16.msra.mxu0 %v549
        %921 = vmatpush.bf16.msra.mxu0 %v546
        %922 = vmatpush.bf16.msra.mxu0 %v543
        %923 = vmatpush.bf16.msra.mxu0 %v540
        %924 = vmatpush.bf16.msra.mxu0 %v537
        %925 = vmatmul.bf16.gmra.mxu0 %v890
        %v926 = vpop.f32.mrf.mxu0
        %v927 = vadd.f32 0.0, %v926
        %v928 = vpop.f32.mrf.mxu0
        %929 = vdwg.mxu0
        %v930 = vadd.f32 %v887, %v901
        %v931 = vxor.u32 %v930, 2147483648
        %v932 = vmul.f32 %v931, 1.442695
        %v933 = vpow.pop %v932
        %v934 = vadd.f32 %v933, 1.0
        %v935 = vrcp.pop %v934
        %v936 = vmul.f32 %v934, %v935
        %v937 = vsub.f32 1.0, %v936
        %v938 = vmul.f32 %v935, %v937
        %v939 = vadd.f32 %v935, %v938
        %vm940 = vweird.f32 %v934
        %vm941 = vweird.f32 %v935
        %vm942 = vmor %vm940, %vm941
        %v943 = vsel %vm942, %v935, %v939
        %v944 = vand.u32 2147483647, %v934
        %vm945 = vcmp.eq.f32.partialorder %v944, 8.507059e+37
        %v946 = vand.u32 %v934, 2147483648
        %v947 = vor.u32 1.1754944e-38, %v946
        %v948 = vsel %vm945, %v947, %v943
        %v949 = vmul.f32 1.0, %v948
        %v950 = vadd.f32 %v888, %v914
        %v951 = vxor.u32 %v950, 2147483648
        %v952 = vmul.f32 %v951, 1.442695
        %v953 = vpow.pop %v952
        %v954 = vadd.f32 %v953, 1.0
        %v955 = vrcp.pop %v954
        %v956 = vmul.f32 %v954, %v955
        %v957 = vsub.f32 1.0, %v956
        %v958 = vmul.f32 %v955, %v957
        %v959 = vadd.f32 %v955, %v958
        %vm960 = vweird.f32 %v954
        %vm961 = vweird.f32 %v955
        %vm962 = vmor %vm960, %vm961
        %v963 = vsel %vm962, %v955, %v959
        %v964 = vand.u32 2147483647, %v954
        %vm965 = vcmp.eq.f32.partialorder %v964, 8.507059e+37
        %v966 = vand.u32 %v954, 2147483648
        %v967 = vor.u32 1.1754944e-38, %v966
        %v968 = vsel %vm965, %v967, %v963
        %v969 = vmul.f32 1.0, %v968
        %v970 = vadd.f32 %v927, %v445
        %v971 = vmul.f32 %v949, %v970
        %v972 = vadd.f32 %v889, %v971
        %v973 = vtanh.pop %v972
        %v974 = vsub.f32 1.0, %v969
        %v975 = vmul.f32 %v974, %v973
        %v976 = vmul.f32 %v969, %v883
        %v977 = vadd.f32 %v975, %v976
        %s978 = sadd.s32 %s447, 3
        %v979 = vstv %s978
        %vm980 = vcmp.gt.s32.totalorder %v410, %v979
        %v981 = vsel %vm980, 1, 0
        %982 = vset.pattern.permute.xlu0 0
        %983 = vperm.xlu0 %982, %v981
        %v984 = vpop.permute.xlu0 %983
        %vm985 = vcmp.eq.s32.totalorder %v984, 1
        %v986 = vsel %vm985, %v977, %v883
        %s987 = scalar_lea.vmem %s374, 48 [#allocation3]
        %v988 = vld [vmem:[%s987] sm:$0xff]
        %v989 = vld [vmem:[%s987 + $0x8] sm:$0xf]
        %v990 = vunpack.c.l.bf16 %v988
        %v991 = vunpack.c.h.bf16 %v988
        %v992 = vunpack.c.l.bf16 %v989
        %v993 = vpack.c.bf16 %v986, %v986
        %994 = vmatpush.bf16.msra.mxu0 %v556
        %995 = vmatpush.bf16.msra.mxu0 %v553
        %996 = vmatpush.bf16.msra.mxu0 %v550
        %997 = vmatpush.bf16.msra.mxu0 %v547
        %998 = vmatpush.bf16.msra.mxu0 %v544
        %999 = vmatpush.bf16.msra.mxu0 %v541
        %1000 = vmatpush.bf16.msra.mxu0 %v538
        %1001 = vmatpush.bf16.msra.mxu0 %v535
        %1002 = vmatmul.bf16.gmra.mxu0 %v993
        %v1003 = vpop.f32.mrf.mxu0
        %v1004 = vadd.f32 0.0, %v1003
        %v1005 = vpop.f32.mrf.mxu0
        %1006 = vdwg.mxu0
        %1007 = vmatpush.bf16.msra.mxu0 %v557
        %1008 = vmatpush.bf16.msra.mxu0 %v554
        %1009 = vmatpush.bf16.msra.mxu0 %v551
        %1010 = vmatpush.bf16.msra.mxu0 %v548
        %1011 = vmatpush.bf16.msra.mxu0 %v545
        %1012 = vmatpush.bf16.msra.mxu0 %v542
        %1013 = vmatpush.bf16.msra.mxu0 %v539
        %1014 = vmatpush.bf16.msra.mxu0 %v536
        %1015 = vmatmul.bf16.gmra.mxu0 %v993
        %v1016 = vpop.f32.mrf.mxu0
        %v1017 = vadd.f32 0.0, %v1016
        %v1018 = vpop.f32.mrf.mxu0
        %1019 = vdwg.mxu0
        %1020 = vmatpush.bf16.msra.mxu0 %v558
        %1021 = vmatpush.bf16.msra.mxu0 %v555
        %1022 = vmatpush.bf16.msra.mxu0 %v552
        %1023 = vmatpush.bf16.msra.mxu0 %v549
        %1024 = vmatpush.bf16.msra.mxu0 %v546
        %1025 = vmatpush.bf16.msra.mxu0 %v543
        %1026 = vmatpush.bf16.msra.mxu0 %v540
        %1027 = vmatpush.bf16.msra.mxu0 %v537
        %1028 = vmatmul.bf16.gmra.mxu0 %v993
        %v1029 = vpop.f32.mrf.mxu0
        %v1030 = vadd.f32 0.0, %v1029
        %v1031 = vpop.f32.mrf.mxu0
        %1032 = vdwg.mxu0
        %v1033 = vadd.f32 %v990, %v1004
        %v1034 = vxor.u32 %v1033, 2147483648
        %v1035 = vmul.f32 %v1034, 1.442695
        %v1036 = vpow.pop %v1035
        %v1037 = vadd.f32 %v1036, 1.0
        %v1038 = vrcp.pop %v1037
        %v1039 = vmul.f32 %v1037, %v1038
        %v1040 = vsub.f32 1.0, %v1039
        %v1041 = vmul.f32 %v1038, %v1040
        %v1042 = vadd.f32 %v1038, %v1041
        %vm1043 = vweird.f32 %v1037
        %vm1044 = vweird.f32 %v1038
        %vm1045 = vmor %vm1043, %vm1044
        %v1046 = vsel %vm1045, %v1038, %v1042
        %v1047 = vand.u32 2147483647, %v1037
        %vm1048 = vcmp.eq.f32.partialorder %v1047, 8.507059e+37
        %v1049 = vand.u32 %v1037, 2147483648
        %v1050 = vor.u32 1.1754944e-38, %v1049
        %v1051 = vsel %vm1048, %v1050, %v1046
        %v1052 = vmul.f32 1.0, %v1051
        %v1053 = vadd.f32 %v991, %v1017
        %v1054 = vxor.u32 %v1053, 2147483648
        %v1055 = vmul.f32 %v1054, 1.442695
        %v1056 = vpow.pop %v1055
        %v1057 = vadd.f32 %v1056, 1.0
        %v1058 = vrcp.pop %v1057
        %v1059 = vmul.f32 %v1057, %v1058
        %v1060 = vsub.f32 1.0, %v1059
        %v1061 = vmul.f32 %v1058, %v1060
        %v1062 = vadd.f32 %v1058, %v1061
        %vm1063 = vweird.f32 %v1057
        %vm1064 = vweird.f32 %v1058
        %vm1065 = vmor %vm1063, %vm1064
        %v1066 = vsel %vm1065, %v1058, %v1062
        %v1067 = vand.u32 2147483647, %v1057
        %vm1068 = vcmp.eq.f32.partialorder %v1067, 8.507059e+37
        %v1069 = vand.u32 %v1057, 2147483648
        %v1070 = vor.u32 1.1754944e-38, %v1069
        %v1071 = vsel %vm1068, %v1070, %v1066
        %v1072 = vmul.f32 1.0, %v1071
        %v1073 = vadd.f32 %v1030, %v445
        %v1074 = vmul.f32 %v1052, %v1073
        %v1075 = vadd.f32 %v992, %v1074
        %v1076 = vtanh.pop %v1075
        %v1077 = vsub.f32 1.0, %v1072
        %v1078 = vmul.f32 %v1077, %v1076
        %v1079 = vmul.f32 %v1072, %v986
        %v1080 = vadd.f32 %v1078, %v1079
        %s1081 = sadd.s32 %s447, 4
        %v1082 = vstv %s1081
        %vm1083 = vcmp.gt.s32.totalorder %v410, %v1082
        %v1084 = vsel %vm1083, 1, 0
        %1085 = vset.pattern.permute.xlu0 0
        %1086 = vperm.xlu0 %1085, %v1084
        %v1087 = vpop.permute.xlu0 %1086
        %vm1088 = vcmp.eq.s32.totalorder %v1087, 1
        %v1089 = vsel %vm1088, %v1080, %v986
        %s1090 = scalar_lea.vmem %s374, 60 [#allocation3]
        %v1091 = vld [vmem:[%s1090] sm:$0xff]
        %v1092 = vld [vmem:[%s1090 + $0x8] sm:$0xf]
        %v1093 = vunpack.c.l.bf16 %v1091
        %v1094 = vunpack.c.h.bf16 %v1091
        %v1095 = vunpack.c.l.bf16 %v1092
        %v1096 = vpack.c.bf16 %v1089, %v1089
        %1097 = vmatpush.bf16.msra.mxu0 %v556
        %1098 = vmatpush.bf16.msra.mxu0 %v553
        %1099 = vmatpush.bf16.msra.mxu0 %v550
        %1100 = vmatpush.bf16.msra.mxu0 %v547
        %1101 = vmatpush.bf16.msra.mxu0 %v544
        %1102 = vmatpush.bf16.msra.mxu0 %v541
        %1103 = vmatpush.bf16.msra.mxu0 %v538
        %1104 = vmatpush.bf16.msra.mxu0 %v535
        %1105 = vmatmul.bf16.gmra.mxu0 %v1096
        %v1106 = vpop.f32.mrf.mxu0
        %v1107 = vadd.f32 0.0, %v1106
        %v1108 = vpop.f32.mrf.mxu0
        %1109 = vdwg.mxu0
        %1110 = vmatpush.bf16.msra.mxu0 %v557
        %1111 = vmatpush.bf16.msra.mxu0 %v554
        %1112 = vmatpush.bf16.msra.mxu0 %v551
        %1113 = vmatpush.bf16.msra.mxu0 %v548
        %1114 = vmatpush.bf16.msra.mxu0 %v545
        %1115 = vmatpush.bf16.msra.mxu0 %v542
        %1116 = vmatpush.bf16.msra.mxu0 %v539
        %1117 = vmatpush.bf16.msra.mxu0 %v536
        %1118 = vmatmul.bf16.gmra.mxu0 %v1096
        %v1119 = vpop.f32.mrf.mxu0
        %v1120 = vadd.f32 0.0, %v1119
        %v1121 = vpop.f32.mrf.mxu0
        %1122 = vdwg.mxu0
        %1123 = vmatpush.bf16.msra.mxu0 %v558
        %1124 = vmatpush.bf16.msra.mxu0 %v555
        %1125 = vmatpush.bf16.msra.mxu0 %v552
        %1126 = vmatpush.bf16.msra.mxu0 %v549
        %1127 = vmatpush.bf16.msra.mxu0 %v546
        %1128 = vmatpush.bf16.msra.mxu0 %v543
        %1129 = vmatpush.bf16.msra.mxu0 %v540
        %1130 = vmatpush.bf16.msra.mxu0 %v537
        %1131 = vmatmul.bf16.gmra.mxu0 %v1096
        %v1132 = vpop.f32.mrf.mxu0
        %v1133 = vadd.f32 0.0, %v1132
        %v1134 = vpop.f32.mrf.mxu0
        %1135 = vdwg.mxu0
        %v1136 = vadd.f32 %v1093, %v1107
        %v1137 = vxor.u32 %v1136, 2147483648
        %v1138 = vmul.f32 %v1137, 1.442695
        %v1139 = vpow.pop %v1138
        %v1140 = vadd.f32 %v1139, 1.0
        %v1141 = vrcp.pop %v1140
        %v1142 = vmul.f32 %v1140, %v1141
        %v1143 = vsub.f32 1.0, %v1142
        %v1144 = vmul.f32 %v1141, %v1143
        %v1145 = vadd.f32 %v1141, %v1144
        %vm1146 = vweird.f32 %v1140
        %vm1147 = vweird.f32 %v1141
        %vm1148 = vmor %vm1146, %vm1147
        %v1149 = vsel %vm1148, %v1141, %v1145
        %v1150 = vand.u32 2147483647, %v1140
        %vm1151 = vcmp.eq.f32.partialorder %v1150, 8.507059e+37
        %v1152 = vand.u32 %v1140, 2147483648
        %v1153 = vor.u32 1.1754944e-38, %v1152
        %v1154 = vsel %vm1151, %v1153, %v1149
        %v1155 = vmul.f32 1.0, %v1154
        %v1156 = vadd.f32 %v1094, %v1120
        %v1157 = vxor.u32 %v1156, 2147483648
        %v1158 = vmul.f32 %v1157, 1.442695
        %v1159 = vpow.pop %v1158
        %v1160 = vadd.f32 %v1159, 1.0
        %v1161 = vrcp.pop %v1160
        %v1162 = vmul.f32 %v1160, %v1161
        %v1163 = vsub.f32 1.0, %v1162
        %v1164 = vmul.f32 %v1161, %v1163
        %v1165 = vadd.f32 %v1161, %v1164
        %vm1166 = vweird.f32 %v1160
        %vm1167 = vweird.f32 %v1161
        %vm1168 = vmor %vm1166, %vm1167
        %v1169 = vsel %vm1168, %v1161, %v1165
        %v1170 = vand.u32 2147483647, %v1160
        %vm1171 = vcmp.eq.f32.partialorder %v1170, 8.507059e+37
        %v1172 = vand.u32 %v1160, 2147483648
        %v1173 = vor.u32 1.1754944e-38, %v1172
        %v1174 = vsel %vm1171, %v1173, %v1169
        %v1175 = vmul.f32 1.0, %v1174
        %v1176 = vadd.f32 %v1133, %v445
        %v1177 = vmul.f32 %v1155, %v1176
        %v1178 = vadd.f32 %v1095, %v1177
        %v1179 = vtanh.pop %v1178
        %v1180 = vsub.f32 1.0, %v1175
        %v1181 = vmul.f32 %v1180, %v1179
        %v1182 = vmul.f32 %v1175, %v1089
        %v1183 = vadd.f32 %v1181, %v1182
        %s1184 = sadd.s32 %s447, 5
        %v1185 = vstv %s1184
        %vm1186 = vcmp.gt.s32.totalorder %v410, %v1185
        %v1187 = vsel %vm1186, 1, 0
        %1188 = vset.pattern.permute.xlu0 0
        %1189 = vperm.xlu0 %1188, %v1187
        %v1190 = vpop.permute.xlu0 %1189
        %vm1191 = vcmp.eq.s32.totalorder %v1190, 1
        %v1192 = vsel %vm1191, %v1183, %v1089
        %s1193 = scalar_lea.vmem %s374, 72 [#allocation3]
        %v1194 = vld [vmem:[%s1193] sm:$0xff]
        %v1195 = vld [vmem:[%s1193 + $0x8] sm:$0xf]
        %v1196 = vunpack.c.l.bf16 %v1194
        %v1197 = vunpack.c.h.bf16 %v1194
        %v1198 = vunpack.c.l.bf16 %v1195
        %v1199 = vpack.c.bf16 %v1192, %v1192
        %1200 = vmatpush.bf16.msra.mxu0 %v556
        %1201 = vmatpush.bf16.msra.mxu0 %v553
        %1202 = vmatpush.bf16.msra.mxu0 %v550
        %1203 = vmatpush.bf16.msra.mxu0 %v547
        %1204 = vmatpush.bf16.msra.mxu0 %v544
        %1205 = vmatpush.bf16.msra.mxu0 %v541
        %1206 = vmatpush.bf16.msra.mxu0 %v538
        %1207 = vmatpush.bf16.msra.mxu0 %v535
        %1208 = vmatmul.bf16.gmra.mxu0 %v1199
        %v1209 = vpop.f32.mrf.mxu0
        %v1210 = vadd.f32 0.0, %v1209
        %v1211 = vpop.f32.mrf.mxu0
        %1212 = vdwg.mxu0
        %1213 = vmatpush.bf16.msra.mxu0 %v557
        %1214 = vmatpush.bf16.msra.mxu0 %v554
        %1215 = vmatpush.bf16.msra.mxu0 %v551
        %1216 = vmatpush.bf16.msra.mxu0 %v548
        %1217 = vmatpush.bf16.msra.mxu0 %v545
        %1218 = vmatpush.bf16.msra.mxu0 %v542
        %1219 = vmatpush.bf16.msra.mxu0 %v539
        %1220 = vmatpush.bf16.msra.mxu0 %v536
        %1221 = vmatmul.bf16.gmra.mxu0 %v1199
        %v1222 = vpop.f32.mrf.mxu0
        %v1223 = vadd.f32 0.0, %v1222
        %v1224 = vpop.f32.mrf.mxu0
        %1225 = vdwg.mxu0
        %1226 = vmatpush.bf16.msra.mxu0 %v558
        %1227 = vmatpush.bf16.msra.mxu0 %v555
        %1228 = vmatpush.bf16.msra.mxu0 %v552
        %1229 = vmatpush.bf16.msra.mxu0 %v549
        %1230 = vmatpush.bf16.msra.mxu0 %v546
        %1231 = vmatpush.bf16.msra.mxu0 %v543
        %1232 = vmatpush.bf16.msra.mxu0 %v540
        %1233 = vmatpush.bf16.msra.mxu0 %v537
        %1234 = vmatmul.bf16.gmra.mxu0 %v1199
        %v1235 = vpop.f32.mrf.mxu0
        %v1236 = vadd.f32 0.0, %v1235
        %v1237 = vpop.f32.mrf.mxu0
        %1238 = vdwg.mxu0
        %v1239 = vadd.f32 %v1196, %v1210
        %v1240 = vxor.u32 %v1239, 2147483648
        %v1241 = vmul.f32 %v1240, 1.442695
        %v1242 = vpow.pop %v1241
        %v1243 = vadd.f32 %v1242, 1.0
        %v1244 = vrcp.pop %v1243
        %v1245 = vmul.f32 %v1243, %v1244
        %v1246 = vsub.f32 1.0, %v1245
        %v1247 = vmul.f32 %v1244, %v1246
        %v1248 = vadd.f32 %v1244, %v1247
        %vm1249 = vweird.f32 %v1243
        %vm1250 = vweird.f32 %v1244
        %vm1251 = vmor %vm1249, %vm1250
        %v1252 = vsel %vm1251, %v1244, %v1248
        %v1253 = vand.u32 2147483647, %v1243
        %vm1254 = vcmp.eq.f32.partialorder %v1253, 8.507059e+37
        %v1255 = vand.u32 %v1243, 2147483648
        %v1256 = vor.u32 1.1754944e-38, %v1255
        %v1257 = vsel %vm1254, %v1256, %v1252
        %v1258 = vmul.f32 1.0, %v1257
        %v1259 = vadd.f32 %v1197, %v1223
        %v1260 = vxor.u32 %v1259, 2147483648
        %v1261 = vmul.f32 %v1260, 1.442695
        %v1262 = vpow.pop %v1261
        %v1263 = vadd.f32 %v1262, 1.0
        %v1264 = vrcp.pop %v1263
        %v1265 = vmul.f32 %v1263, %v1264
        %v1266 = vsub.f32 1.0, %v1265
        %v1267 = vmul.f32 %v1264, %v1266
        %v1268 = vadd.f32 %v1264, %v1267
        %vm1269 = vweird.f32 %v1263
        %vm1270 = vweird.f32 %v1264
        %vm1271 = vmor %vm1269, %vm1270
        %v1272 = vsel %vm1271, %v1264, %v1268
        %v1273 = vand.u32 2147483647, %v1263
        %vm1274 = vcmp.eq.f32.partialorder %v1273, 8.507059e+37
        %v1275 = vand.u32 %v1263, 2147483648
        %v1276 = vor.u32 1.1754944e-38, %v1275
        %v1277 = vsel %vm1274, %v1276, %v1272
        %v1278 = vmul.f32 1.0, %v1277
        %v1279 = vadd.f32 %v1236, %v445
        %v1280 = vmul.f32 %v1258, %v1279
        %v1281 = vadd.f32 %v1198, %v1280
        %v1282 = vtanh.pop %v1281
        %v1283 = vsub.f32 1.0, %v1278
        %v1284 = vmul.f32 %v1283, %v1282
        %v1285 = vmul.f32 %v1278, %v1192
        %v1286 = vadd.f32 %v1284, %v1285
        %s1287 = sadd.s32 %s447, 6
        %v1288 = vstv %s1287
        %vm1289 = vcmp.gt.s32.totalorder %v410, %v1288
        %v1290 = vsel %vm1289, 1, 0
        %1291 = vset.pattern.permute.xlu0 0
        %1292 = vperm.xlu0 %1291, %v1290
        %v1293 = vpop.permute.xlu0 %1292
        %vm1294 = vcmp.eq.s32.totalorder %v1293, 1
        %v1295 = vsel %vm1294, %v1286, %v1192
        %s1296 = scalar_lea.vmem %s374, 84 [#allocation3]
        %v1297 = vld [vmem:[%s1296] sm:$0xff]
        %v1298 = vld [vmem:[%s1296 + $0x8] sm:$0xf]
        %v1299 = vunpack.c.l.bf16 %v1297
        %v1300 = vunpack.c.h.bf16 %v1297
        %v1301 = vunpack.c.l.bf16 %v1298
        %v1302 = vpack.c.bf16 %v1295, %v1295
        %1303 = vmatpush.bf16.msra.mxu0 %v556
        %1304 = vmatpush.bf16.msra.mxu0 %v553
        %1305 = vmatpush.bf16.msra.mxu0 %v550
        %1306 = vmatpush.bf16.msra.mxu0 %v547
        %1307 = vmatpush.bf16.msra.mxu0 %v544
        %1308 = vmatpush.bf16.msra.mxu0 %v541
        %1309 = vmatpush.bf16.msra.mxu0 %v538
        %1310 = vmatpush.bf16.msra.mxu0 %v535
        %1311 = vmatmul.bf16.gmra.mxu0 %v1302
        %v1312 = vpop.f32.mrf.mxu0
        %v1313 = vadd.f32 0.0, %v1312
        %v1314 = vpop.f32.mrf.mxu0
        %1315 = vdwg.mxu0
        %1316 = vmatpush.bf16.msra.mxu0 %v557
        %1317 = vmatpush.bf16.msra.mxu0 %v554
        %1318 = vmatpush.bf16.msra.mxu0 %v551
        %1319 = vmatpush.bf16.msra.mxu0 %v548
        %1320 = vmatpush.bf16.msra.mxu0 %v545
        %1321 = vmatpush.bf16.msra.mxu0 %v542
        %1322 = vmatpush.bf16.msra.mxu0 %v539
        %1323 = vmatpush.bf16.msra.mxu0 %v536
        %1324 = vmatmul.bf16.gmra.mxu0 %v1302
        %v1325 = vpop.f32.mrf.mxu0
        %v1326 = vadd.f32 0.0, %v1325
        %v1327 = vpop.f32.mrf.mxu0
        %1328 = vdwg.mxu0
        %1329 = vmatpush.bf16.msra.mxu0 %v558
        %1330 = vmatpush.bf16.msra.mxu0 %v555
        %1331 = vmatpush.bf16.msra.mxu0 %v552
        %1332 = vmatpush.bf16.msra.mxu0 %v549
        %1333 = vmatpush.bf16.msra.mxu0 %v546
        %1334 = vmatpush.bf16.msra.mxu0 %v543
        %1335 = vmatpush.bf16.msra.mxu0 %v540
        %1336 = vmatpush.bf16.msra.mxu0 %v537
        %1337 = vmatmul.bf16.gmra.mxu0 %v1302
        %v1338 = vpop.f32.mrf.mxu0
        %v1339 = vadd.f32 0.0, %v1338
        %v1340 = vpop.f32.mrf.mxu0
        %1341 = vdwg.mxu0
        %v1342 = vadd.f32 %v1299, %v1313
        %v1343 = vxor.u32 %v1342, 2147483648
        %v1344 = vmul.f32 %v1343, 1.442695
        %v1345 = vpow.pop %v1344
        %v1346 = vadd.f32 %v1345, 1.0
        %v1347 = vrcp.pop %v1346
        %v1348 = vmul.f32 %v1346, %v1347
        %v1349 = vsub.f32 1.0, %v1348
        %v1350 = vmul.f32 %v1347, %v1349
        %v1351 = vadd.f32 %v1347, %v1350
        %vm1352 = vweird.f32 %v1346
        %vm1353 = vweird.f32 %v1347
        %vm1354 = vmor %vm1352, %vm1353
        %v1355 = vsel %vm1354, %v1347, %v1351
        %v1356 = vand.u32 2147483647, %v1346
        %vm1357 = vcmp.eq.f32.partialorder %v1356, 8.507059e+37
        %v1358 = vand.u32 %v1346, 2147483648
        %v1359 = vor.u32 1.1754944e-38, %v1358
        %v1360 = vsel %vm1357, %v1359, %v1355
        %v1361 = vmul.f32 1.0, %v1360
        %v1362 = vadd.f32 %v1300, %v1326
        %v1363 = vxor.u32 %v1362, 2147483648
        %v1364 = vmul.f32 %v1363, 1.442695
        %v1365 = vpow.pop %v1364
        %v1366 = vadd.f32 %v1365, 1.0
        %v1367 = vrcp.pop %v1366
        %v1368 = vmul.f32 %v1366, %v1367
        %v1369 = vsub.f32 1.0, %v1368
        %v1370 = vmul.f32 %v1367, %v1369
        %v1371 = vadd.f32 %v1367, %v1370
        %vm1372 = vweird.f32 %v1366
        %vm1373 = vweird.f32 %v1367
        %vm1374 = vmor %vm1372, %vm1373
        %v1375 = vsel %vm1374, %v1367, %v1371
        %v1376 = vand.u32 2147483647, %v1366
        %vm1377 = vcmp.eq.f32.partialorder %v1376, 8.507059e+37
        %v1378 = vand.u32 %v1366, 2147483648
        %v1379 = vor.u32 1.1754944e-38, %v1378
        %v1380 = vsel %vm1377, %v1379, %v1375
        %v1381 = vmul.f32 1.0, %v1380
        %v1382 = vadd.f32 %v1339, %v445
        %v1383 = vmul.f32 %v1361, %v1382
        %v1384 = vadd.f32 %v1301, %v1383
        %v1385 = vtanh.pop %v1384
        %v1386 = vsub.f32 1.0, %v1381
        %v1387 = vmul.f32 %v1386, %v1385
        %v1388 = vmul.f32 %v1381, %v1295
        %v1389 = vadd.f32 %v1387, %v1388
        %s1390 = sadd.s32 %s447, 7
        %v1391 = vstv %s1390
        %vm1392 = vcmp.gt.s32.totalorder %v410, %v1391
        %v1393 = vsel %vm1392, 1, 0
        %1394 = vset.pattern.permute.xlu0 0
        %1395 = vperm.xlu0 %1394, %v1393
        %v1396 = vpop.permute.xlu0 %1395
        %vm1397 = vcmp.eq.s32.totalorder %v1396, 1
        %v1398 = vsel %vm1397, %v1389, %v1295
        %1399 = vst [vmem:[#allocation2] sm:$0xff] %v1398
        %p1400 = scmp.eq.s32.totalorder %s22, 1
        // Predicated region
        $region87: #{sentence_vae_forward.5} parent=77 // pred_check
          %p1401 = pneg %p1400
        $region88: #{sentence_vae_forward.5} parent=77 // pred_check_branch
          %1403 = sbr.rel (%p1401) target = $region90
        $region89: #{sentence_vae_forward.5} parent=77 // pred_region
          %v1404 = vld [vmem:[#allocation2] sm:$0xff]
          %v1405 = vld [vmem:[%s4] sm:$0xff]
          %v1406 = vld [vmem:[%s4 + $0x8] sm:$0xff]
          %v1407 = vld [vmem:[%s4 + $0x10] sm:$0xff]
          %v1408 = vld [vmem:[%s4 + $0x18] sm:$0xff]
          %v1409 = vld [vmem:[%s4 + $0x20] sm:$0xff]
          %v1410 = vld [vmem:[%s4 + $0x28] sm:$0xff]
          %v1411 = vld [vmem:[%s4 + $0x30] sm:$0xff]
          %v1412 = vld [vmem:[%s4 + $0x38] sm:$0xff]
          %v1413 = vld [vmem:[%s4 + $0x40] sm:$0xff]
          %v1414 = vld [vmem:[%s4 + $0x48] sm:$0xff]
          %v1415 = vld [vmem:[%s4 + $0x50] sm:$0xff]
          %v1416 = vld [vmem:[%s4 + $0x58] sm:$0xff]
          %v1417 = vld [vmem:[%s4 + $0x60] sm:$0xff]
          %v1418 = vld [vmem:[%s4 + $0x68] sm:$0xff]
          %v1419 = vld [vmem:[%s4 + $0x70] sm:$0xff]
          %v1420 = vld [vmem:[%s4 + $0x78] sm:$0xff]
          %v1421 = vld [vmem:[%s5] sm:$0x1]
          %v1423 = vperm.slane %v1421, 0
          %1425 = vmatpush.msra.mxu0 %v1420
          %1426 = vmatpush.msra.mxu0 %v1419
          %1427 = vmatpush.msra.mxu0 %v1418
          %1428 = vmatpush.msra.mxu0 %v1417
          %1429 = vmatpush.msra.mxu0 %v1416
          %1430 = vmatpush.msra.mxu0 %v1415
          %1431 = vmatpush.msra.mxu0 %v1414
          %1432 = vmatpush.msra.mxu0 %v1413
          %1433 = vmatpush.msra.mxu0 %v1412
          %1434 = vmatpush.msra.mxu0 %v1411
          %1435 = vmatpush.msra.mxu0 %v1410
          %1436 = vmatpush.msra.mxu0 %v1409
          %1437 = vmatpush.msra.mxu0 %v1408
          %1438 = vmatpush.msra.mxu0 %v1407
          %1439 = vmatpush.msra.mxu0 %v1406
          %1440 = vmatpush.msra.mxu0 %v1405
          %1441 = vmatmul.f32.gmra.mxu0 %v1404
          %v1442 = vpop.f32.mrf.mxu0
          %v1443 = vadd.f32 %v1423, %v1442
          %1444 = vdwg.mxu0
          %v1445 = vmul.f32 %v1443, 0.5
          %v1446 = vmul.f32 %v1445, 1.442695
          %v1447 = vpow.pop %v1446
          %v1448 = vld [vmem:[%s6] sm:$0xff]
          %1450 = vrot.lane.b32.xlu0 %v1447, 112
          %v1451 = vpop.permute.xlu0 %1450
          %v1453 = vmul.f32 %v1448, %v1451
          %v1454 = vadd.f32 %v1453, %v1443
          %vm1455 = vcmask 130048
          %1456 = vst.msk [vmem:[%s9] sm:$0xff] %vm1455, %v1443
          %vm1457 = vcmask 261248
          %1458 = vst.msk [vmem:[%s9] sm:$0xff] %vm1457, %v1443
          %1460 = vrot.lane.b32.xlu0 %v1454, 32
          %v1461 = vpop.permute.xlu0 %1460
          %vm1463 = vcmask 392448
          %1464 = vst.msk [vmem:[%s9] sm:$0xff] %vm1463, %v1461
          %v1465 = vld [vmem:[%s7] sm:$0xff]
          %v1466 = vld [vmem:[%s7 + $0x8] sm:$0xff]
          %v1467 = vld [vmem:[%s8] sm:$0x1]
          %v1469 = vperm.slane %v1467, 0
          %v1471 = vsel %vm1455, %v1454, 0
          %1473 = vmatpush.msra.mxu0 0.0
          %1474 = vmatpush.msra.mxu0 0.0
          %1475 = vmatpush.msra.mxu0 0.0
          %1476 = vmatpush.msra.mxu0 0.0
          %1477 = vmatpush.msra.mxu0 0.0
          %1478 = vmatpush.msra.mxu0 0.0
          %1479 = vmatpush.msra.mxu0 0.0
          %1480 = vmatpush.msra.mxu0 0.0
          %1481 = vmatpush.msra.mxu0 0.0
          %1482 = vmatpush.msra.mxu0 0.0
          %1483 = vmatpush.msra.mxu0 0.0
          %1484 = vmatpush.msra.mxu0 0.0
          %1485 = vmatpush.msra.mxu0 0.0
          %1486 = vmatpush.msra.mxu0 0.0
          %1487 = vmatpush.msra.mxu0 %v1466
          %1488 = vmatpush.msra.mxu0 %v1465
          %1489 = vmatmul.f32.gmra.mxu0 %v1471
          %v1490 = vpop.f32.mrf.mxu0
          %v1491 = vadd.f32 %v1469, %v1490
          %1492 = vdwg.mxu0
          %1493 = vst [vmem:[%s10] sm:$0xff] %v1491
        $region90: #{sentence_vae_forward.5} parent=77 // pred_fallthru
          _
        // Predicated region
        $region91: #{sentence_vae_forward.5} parent=77 // pred_check
          %p1494 = pneg %p229
        $region92: #{sentence_vae_forward.5} parent=77 // pred_check_branch
          %1496 = sbr.rel (%p1494) target = $region94
        $region93: #{sentence_vae_forward.5} parent=77 // pred_region
          _
        $region94: #{sentence_vae_forward.5} parent=77 // pred_fallthru
          _
        // Predicated region
        $region95: #{sentence_vae_forward.5} parent=77 // pred_check
          %p1497 = pneg %p250
        $region96: #{sentence_vae_forward.5} parent=77 // pred_check_branch
          %1499 = sbr.rel (%p1497) target = $region98
        $region97: #{sentence_vae_forward.5} parent=77 // pred_region
          _
        $region98: #{sentence_vae_forward.5} parent=77 // pred_fallthru
          _
        // Predicated region
        $region99: #{sentence_vae_forward.5} parent=77 // pred_check
          %p1500 = pneg %p229
        $region100: #{sentence_vae_forward.5} parent=77 // pred_check_branch
          %1502 = sbr.rel (%p1500) target = $region102
        $region101: #{sentence_vae_forward.5} parent=77 // pred_region
          _
        $region102: #{sentence_vae_forward.5} parent=77 // pred_fallthru
          _
        // Predicated region
        $region103: #{sentence_vae_forward.5} parent=77 // pred_check
          %p1503 = pneg %p250
        $region104: #{sentence_vae_forward.5} parent=77 // pred_check_branch
          %1505 = sbr.rel (%p1503) target = $region106
        $region105: #{sentence_vae_forward.5} parent=77 // pred_region
          _
        $region106: #{sentence_vae_forward.5} parent=77 // pred_fallthru
          _
      $region78: #{sentence_vae_forward.5} parent=5 // pred_fallthru
        _
      %p1506 = scmp.le.s32.totalorder 2, %s17
      // Predicated region
      $region107: #{sentence_vae_forward.5} parent=5 // pred_check
        %p1507 = pneg %p1506
      $region108: #{sentence_vae_forward.5} parent=5 // pred_check_branch
        %1509 = sbr.rel (%p1507) target = $region110
      $region109: #{sentence_vae_forward.5} parent=5 // pred_region
        %s1510 = ssub.s32 %s17, 2
      $region110: #{sentence_vae_forward.5} parent=5 // pred_fallthru
        _
    $region6: #{sentence_vae_forward.5} parent=1 // loop_footer
      %s21 = sadd.s32 1, %s17
    $region7: #{sentence_vae_forward.5} parent=1 // loop_footer_branch
      %16 = sbr.rel target = $region3
    $region8: #{sentence_vae_forward.5} parent=1 // loop_exit
      _

// kernel: sentence_vae_forward.6
$region0: #{sentence_vae_forward.6}
  #allocation0 [shape = 'u32[]', space=smem, size = 0x4, offset = 0x4, fixed_abs, tag = 'smem constant byte address 0x4 - core index']
  #allocation1 [shape = 'u32[72,128]{1,0:T(1,128)}', space=vmem, size = 0x9000, scoped, tag = 'internal scratch']
  #allocation2 [shape = 'f32[8,128]{1,0:T(8,128)}', space=vmem, size = 0x1000, scoped, tag = 'scratch operand']
  %s0 = inlined_call_operand.vmem [shape: bf16[16,8,768], index: 0, kind: input, shape index: {}]
  %s1 = inlined_call_operand.vmem [shape: s32[8,1], index: 1, kind: input, shape index: {}]
  %s2 = inlined_call_operand.vmem [shape: f32[8,128], index: 2, kind: input, shape index: {}]
  %s3 = inlined_call_operand.vmem [shape: bf16[128,384], index: 3, kind: input, shape index: {}]
  %s4 = inlined_call_operand.vmem [shape: f32[1,128], index: 4, kind: input, shape index: {}]
  %s5 = inlined_call_operand.vmem [shape: f32[8,16,128], index: 5, kind: output, shape index: {}]
  %s6 = sld [smem:[#allocation0]]
  $region117: #{sentence_vae_forward.6} parent=0
    _
  %s8 = ssub.s32 1, %s6
  %s9 = scalar_select 0, %s8, %s6
  $region1: #{sentence_vae_forward.6} parent=0
    #allocation3 [shape = 'u8[98304]{0}', space=vmem, size = 0x18000, scoped, tag = 'input window, operand 0']
    #allocation4 [shape = 'u8[65536]{0}', space=vmem, size = 0x10000, scoped, tag = 'output window, operand 0']
    loop: start=0, step=1, limit=4
    $region2: #{sentence_vae_forward.6} parent=1 // loop_pre_header
      _
    $region3: #{sentence_vae_forward.6} parent=1 // loop_header
      %s11 = sphi 0, %s15
      %p12 = scmp.ge.s32.totalorder %s11, 4
      %s21 = sphi 0, %s23
      %s24 = sphi 0, %s21
      %s25 = sphi 0, %s24
      %s41 = sphi 0, %s25
      %s45 = sphi 0, %s45
      %s47 = sphi 0, %s45
      %s48 = sphi 0, %s47
      %s62 = sphi 0, %s48
      %s66 = sphi 0, %s66
      %s68 = sphi 0, %s66
      %s69 = sphi 0, %s68
      %s83 = sphi 0, %s69
      %s87 = sphi 0, %s87
      %s89 = sphi 0, %s87
      %s90 = sphi 0, %s89
      %s104 = sphi 0, %s90
      %s108 = sphi 0, %s108
      %s110 = sphi 0, %s108
      %s111 = sphi 0, %s110
      %s125 = sphi 0, %s111
      %s131 = sphi 0, %s133
      %s134 = sphi 0, %s131
      %s135 = sphi 0, %s134
      %s151 = sphi 0, %s135
    $region4: #{sentence_vae_forward.6} parent=1 // loop_header_branch
      %14 = sbr.rel (%p12) target = $region8
    $region5: #{sentence_vae_forward.6} parent=1 // loop_body
      %s16 = ssub.s32 %s11, 1
      %s17 = ssub.s32 %s11, 2
      %s18 = sadd.s32 %s11, 1
      %s19 = ssub.s32 %s11, %s18
      %p20 = scmp.eq.s32.totalorder %s19, 0
      %s22 = sadd.s32 %s21, 1
      %s23 = scalar_select %p20, %s21, %s22
      %p26 = pneg %p20
      %p27 = scmp.eq.s32.totalorder %s11, 1
      %p28 = por %p26, %p27
      %p29 = scmp.ne.s32.totalorder %s21, %s24
      %p30 = scmp.eq.s32.totalorder %s11, 0
      %p31 = por %p29, %p30
      %p32 = scmp.ne.s32.totalorder %s21, %s24
      %p33 = scmp.eq.s32.totalorder %s16, 1
      %p34 = por %p32, %p33
      %p35 = scmp.ne.s32.totalorder %s24, %s25
      %p36 = scmp.eq.s32.totalorder %s16, 0
      %p37 = por %p35, %p36
      %p38 = scmp.ne.s32.totalorder %s24, %s25
      %p39 = scmp.eq.s32.totalorder %s17, 1
      %p40 = por %p38, %p39
      %p42 = scmp.ne.s32.totalorder %s25, %s41
      %p43 = scmp.eq.s32.totalorder %s17, 0
      %p44 = por %p42, %p43
      %s46 = sadd.s32 %s45, 1
      %p49 = scmp.eq.s32.totalorder %s11, 1
      %p50 = scmp.ne.s32.totalorder %s45, %s47
      %p51 = scmp.eq.s32.totalorder %s11, 0
      %p52 = por %p50, %p51
      %p53 = scmp.ne.s32.totalorder %s45, %s47
      %p54 = scmp.eq.s32.totalorder %s16, 1
      %p55 = por %p53, %p54
      %p56 = scmp.ne.s32.totalorder %s47, %s48
      %p57 = scmp.eq.s32.totalorder %s16, 0
      %p58 = por %p56, %p57
      %p59 = scmp.ne.s32.totalorder %s47, %s48
      %p60 = scmp.eq.s32.totalorder %s17, 1
      %p61 = por %p59, %p60
      %p63 = scmp.ne.s32.totalorder %s48, %s62
      %p64 = scmp.eq.s32.totalorder %s17, 0
      %p65 = por %p63, %p64
      %s67 = sadd.s32 %s66, 1
      %p70 = scmp.eq.s32.totalorder %s11, 1
      %p71 = scmp.ne.s32.totalorder %s66, %s68
      %p72 = scmp.eq.s32.totalorder %s11, 0
      %p73 = por %p71, %p72
      %p74 = scmp.ne.s32.totalorder %s66, %s68
      %p75 = scmp.eq.s32.totalorder %s16, 1
      %p76 = por %p74, %p75
      %p77 = scmp.ne.s32.totalorder %s68, %s69
      %p78 = scmp.eq.s32.totalorder %s16, 0
      %p79 = por %p77, %p78
      %p80 = scmp.ne.s32.totalorder %s68, %s69
      %p81 = scmp.eq.s32.totalorder %s17, 1
      %p82 = por %p80, %p81
      %p84 = scmp.ne.s32.totalorder %s69, %s83
      %p85 = scmp.eq.s32.totalorder %s17, 0
      %p86 = por %p84, %p85
      %s88 = sadd.s32 %s87, 1
      %p91 = scmp.eq.s32.totalorder %s11, 1
      %p92 = scmp.ne.s32.totalorder %s87, %s89
      %p93 = scmp.eq.s32.totalorder %s11, 0
      %p94 = por %p92, %p93
      %p95 = scmp.ne.s32.totalorder %s87, %s89
      %p96 = scmp.eq.s32.totalorder %s16, 1
      %p97 = por %p95, %p96
      %p98 = scmp.ne.s32.totalorder %s89, %s90
      %p99 = scmp.eq.s32.totalorder %s16, 0
      %p100 = por %p98, %p99
      %p101 = scmp.ne.s32.totalorder %s89, %s90
      %p102 = scmp.eq.s32.totalorder %s17, 1
      %p103 = por %p101, %p102
      %p105 = scmp.ne.s32.totalorder %s90, %s104
      %p106 = scmp.eq.s32.totalorder %s17, 0
      %p107 = por %p105, %p106
      %s109 = sadd.s32 %s108, 1
      %p112 = scmp.eq.s32.totalorder %s11, 1
      %p113 = scmp.ne.s32.totalorder %s108, %s110
      %p114 = scmp.eq.s32.totalorder %s11, 0
      %p115 = por %p113, %p114
      %p116 = scmp.ne.s32.totalorder %s108, %s110
      %p117 = scmp.eq.s32.totalorder %s16, 1
      %p118 = por %p116, %p117
      %p119 = scmp.ne.s32.totalorder %s110, %s111
      %p120 = scmp.eq.s32.totalorder %s16, 0
      %p121 = por %p119, %p120
      %p122 = scmp.ne.s32.totalorder %s110, %s111
      %p123 = scmp.eq.s32.totalorder %s17, 1
      %p124 = por %p122, %p123
      %p126 = scmp.ne.s32.totalorder %s111, %s125
      %p127 = scmp.eq.s32.totalorder %s17, 0
      %p128 = por %p126, %p127
      %s129 = ssub.s32 %s11, %s18
      %p130 = scmp.eq.s32.totalorder %s129, 0
      %s132 = sadd.s32 %s131, 1
      %s133 = scalar_select %p130, %s131, %s132
      %p136 = pneg %p130
      %p137 = scmp.eq.s32.totalorder %s11, 1
      %p138 = por %p136, %p137
      %p139 = scmp.ne.s32.totalorder %s131, %s134
      %p140 = scmp.eq.s32.totalorder %s11, 0
      %p141 = por %p139, %p140
      %p142 = scmp.ne.s32.totalorder %s131, %s134
      %p143 = scmp.eq.s32.totalorder %s16, 1
      %p144 = por %p142, %p143
      %p145 = scmp.ne.s32.totalorder %s134, %s135
      %p146 = scmp.eq.s32.totalorder %s16, 0
      %p147 = por %p145, %p146
      %p148 = scmp.ne.s32.totalorder %s134, %s135
      %p149 = scmp.eq.s32.totalorder %s17, 1
      %p150 = por %p148, %p149
      %p152 = scmp.ne.s32.totalorder %s135, %s151
      %p153 = scmp.eq.s32.totalorder %s17, 0
      %p154 = por %p152, %p153
      %p155 = scmp.le.s32.totalorder 1, %s11
      %p156 = scmp.lt.s32.totalorder %s11, 3
      %p157 = pnand %p155, %p156
      %p158 = pneg %p157
      // Predicated region
      $region9: #{sentence_vae_forward.6} parent=5 // pred_check
        _
      $region10: #{sentence_vae_forward.6} parent=5 // pred_check_branch
        %160 = sbr.rel (%p157) target = $region12
      $region11: #{sentence_vae_forward.6} parent=5 // pred_region
        %s161 = ssub.s32 %s11, 1
        // Predicated region
        $region13: #{sentence_vae_forward.6} parent=11 // pred_check
          %p162 = pneg %p58
        $region14: #{sentence_vae_forward.6} parent=11 // pred_check_branch
          %164 = sbr.rel (%p162) target = $region16
        $region15: #{sentence_vae_forward.6} parent=11 // pred_region
          _
        $region16: #{sentence_vae_forward.6} parent=11 // pred_fallthru
          _
        // Predicated region
        $region17: #{sentence_vae_forward.6} parent=11 // pred_check
          %p165 = pneg %p79
        $region18: #{sentence_vae_forward.6} parent=11 // pred_check_branch
          %167 = sbr.rel (%p165) target = $region20
        $region19: #{sentence_vae_forward.6} parent=11 // pred_region
          _
        $region20: #{sentence_vae_forward.6} parent=11 // pred_fallthru
          _
        // Predicated region
        $region21: #{sentence_vae_forward.6} parent=11 // pred_check
          %p168 = pneg %p100
        $region22: #{sentence_vae_forward.6} parent=11 // pred_check_branch
          %170 = sbr.rel (%p168) target = $region24
        $region23: #{sentence_vae_forward.6} parent=11 // pred_region
          _
        $region24: #{sentence_vae_forward.6} parent=11 // pred_fallthru
          _
        // Predicated region
        $region25: #{sentence_vae_forward.6} parent=11 // pred_check
          %p171 = pneg %p121
        $region26: #{sentence_vae_forward.6} parent=11 // pred_check_branch
          %173 = sbr.rel (%p171) target = $region28
        $region27: #{sentence_vae_forward.6} parent=11 // pred_region
          _
        $region28: #{sentence_vae_forward.6} parent=11 // pred_fallthru
          _
      $region12: #{sentence_vae_forward.6} parent=5 // pred_fallthru
        _
      %p174 = scmp.lt.s32.totalorder %s11, 2
      // Predicated region
      $region29: #{sentence_vae_forward.6} parent=5 // pred_check
        %p175 = pneg %p174
      $region30: #{sentence_vae_forward.6} parent=5 // pred_check_branch
        %177 = sbr.rel (%p175) target = $region32
      $region31: #{sentence_vae_forward.6} parent=5 // pred_region
        // Predicated region
        $region33: #{sentence_vae_forward.6} parent=31 // pred_check
          %p178 = pneg %p31
        $region34: #{sentence_vae_forward.6} parent=31 // pred_check_branch
          %180 = sbr.rel (%p178) target = $region36
        $region35: #{sentence_vae_forward.6} parent=31 // pred_region
          %s181 = sand.u32 %s21, 1
          %s182 = sand.u32 %s21, 1
          %s183 = smul.addr %s182, 96
          %s184 = scalar_lea.vmem [#allocation3], %s183
          %s185 = smul.u32 8, %s11
          %s186 = smul.addr %s185, 6
          %s187 = sadd.s32 3, %s186
          %s188 = smul.addr %s187, 4
          %s189 = scalar_lea.vmem %s0, %s188
          // Predicated region
          $region37: #{sentence_vae_forward.6} parent=35 // pred_check
            _
          $region38: #{sentence_vae_forward.6} parent=35 // pred_check_branch
            %191 = sbr.rel (0) target = $region40
          $region39: #{sentence_vae_forward.6} parent=35 // pred_region
            // Predicated region
            $region41: #{sentence_vae_forward.6} parent=39 // pred_check
              _
            $region42: #{sentence_vae_forward.6} parent=39 // pred_check_branch
              %193 = sbr.rel (0) target = $region44
            $region43: #{sentence_vae_forward.6} parent=39 // pred_region
              %s194 = scalar_lea.vmem %s189, 8
              %s195 = scalar_lea.vmem %s184, 8 [#allocation3]
              loop: start=0, step=1, limit=1
              $region45: #{sentence_vae_forward.6} parent=43 // loop_pre_header
                _
              $region46: #{sentence_vae_forward.6} parent=43 // loop_header
                %s197 = sphi 0, %s201
                %p198 = scmp.ge.s32.totalorder %s197, 1
                %s202 = sphi %s189, %s189
                %s203 = sphi %s184, %s184
              $region47: #{sentence_vae_forward.6} parent=43 // loop_header_branch
                %200 = sbr.rel (%p198) target = $region51
              $region48: #{sentence_vae_forward.6} parent=43 // loop_body
                %v204 = vld [vmem:[%s202] sm:$0xff]
                %205 = vst [vmem:[%s203] sm:$0xff] %v204
                %v206 = vld [vmem:[%s202 + $0x18] sm:$0xff]
                %207 = vst [vmem:[%s203 + $0xc] sm:$0xff] %v206
                %v208 = vld [vmem:[%s202 + $0x30] sm:$0xff]
                %209 = vst [vmem:[%s203 + $0x18] sm:$0xff] %v208
                %v210 = vld [vmem:[%s202 + $0x48] sm:$0xff]
                %211 = vst [vmem:[%s203 + $0x24] sm:$0xff] %v210
                %v212 = vld [vmem:[%s202 + $0x60] sm:$0xff]
                %213 = vst [vmem:[%s203 + $0x30] sm:$0xff] %v212
                %v214 = vld [vmem:[%s202 + $0x78] sm:$0xff]
                %215 = vst [vmem:[%s203 + $0x3c] sm:$0xff] %v214
                %v216 = vld [vmem:[%s202 + $0x90] sm:$0xff]
                %217 = vst [vmem:[%s203 + $0x48] sm:$0xff] %v216
                %v218 = vld [vmem:[%s202 + $0xa8] sm:$0xff]
                %219 = vst [vmem:[%s203 + $0x54] sm:$0xff] %v218
              $region49: #{sentence_vae_forward.6} parent=43 // loop_footer
                %s201 = sadd.s32 1, %s197
              $region50: #{sentence_vae_forward.6} parent=43 // loop_footer_branch
                %196 = sbr.rel target = $region46
              $region51: #{sentence_vae_forward.6} parent=43 // loop_exit
                _
              %s221 = ssub.s32 16, 1
              loop: start=0, step=1, limit=1
              $region52: #{sentence_vae_forward.6} parent=43 // loop_pre_header
                _
              $region53: #{sentence_vae_forward.6} parent=43 // loop_header
                %s223 = sphi 0, %s227
                %p224 = scmp.ge.s32.totalorder %s223, 1
                %s228 = sphi %s194, %s194
                %s229 = sphi %s195, %s195
              $region54: #{sentence_vae_forward.6} parent=43 // loop_header_branch
                %226 = sbr.rel (%p224) target = $region58
              $region55: #{sentence_vae_forward.6} parent=43 // loop_body
                %v230 = vld [vmem:[%s228] sm:%s221]
                %231 = vst [vmem:[%s229] sm:%s221] %v230
                %v232 = vld [vmem:[%s228 + $0x18] sm:%s221]
                %233 = vst [vmem:[%s229 + $0xc] sm:%s221] %v232
                %v234 = vld [vmem:[%s228 + $0x30] sm:%s221]
                %235 = vst [vmem:[%s229 + $0x18] sm:%s221] %v234
                %v236 = vld [vmem:[%s228 + $0x48] sm:%s221]
                %237 = vst [vmem:[%s229 + $0x24] sm:%s221] %v236
                %v238 = vld [vmem:[%s228 + $0x60] sm:%s221]
                %239 = vst [vmem:[%s229 + $0x30] sm:%s221] %v238
                %v240 = vld [vmem:[%s228 + $0x78] sm:%s221]
                %241 = vst [vmem:[%s229 + $0x3c] sm:%s221] %v240
                %v242 = vld [vmem:[%s228 + $0x90] sm:%s221]
                %243 = vst [vmem:[%s229 + $0x48] sm:%s221] %v242
                %v244 = vld [vmem:[%s228 + $0xa8] sm:%s221]
                %245 = vst [vmem:[%s229 + $0x54] sm:%s221] %v244
              $region56: #{sentence_vae_forward.6} parent=43 // loop_footer
                %s227 = sadd.s32 1, %s223
              $region57: #{sentence_vae_forward.6} parent=43 // loop_footer_branch
                %222 = sbr.rel target = $region53
              $region58: #{sentence_vae_forward.6} parent=43 // loop_exit
                _
            $region44: #{sentence_vae_forward.6} parent=39 // pred_fallthru
              _
          $region40: #{sentence_vae_forward.6} parent=35 // pred_fallthru
            _
          %246 = vnop
        $region36: #{sentence_vae_forward.6} parent=31 // pred_fallthru
          _
      $region32: #{sentence_vae_forward.6} parent=5 // pred_fallthru
        _
      %p247 = scmp.le.s32.totalorder 1, %s11
      %p248 = scmp.lt.s32.totalorder %s11, 3
      %p249 = pnand %p247, %p248
      %p250 = pneg %p249
      // Predicated region
      $region59: #{sentence_vae_forward.6} parent=5 // pred_check
        _
      $region60: #{sentence_vae_forward.6} parent=5 // pred_check_branch
        %252 = sbr.rel (%p249) target = $region62
      $region61: #{sentence_vae_forward.6} parent=5 // pred_region
        %s253 = ssub.s32 %s11, 1
        %s254 = sand.u32 %s24, 1
        %s255 = sand.u32 %s24, 1
        %s256 = smul.addr %s255, 96
        %s257 = scalar_lea.vmem [#allocation3], %s256
        // Predicated region
        $region63: #{sentence_vae_forward.6} parent=61 // pred_check
          %p258 = pneg %p37
        $region64: #{sentence_vae_forward.6} parent=61 // pred_check_branch
          %260 = sbr.rel (%p258) target = $region66
        $region65: #{sentence_vae_forward.6} parent=61 // pred_region
          _
        $region66: #{sentence_vae_forward.6} parent=61 // pred_fallthru
          _
        %s261 = sand.u32 %s24, 1
        %s262 = sand.u32 %s24, 1
        %s263 = smul.addr %s262, 96
        %s264 = scalar_lea.vmem [#allocation3], %s263
        %p265 = pneg %p37
        %p266 = pneg %p34
        %p267 = pneg %p58
        %p268 = pneg %p55
        %p269 = pneg %p79
        %p270 = pneg %p76
        %p271 = pneg %p100
        %p272 = pneg %p97
        %p273 = pneg %p121
        %p274 = pneg %p118
        %p275 = pneg %p147
        %p276 = pneg %p144
        %s277 = sand.u32 %s134, 1
        %s278 = sand.u32 %s134, 1
        %s279 = smul.addr %s278, 64
        %s280 = scalar_lea.vmem [#allocation4], %s279
        %s281 = smul.u32 8, %s16
        %p282 = scmp.eq.s32.totalorder %s16, 0
        // Predicated region
        $region67: #{sentence_vae_forward.6} parent=61 // pred_check
          %p283 = pneg %p282
        $region68: #{sentence_vae_forward.6} parent=61 // pred_check_branch
          %285 = sbr.rel (%p283) target = $region70
        $region69: #{sentence_vae_forward.6} parent=61 // pred_region
          %v286 = vld [vmem:[%s2] sm:$0xff]
          %287 = vst [vmem:[#allocation2] sm:$0xff] %v286
        $region70: #{sentence_vae_forward.6} parent=61 // pred_fallthru
          _
        %v288 = vld [vmem:[%s1] sm:$0xff]
        %v289 = vld [vmem:[%s3] sm:$0xff]
        %v290 = vld [vmem:[%s3 + $0x8] sm:$0xf]
        %v291 = vld [vmem:[%s3 + $0xc] sm:$0xff]
        %v292 = vld [vmem:[%s3 + $0x14] sm:$0xf]
        %v293 = vld [vmem:[%s3 + $0x18] sm:$0xff]
        %v294 = vld [vmem:[%s3 + $0x20] sm:$0xf]
        %v295 = vld [vmem:[%s3 + $0x24] sm:$0xff]
        %v296 = vld [vmem:[%s3 + $0x2c] sm:$0xf]
        %v297 = vld [vmem:[%s3 + $0x30] sm:$0xff]
        %v298 = vld [vmem:[%s3 + $0x38] sm:$0xf]
        %v299 = vld [vmem:[%s3 + $0x3c] sm:$0xff]
        %v300 = vld [vmem:[%s3 + $0x44] sm:$0xf]
        %v301 = vld [vmem:[%s3 + $0x48] sm:$0xff]
        %v302 = vld [vmem:[%s3 + $0x50] sm:$0xf]
        %v303 = vld [vmem:[%s3 + $0x54] sm:$0xff]
        %v304 = vld [vmem:[%s3 + $0x5c] sm:$0xf]
        %v305 = vld [vmem:[%s3 + $0x60] sm:$0xff]
        %v306 = vld [vmem:[%s3 + $0x68] sm:$0xf]
        %v307 = vld [vmem:[%s3 + $0x6c] sm:$0xff]
        %v308 = vld [vmem:[%s3 + $0x74] sm:$0xf]
        %v309 = vld [vmem:[%s3 + $0x78] sm:$0xff]
        %v310 = vld [vmem:[%s3 + $0x80] sm:$0xf]
        %v311 = vld [vmem:[%s3 + $0x84] sm:$0xff]
        %v312 = vld [vmem:[%s3 + $0x8c] sm:$0xf]
        %v313 = vld [vmem:[%s3 + $0x90] sm:$0xff]
        %v314 = vld [vmem:[%s3 + $0x98] sm:$0xf]
        %v315 = vld [vmem:[%s3 + $0x9c] sm:$0xff]
        %v316 = vld [vmem:[%s3 + $0xa4] sm:$0xf]
        %v317 = vld [vmem:[%s3 + $0xa8] sm:$0xff]
        %v318 = vld [vmem:[%s3 + $0xb0] sm:$0xf]
        %v319 = vld [vmem:[%s3 + $0xb4] sm:$0xff]
        %v320 = vld [vmem:[%s3 + $0xbc] sm:$0xf]
        %v321 = vld [vmem:[%s4] sm:$0x1]
        %v323 = vperm.slane %v321, 0
        %s325 = smul.u32 %s16, 8
        %v326 = vld [vmem:[#allocation2] sm:$0xff]
        %v327 = vld [vmem:[%s257] sm:$0xff]
        %v328 = vld [vmem:[%s257 + $0x8] sm:$0xf]
        %v329 = vunpack.c.l.bf16 %v327
        %v330 = vunpack.c.h.bf16 %v327
        %v331 = vunpack.c.l.bf16 %v328
        %v332 = vpack.c.bf16 %v326, %v326
        %v365 = vunpack.c.l.b16 %v289
        %v366 = vunpack.c.h.b16 %v289
        %v367 = vunpack.c.l.b16 %v290
        %v368 = vunpack.c.l.b16 %v291
        %v369 = vunpack.c.h.b16 %v291
        %v370 = vunpack.c.l.b16 %v292
        %v371 = vunpack.c.l.b16 %v293
        %v372 = vunpack.c.h.b16 %v293
        %v373 = vunpack.c.l.b16 %v294
        %v374 = vunpack.c.l.b16 %v295
        %v375 = vunpack.c.h.b16 %v295
        %v376 = vunpack.c.l.b16 %v296
        %v377 = vunpack.c.l.b16 %v297
        %v378 = vunpack.c.h.b16 %v297
        %v379 = vunpack.c.l.b16 %v298
        %v380 = vunpack.c.l.b16 %v299
        %v381 = vunpack.c.h.b16 %v299
        %v382 = vunpack.c.l.b16 %v300
        %v383 = vunpack.c.l.b16 %v301
        %v384 = vunpack.c.h.b16 %v301
        %v385 = vunpack.c.l.b16 %v302
        %v386 = vunpack.c.l.b16 %v303
        %v387 = vunpack.c.h.b16 %v303
        %v388 = vunpack.c.l.b16 %v304
        %v389 = vunpack.c.l.b16 %v305
        %v390 = vunpack.c.h.b16 %v305
        %v391 = vunpack.c.l.b16 %v306
        %v392 = vunpack.c.l.b16 %v307
        %v393 = vunpack.c.h.b16 %v307
        %v394 = vunpack.c.l.b16 %v308
        %v395 = vunpack.c.l.b16 %v309
        %v396 = vunpack.c.h.b16 %v309
        %v397 = vunpack.c.l.b16 %v310
        %v398 = vunpack.c.l.b16 %v311
        %v399 = vunpack.c.h.b16 %v311
        %v400 = vunpack.c.l.b16 %v312
        %v401 = vunpack.c.l.b16 %v313
        %v402 = vunpack.c.h.b16 %v313
        %v403 = vunpack.c.l.b16 %v314
        %v404 = vunpack.c.l.b16 %v315
        %v405 = vunpack.c.h.b16 %v315
        %v406 = vunpack.c.l.b16 %v316
        %v407 = vunpack.c.l.b16 %v317
        %v408 = vunpack.c.h.b16 %v317
        %v409 = vunpack.c.l.b16 %v318
        %v410 = vunpack.c.l.b16 %v319
        %v411 = vunpack.c.h.b16 %v319
        %v412 = vunpack.c.l.b16 %v320
        %v413 = vpack.c.b16 %v368, %v365
        %v414 = vpack.c.b16 %v369, %v366
        %v415 = vpack.c.b16 %v370, %v367
        %v416 = vpack.c.b16 %v374, %v371
        %v417 = vpack.c.b16 %v375, %v372
        %v418 = vpack.c.b16 %v376, %v373
        %v419 = vpack.c.b16 %v380, %v377
        %v420 = vpack.c.b16 %v381, %v378
        %v421 = vpack.c.b16 %v382, %v379
        %v422 = vpack.c.b16 %v386, %v383
        %v423 = vpack.c.b16 %v387, %v384
        %v424 = vpack.c.b16 %v388, %v385
        %v425 = vpack.c.b16 %v392, %v389
        %v426 = vpack.c.b16 %v393, %v390
        %v427 = vpack.c.b16 %v394, %v391
        %v428 = vpack.c.b16 %v398, %v395
        %v429 = vpack.c.b16 %v399, %v396
        %v430 = vpack.c.b16 %v400, %v397
        %v431 = vpack.c.b16 %v404, %v401
        %v432 = vpack.c.b16 %v405, %v402
        %v433 = vpack.c.b16 %v406, %v403
        %v434 = vpack.c.b16 %v410, %v407
        %v435 = vpack.c.b16 %v411, %v408
        %v436 = vpack.c.b16 %v412, %v409
        %461 = vmatpush.bf16.msra.mxu0 %v434
        %462 = vmatpush.bf16.msra.mxu0 %v431
        %463 = vmatpush.bf16.msra.mxu0 %v428
        %464 = vmatpush.bf16.msra.mxu0 %v425
        %465 = vmatpush.bf16.msra.mxu0 %v422
        %466 = vmatpush.bf16.msra.mxu0 %v419
        %467 = vmatpush.bf16.msra.mxu0 %v416
        %468 = vmatpush.bf16.msra.mxu0 %v413
        %469 = vmatmul.bf16.gmra.mxu0 %v332
        %v470 = vpop.f32.mrf.mxu0
        %v471 = vadd.f32 0.0, %v470
        %v472 = vpop.f32.mrf.mxu0
        %473 = vdwg.mxu0
        %474 = vmatpush.bf16.msra.mxu0 %v435
        %475 = vmatpush.bf16.msra.mxu0 %v432
        %476 = vmatpush.bf16.msra.mxu0 %v429
        %477 = vmatpush.bf16.msra.mxu0 %v426
        %478 = vmatpush.bf16.msra.mxu0 %v423
        %479 = vmatpush.bf16.msra.mxu0 %v420
        %480 = vmatpush.bf16.msra.mxu0 %v417
        %481 = vmatpush.bf16.msra.mxu0 %v414
        %482 = vmatmul.bf16.gmra.mxu0 %v332
        %v483 = vpop.f32.mrf.mxu0
        %v484 = vadd.f32 0.0, %v483
        %v485 = vpop.f32.mrf.mxu0
        %486 = vdwg.mxu0
        %487 = vmatpush.bf16.msra.mxu0 %v436
        %488 = vmatpush.bf16.msra.mxu0 %v433
        %489 = vmatpush.bf16.msra.mxu0 %v430
        %490 = vmatpush.bf16.msra.mxu0 %v427
        %491 = vmatpush.bf16.msra.mxu0 %v424
        %492 = vmatpush.bf16.msra.mxu0 %v421
        %493 = vmatpush.bf16.msra.mxu0 %v418
        %494 = vmatpush.bf16.msra.mxu0 %v415
        %495 = vmatmul.bf16.gmra.mxu0 %v332
        %v496 = vpop.f32.mrf.mxu0
        %v497 = vadd.f32 0.0, %v496
        %v498 = vpop.f32.mrf.mxu0
        %499 = vdwg.mxu0
        %v500 = vadd.f32 %v329, %v471
        %v501 = vxor.u32 %v500, 2147483648
        %v502 = vmul.f32 %v501, 1.442695
        %v503 = vpow.pop %v502
        %v504 = vadd.f32 %v503, 1.0
        %v505 = vrcp.pop %v504
        %v506 = vmul.f32 %v504, %v505
        %v507 = vsub.f32 1.0, %v506
        %v508 = vmul.f32 %v505, %v507
        %v509 = vadd.f32 %v505, %v508
        %vm510 = vweird.f32 %v504
        %vm511 = vweird.f32 %v505
        %vm512 = vmor %vm510, %vm511
        %v513 = vsel %vm512, %v505, %v509
        %v514 = vand.u32 2147483647, %v504
        %vm515 = vcmp.eq.f32.partialorder %v514, 8.507059e+37
        %v516 = vand.u32 %v504, 2147483648
        %v517 = vor.u32 1.1754944e-38, %v516
        %v518 = vsel %vm515, %v517, %v513
        %v519 = vmul.f32 1.0, %v518
        %v520 = vadd.f32 %v330, %v484
        %v521 = vxor.u32 %v520, 2147483648
        %v522 = vmul.f32 %v521, 1.442695
        %v523 = vpow.pop %v522
        %v524 = vadd.f32 %v523, 1.0
        %v525 = vrcp.pop %v524
        %v526 = vmul.f32 %v524, %v525
        %v527 = vsub.f32 1.0, %v526
        %v528 = vmul.f32 %v525, %v527
        %v529 = vadd.f32 %v525, %v528
        %vm530 = vweird.f32 %v524
        %vm531 = vweird.f32 %v525
        %vm532 = vmor %vm530, %vm531
        %v533 = vsel %vm532, %v525, %v529
        %v534 = vand.u32 2147483647, %v524
        %vm535 = vcmp.eq.f32.partialorder %v534, 8.507059e+37
        %v536 = vand.u32 %v524, 2147483648
        %v537 = vor.u32 1.1754944e-38, %v536
        %v538 = vsel %vm535, %v537, %v533
        %v539 = vmul.f32 1.0, %v538
        %v540 = vadd.f32 %v497, %v323
        %v541 = vmul.f32 %v519, %v540
        %v542 = vadd.f32 %v331, %v541
        %v543 = vtanh.pop %v542
        %v544 = vsub.f32 1.0, %v539
        %v545 = vmul.f32 %v544, %v543
        %v546 = vmul.f32 %v539, %v326
        %v547 = vadd.f32 %v545, %v546
        %v548 = vstv %s325
        %vm549 = vcmp.gt.s32.totalorder %v288, %v548
        %v550 = vsel %vm549, 1, 0
        %551 = vset.pattern.permute.xlu0 0
        %552 = vperm.xlu0 %551, %v550
        %v553 = vpop.permute.xlu0 %552
        %vm554 = vcmp.eq.s32.totalorder %v553, 1
        %v555 = vsel %vm554, %v547, 0.0
        %v557 = vrot.slane %v555, 1
        %v558 = vrot.slane %v555, 2
        %v559 = vrot.slane %v555, 3
        %v560 = vrot.slane %v555, 4
        %v561 = vrot.slane %v555, 5
        %v562 = vrot.slane %v555, 6
        %v563 = vrot.slane %v555, 7
        %571 = vst [vmem:[%s280] sm:$0x1] %v555
        %572 = vst [vmem:[%s280 + $0x8] sm:$0x1] %v557
        %573 = vst [vmem:[%s280 + $0x10] sm:$0x1] %v558
        %574 = vst [vmem:[%s280 + $0x18] sm:$0x1] %v559
        %575 = vst [vmem:[%s280 + $0x20] sm:$0x1] %v560
        %576 = vst [vmem:[%s280 + $0x28] sm:$0x1] %v561
        %577 = vst [vmem:[%s280 + $0x30] sm:$0x1] %v562
        %578 = vst [vmem:[%s280 + $0x38] sm:$0x1] %v563
        %v579 = vsel %vm554, %v547, %v326
        %s580 = scalar_lea.vmem %s257, 12 [#allocation3]
        %v581 = vld [vmem:[%s580] sm:$0xff]
        %v582 = vld [vmem:[%s580 + $0x8] sm:$0xf]
        %v583 = vunpack.c.l.bf16 %v581
        %v584 = vunpack.c.h.bf16 %v581
        %v585 = vunpack.c.l.bf16 %v582
        %v586 = vpack.c.bf16 %v579, %v579
        %587 = vmatpush.bf16.msra.mxu0 %v434
        %588 = vmatpush.bf16.msra.mxu0 %v431
        %589 = vmatpush.bf16.msra.mxu0 %v428
        %590 = vmatpush.bf16.msra.mxu0 %v425
        %591 = vmatpush.bf16.msra.mxu0 %v422
        %592 = vmatpush.bf16.msra.mxu0 %v419
        %593 = vmatpush.bf16.msra.mxu0 %v416
        %594 = vmatpush.bf16.msra.mxu0 %v413
        %595 = vmatmul.bf16.gmra.mxu0 %v586
        %v596 = vpop.f32.mrf.mxu0
        %v597 = vadd.f32 0.0, %v596
        %v598 = vpop.f32.mrf.mxu0
        %599 = vdwg.mxu0
        %600 = vmatpush.bf16.msra.mxu0 %v435
        %601 = vmatpush.bf16.msra.mxu0 %v432
        %602 = vmatpush.bf16.msra.mxu0 %v429
        %603 = vmatpush.bf16.msra.mxu0 %v426
        %604 = vmatpush.bf16.msra.mxu0 %v423
        %605 = vmatpush.bf16.msra.mxu0 %v420
        %606 = vmatpush.bf16.msra.mxu0 %v417
        %607 = vmatpush.bf16.msra.mxu0 %v414
        %608 = vmatmul.bf16.gmra.mxu0 %v586
        %v609 = vpop.f32.mrf.mxu0
        %v610 = vadd.f32 0.0, %v609
        %v611 = vpop.f32.mrf.mxu0
        %612 = vdwg.mxu0
        %613 = vmatpush.bf16.msra.mxu0 %v436
        %614 = vmatpush.bf16.msra.mxu0 %v433
        %615 = vmatpush.bf16.msra.mxu0 %v430
        %616 = vmatpush.bf16.msra.mxu0 %v427
        %617 = vmatpush.bf16.msra.mxu0 %v424
        %618 = vmatpush.bf16.msra.mxu0 %v421
        %619 = vmatpush.bf16.msra.mxu0 %v418
        %620 = vmatpush.bf16.msra.mxu0 %v415
        %621 = vmatmul.bf16.gmra.mxu0 %v586
        %v622 = vpop.f32.mrf.mxu0
        %v623 = vadd.f32 0.0, %v622
        %v624 = vpop.f32.mrf.mxu0
        %625 = vdwg.mxu0
        %v626 = vadd.f32 %v583, %v597
        %v627 = vxor.u32 %v626, 2147483648
        %v628 = vmul.f32 %v627, 1.442695
        %v629 = vpow.pop %v628
        %v630 = vadd.f32 %v629, 1.0
        %v631 = vrcp.pop %v630
        %v632 = vmul.f32 %v630, %v631
        %v633 = vsub.f32 1.0, %v632
        %v634 = vmul.f32 %v631, %v633
        %v635 = vadd.f32 %v631, %v634
        %vm636 = vweird.f32 %v630
        %vm637 = vweird.f32 %v631
        %vm638 = vmor %vm636, %vm637
        %v639 = vsel %vm638, %v631, %v635
        %v640 = vand.u32 2147483647, %v630
        %vm641 = vcmp.eq.f32.partialorder %v640, 8.507059e+37
        %v642 = vand.u32 %v630, 2147483648
        %v643 = vor.u32 1.1754944e-38, %v642
        %v644 = vsel %vm641, %v643, %v639
        %v645 = vmul.f32 1.0, %v644
        %v646 = vadd.f32 %v584, %v610
        %v647 = vxor.u32 %v646, 2147483648
        %v648 = vmul.f32 %v647, 1.442695
        %v649 = vpow.pop %v648
        %v650 = vadd.f32 %v649, 1.0
        %v651 = vrcp.pop %v650
        %v652 = vmul.f32 %v650, %v651
        %v653 = vsub.f32 1.0, %v652
        %v654 = vmul.f32 %v651, %v653
        %v655 = vadd.f32 %v651, %v654
        %vm656 = vweird.f32 %v650
        %vm657 = vweird.f32 %v651
        %vm658 = vmor %vm656, %vm657
        %v659 = vsel %vm658, %v651, %v655
        %v660 = vand.u32 2147483647, %v650
        %vm661 = vcmp.eq.f32.partialorder %v660, 8.507059e+37
        %v662 = vand.u32 %v650, 2147483648
        %v663 = vor.u32 1.1754944e-38, %v662
        %v664 = vsel %vm661, %v663, %v659
        %v665 = vmul.f32 1.0, %v664
        %v666 = vadd.f32 %v623, %v323
        %v667 = vmul.f32 %v645, %v666
        %v668 = vadd.f32 %v585, %v667
        %v669 = vtanh.pop %v668
        %v670 = vsub.f32 1.0, %v665
        %v671 = vmul.f32 %v670, %v669
        %v672 = vmul.f32 %v665, %v579
        %v673 = vadd.f32 %v671, %v672
        %s674 = sadd.s32 %s325, 1
        %v675 = vstv %s674
        %vm676 = vcmp.gt.s32.totalorder %v288, %v675
        %v677 = vsel %vm676, 1, 0
        %678 = vset.pattern.permute.xlu0 0
        %679 = vperm.xlu0 %678, %v677
        %v680 = vpop.permute.xlu0 %679
        %vm681 = vcmp.eq.s32.totalorder %v680, 1
        %v682 = vsel %vm681, %v673, 0.0
        %v684 = vrot.slane %v682, 1
        %v685 = vrot.slane %v682, 2
        %v686 = vrot.slane %v682, 3
        %v687 = vrot.slane %v682, 4
        %v688 = vrot.slane %v682, 5
        %v689 = vrot.slane %v682, 6
        %v690 = vrot.slane %v682, 7
        %698 = vst [vmem:[%s280 + $0x1] sm:$0x1] %v682
        %699 = vst [vmem:[%s280 + $0x9] sm:$0x1] %v684
        %700 = vst [vmem:[%s280 + $0x11] sm:$0x1] %v685
        %701 = vst [vmem:[%s280 + $0x19] sm:$0x1] %v686
        %702 = vst [vmem:[%s280 + $0x21] sm:$0x1] %v687
        %703 = vst [vmem:[%s280 + $0x29] sm:$0x1] %v688
        %704 = vst [vmem:[%s280 + $0x31] sm:$0x1] %v689
        %705 = vst [vmem:[%s280 + $0x39] sm:$0x1] %v690
        %v706 = vsel %vm681, %v673, %v579
        %s707 = scalar_lea.vmem %s257, 24 [#allocation3]
        %v708 = vld [vmem:[%s707] sm:$0xff]
        %v709 = vld [vmem:[%s707 + $0x8] sm:$0xf]
        %v710 = vunpack.c.l.bf16 %v708
        %v711 = vunpack.c.h.bf16 %v708
        %v712 = vunpack.c.l.bf16 %v709
        %v713 = vpack.c.bf16 %v706, %v706
        %714 = vmatpush.bf16.msra.mxu0 %v434
        %715 = vmatpush.bf16.msra.mxu0 %v431
        %716 = vmatpush.bf16.msra.mxu0 %v428
        %717 = vmatpush.bf16.msra.mxu0 %v425
        %718 = vmatpush.bf16.msra.mxu0 %v422
        %719 = vmatpush.bf16.msra.mxu0 %v419
        %720 = vmatpush.bf16.msra.mxu0 %v416
        %721 = vmatpush.bf16.msra.mxu0 %v413
        %722 = vmatmul.bf16.gmra.mxu0 %v713
        %v723 = vpop.f32.mrf.mxu0
        %v724 = vadd.f32 0.0, %v723
        %v725 = vpop.f32.mrf.mxu0
        %726 = vdwg.mxu0
        %727 = vmatpush.bf16.msra.mxu0 %v435
        %728 = vmatpush.bf16.msra.mxu0 %v432
        %729 = vmatpush.bf16.msra.mxu0 %v429
        %730 = vmatpush.bf16.msra.mxu0 %v426
        %731 = vmatpush.bf16.msra.mxu0 %v423
        %732 = vmatpush.bf16.msra.mxu0 %v420
        %733 = vmatpush.bf16.msra.mxu0 %v417
        %734 = vmatpush.bf16.msra.mxu0 %v414
        %735 = vmatmul.bf16.gmra.mxu0 %v713
        %v736 = vpop.f32.mrf.mxu0
        %v737 = vadd.f32 0.0, %v736
        %v738 = vpop.f32.mrf.mxu0
        %739 = vdwg.mxu0
        %740 = vmatpush.bf16.msra.mxu0 %v436
        %741 = vmatpush.bf16.msra.mxu0 %v433
        %742 = vmatpush.bf16.msra.mxu0 %v430
        %743 = vmatpush.bf16.msra.mxu0 %v427
        %744 = vmatpush.bf16.msra.mxu0 %v424
        %745 = vmatpush.bf16.msra.mxu0 %v421
        %746 = vmatpush.bf16.msra.mxu0 %v418
        %747 = vmatpush.bf16.msra.mxu0 %v415
        %748 = vmatmul.bf16.gmra.mxu0 %v713
        %v749 = vpop.f32.mrf.mxu0
        %v750 = vadd.f32 0.0, %v749
        %v751 = vpop.f32.mrf.mxu0
        %752 = vdwg.mxu0
        %v753 = vadd.f32 %v710, %v724
        %v754 = vxor.u32 %v753, 2147483648
        %v755 = vmul.f32 %v754, 1.442695
        %v756 = vpow.pop %v755
        %v757 = vadd.f32 %v756, 1.0
        %v758 = vrcp.pop %v757
        %v759 = vmul.f32 %v757, %v758
        %v760 = vsub.f32 1.0, %v759
        %v761 = vmul.f32 %v758, %v760
        %v762 = vadd.f32 %v758, %v761
        %vm763 = vweird.f32 %v757
        %vm764 = vweird.f32 %v758
        %vm765 = vmor %vm763, %vm764
        %v766 = vsel %vm765, %v758, %v762
        %v767 = vand.u32 2147483647, %v757
        %vm768 = vcmp.eq.f32.partialorder %v767, 8.507059e+37
        %v769 = vand.u32 %v757, 2147483648
        %v770 = vor.u32 1.1754944e-38, %v769
        %v771 = vsel %vm768, %v770, %v766
        %v772 = vmul.f32 1.0, %v771
        %v773 = vadd.f32 %v711, %v737
        %v774 = vxor.u32 %v773, 2147483648
        %v775 = vmul.f32 %v774, 1.442695
        %v776 = vpow.pop %v775
        %v777 = vadd.f32 %v776, 1.0
        %v778 = vrcp.pop %v777
        %v779 = vmul.f32 %v777, %v778
        %v780 = vsub.f32 1.0, %v779
        %v781 = vmul.f32 %v778, %v780
        %v782 = vadd.f32 %v778, %v781
        %vm783 = vweird.f32 %v777
        %vm784 = vweird.f32 %v778
        %vm785 = vmor %vm783, %vm784
        %v786 = vsel %vm785, %v778, %v782
        %v787 = vand.u32 2147483647, %v777
        %vm788 = vcmp.eq.f32.partialorder %v787, 8.507059e+37
        %v789 = vand.u32 %v777, 2147483648
        %v790 = vor.u32 1.1754944e-38, %v789
        %v791 = vsel %vm788, %v790, %v786
        %v792 = vmul.f32 1.0, %v791
        %v793 = vadd.f32 %v750, %v323
        %v794 = vmul.f32 %v772, %v793
        %v795 = vadd.f32 %v712, %v794
        %v796 = vtanh.pop %v795
        %v797 = vsub.f32 1.0, %v792
        %v798 = vmul.f32 %v797, %v796
        %v799 = vmul.f32 %v792, %v706
        %v800 = vadd.f32 %v798, %v799
        %s801 = sadd.s32 %s325, 2
        %v802 = vstv %s801
        %vm803 = vcmp.gt.s32.totalorder %v288, %v802
        %v804 = vsel %vm803, 1, 0
        %805 = vset.pattern.permute.xlu0 0
        %806 = vperm.xlu0 %805, %v804
        %v807 = vpop.permute.xlu0 %806
        %vm808 = vcmp.eq.s32.totalorder %v807, 1
        %v809 = vsel %vm808, %v800, 0.0
        %v811 = vrot.slane %v809, 1
        %v812 = vrot.slane %v809, 2
        %v813 = vrot.slane %v809, 3
        %v814 = vrot.slane %v809, 4
        %v815 = vrot.slane %v809, 5
        %v816 = vrot.slane %v809, 6
        %v817 = vrot.slane %v809, 7
        %825 = vst [vmem:[%s280 + $0x2] sm:$0x1] %v809
        %826 = vst [vmem:[%s280 + $0xa] sm:$0x1] %v811
        %827 = vst [vmem:[%s280 + $0x12] sm:$0x1] %v812
        %828 = vst [vmem:[%s280 + $0x1a] sm:$0x1] %v813
        %829 = vst [vmem:[%s280 + $0x22] sm:$0x1] %v814
        %830 = vst [vmem:[%s280 + $0x2a] sm:$0x1] %v815
        %831 = vst [vmem:[%s280 + $0x32] sm:$0x1] %v816
        %832 = vst [vmem:[%s280 + $0x3a] sm:$0x1] %v817
        %v833 = vsel %vm808, %v800, %v706
        %s834 = scalar_lea.vmem %s257, 36 [#allocation3]
        %v835 = vld [vmem:[%s834] sm:$0xff]
        %v836 = vld [vmem:[%s834 + $0x8] sm:$0xf]
        %v837 = vunpack.c.l.bf16 %v835
        %v838 = vunpack.c.h.bf16 %v835
        %v839 = vunpack.c.l.bf16 %v836
        %v840 = vpack.c.bf16 %v833, %v833
        %841 = vmatpush.bf16.msra.mxu0 %v434
        %842 = vmatpush.bf16.msra.mxu0 %v431
        %843 = vmatpush.bf16.msra.mxu0 %v428
        %844 = vmatpush.bf16.msra.mxu0 %v425
        %845 = vmatpush.bf16.msra.mxu0 %v422
        %846 = vmatpush.bf16.msra.mxu0 %v419
        %847 = vmatpush.bf16.msra.mxu0 %v416
        %848 = vmatpush.bf16.msra.mxu0 %v413
        %849 = vmatmul.bf16.gmra.mxu0 %v840
        %v850 = vpop.f32.mrf.mxu0
        %v851 = vadd.f32 0.0, %v850
        %v852 = vpop.f32.mrf.mxu0
        %853 = vdwg.mxu0
        %854 = vmatpush.bf16.msra.mxu0 %v435
        %855 = vmatpush.bf16.msra.mxu0 %v432
        %856 = vmatpush.bf16.msra.mxu0 %v429
        %857 = vmatpush.bf16.msra.mxu0 %v426
        %858 = vmatpush.bf16.msra.mxu0 %v423
        %859 = vmatpush.bf16.msra.mxu0 %v420
        %860 = vmatpush.bf16.msra.mxu0 %v417
        %861 = vmatpush.bf16.msra.mxu0 %v414
        %862 = vmatmul.bf16.gmra.mxu0 %v840
        %v863 = vpop.f32.mrf.mxu0
        %v864 = vadd.f32 0.0, %v863
        %v865 = vpop.f32.mrf.mxu0
        %866 = vdwg.mxu0
        %867 = vmatpush.bf16.msra.mxu0 %v436
        %868 = vmatpush.bf16.msra.mxu0 %v433
        %869 = vmatpush.bf16.msra.mxu0 %v430
        %870 = vmatpush.bf16.msra.mxu0 %v427
        %871 = vmatpush.bf16.msra.mxu0 %v424
        %872 = vmatpush.bf16.msra.mxu0 %v421
        %873 = vmatpush.bf16.msra.mxu0 %v418
        %874 = vmatpush.bf16.msra.mxu0 %v415
        %875 = vmatmul.bf16.gmra.mxu0 %v840
        %v876 = vpop.f32.mrf.mxu0
        %v877 = vadd.f32 0.0, %v876
        %v878 = vpop.f32.mrf.mxu0
        %879 = vdwg.mxu0
        %v880 = vadd.f32 %v837, %v851
        %v881 = vxor.u32 %v880, 2147483648
        %v882 = vmul.f32 %v881, 1.442695
        %v883 = vpow.pop %v882
        %v884 = vadd.f32 %v883, 1.0
        %v885 = vrcp.pop %v884
        %v886 = vmul.f32 %v884, %v885
        %v887 = vsub.f32 1.0, %v886
        %v888 = vmul.f32 %v885, %v887
        %v889 = vadd.f32 %v885, %v888
        %vm890 = vweird.f32 %v884
        %vm891 = vweird.f32 %v885
        %vm892 = vmor %vm890, %vm891
        %v893 = vsel %vm892, %v885, %v889
        %v894 = vand.u32 2147483647, %v884
        %vm895 = vcmp.eq.f32.partialorder %v894, 8.507059e+37
        %v896 = vand.u32 %v884, 2147483648
        %v897 = vor.u32 1.1754944e-38, %v896
        %v898 = vsel %vm895, %v897, %v893
        %v899 = vmul.f32 1.0, %v898
        %v900 = vadd.f32 %v838, %v864
        %v901 = vxor.u32 %v900, 2147483648
        %v902 = vmul.f32 %v901, 1.442695
        %v903 = vpow.pop %v902
        %v904 = vadd.f32 %v903, 1.0
        %v905 = vrcp.pop %v904
        %v906 = vmul.f32 %v904, %v905
        %v907 = vsub.f32 1.0, %v906
        %v908 = vmul.f32 %v905, %v907
        %v909 = vadd.f32 %v905, %v908
        %vm910 = vweird.f32 %v904
        %vm911 = vweird.f32 %v905
        %vm912 = vmor %vm910, %vm911
        %v913 = vsel %vm912, %v905, %v909
        %v914 = vand.u32 2147483647, %v904
        %vm915 = vcmp.eq.f32.partialorder %v914, 8.507059e+37
        %v916 = vand.u32 %v904, 2147483648
        %v917 = vor.u32 1.1754944e-38, %v916
        %v918 = vsel %vm915, %v917, %v913
        %v919 = vmul.f32 1.0, %v918
        %v920 = vadd.f32 %v877, %v323
        %v921 = vmul.f32 %v899, %v920
        %v922 = vadd.f32 %v839, %v921
        %v923 = vtanh.pop %v922
        %v924 = vsub.f32 1.0, %v919
        %v925 = vmul.f32 %v924, %v923
        %v926 = vmul.f32 %v919, %v833
        %v927 = vadd.f32 %v925, %v926
        %s928 = sadd.s32 %s325, 3
        %v929 = vstv %s928
        %vm930 = vcmp.gt.s32.totalorder %v288, %v929
        %v931 = vsel %vm930, 1, 0
        %932 = vset.pattern.permute.xlu0 0
        %933 = vperm.xlu0 %932, %v931
        %v934 = vpop.permute.xlu0 %933
        %vm935 = vcmp.eq.s32.totalorder %v934, 1
        %v936 = vsel %vm935, %v927, 0.0
        %v938 = vrot.slane %v936, 1
        %v939 = vrot.slane %v936, 2
        %v940 = vrot.slane %v936, 3
        %v941 = vrot.slane %v936, 4
        %v942 = vrot.slane %v936, 5
        %v943 = vrot.slane %v936, 6
        %v944 = vrot.slane %v936, 7
        %952 = vst [vmem:[%s280 + $0x3] sm:$0x1] %v936
        %953 = vst [vmem:[%s280 + $0xb] sm:$0x1] %v938
        %954 = vst [vmem:[%s280 + $0x13] sm:$0x1] %v939
        %955 = vst [vmem:[%s280 + $0x1b] sm:$0x1] %v940
        %956 = vst [vmem:[%s280 + $0x23] sm:$0x1] %v941
        %957 = vst [vmem:[%s280 + $0x2b] sm:$0x1] %v942
        %958 = vst [vmem:[%s280 + $0x33] sm:$0x1] %v943
        %959 = vst [vmem:[%s280 + $0x3b] sm:$0x1] %v944
        %v960 = vsel %vm935, %v927, %v833
        %s961 = scalar_lea.vmem %s257, 48 [#allocation3]
        %v962 = vld [vmem:[%s961] sm:$0xff]
        %v963 = vld [vmem:[%s961 + $0x8] sm:$0xf]
        %v964 = vunpack.c.l.bf16 %v962
        %v965 = vunpack.c.h.bf16 %v962
        %v966 = vunpack.c.l.bf16 %v963
        %v967 = vpack.c.bf16 %v960, %v960
        %968 = vmatpush.bf16.msra.mxu0 %v434
        %969 = vmatpush.bf16.msra.mxu0 %v431
        %970 = vmatpush.bf16.msra.mxu0 %v428
        %971 = vmatpush.bf16.msra.mxu0 %v425
        %972 = vmatpush.bf16.msra.mxu0 %v422
        %973 = vmatpush.bf16.msra.mxu0 %v419
        %974 = vmatpush.bf16.msra.mxu0 %v416
        %975 = vmatpush.bf16.msra.mxu0 %v413
        %976 = vmatmul.bf16.gmra.mxu0 %v967
        %v977 = vpop.f32.mrf.mxu0
        %v978 = vadd.f32 0.0, %v977
        %v979 = vpop.f32.mrf.mxu0
        %980 = vdwg.mxu0
        %981 = vmatpush.bf16.msra.mxu0 %v435
        %982 = vmatpush.bf16.msra.mxu0 %v432
        %983 = vmatpush.bf16.msra.mxu0 %v429
        %984 = vmatpush.bf16.msra.mxu0 %v426
        %985 = vmatpush.bf16.msra.mxu0 %v423
        %986 = vmatpush.bf16.msra.mxu0 %v420
        %987 = vmatpush.bf16.msra.mxu0 %v417
        %988 = vmatpush.bf16.msra.mxu0 %v414
        %989 = vmatmul.bf16.gmra.mxu0 %v967
        %v990 = vpop.f32.mrf.mxu0
        %v991 = vadd.f32 0.0, %v990
        %v992 = vpop.f32.mrf.mxu0
        %993 = vdwg.mxu0
        %994 = vmatpush.bf16.msra.mxu0 %v436
        %995 = vmatpush.bf16.msra.mxu0 %v433
        %996 = vmatpush.bf16.msra.mxu0 %v430
        %997 = vmatpush.bf16.msra.mxu0 %v427
        %998 = vmatpush.bf16.msra.mxu0 %v424
        %999 = vmatpush.bf16.msra.mxu0 %v421
        %1000 = vmatpush.bf16.msra.mxu0 %v418
        %1001 = vmatpush.bf16.msra.mxu0 %v415
        %1002 = vmatmul.bf16.gmra.mxu0 %v967
        %v1003 = vpop.f32.mrf.mxu0
        %v1004 = vadd.f32 0.0, %v1003
        %v1005 = vpop.f32.mrf.mxu0
        %1006 = vdwg.mxu0
        %v1007 = vadd.f32 %v964, %v978
        %v1008 = vxor.u32 %v1007, 2147483648
        %v1009 = vmul.f32 %v1008, 1.442695
        %v1010 = vpow.pop %v1009
        %v1011 = vadd.f32 %v1010, 1.0
        %v1012 = vrcp.pop %v1011
        %v1013 = vmul.f32 %v1011, %v1012
        %v1014 = vsub.f32 1.0, %v1013
        %v1015 = vmul.f32 %v1012, %v1014
        %v1016 = vadd.f32 %v1012, %v1015
        %vm1017 = vweird.f32 %v1011
        %vm1018 = vweird.f32 %v1012
        %vm1019 = vmor %vm1017, %vm1018
        %v1020 = vsel %vm1019, %v1012, %v1016
        %v1021 = vand.u32 2147483647, %v1011
        %vm1022 = vcmp.eq.f32.partialorder %v1021, 8.507059e+37
        %v1023 = vand.u32 %v1011, 2147483648
        %v1024 = vor.u32 1.1754944e-38, %v1023
        %v1025 = vsel %vm1022, %v1024, %v1020
        %v1026 = vmul.f32 1.0, %v1025
        %v1027 = vadd.f32 %v965, %v991
        %v1028 = vxor.u32 %v1027, 2147483648
        %v1029 = vmul.f32 %v1028, 1.442695
        %v1030 = vpow.pop %v1029
        %v1031 = vadd.f32 %v1030, 1.0
        %v1032 = vrcp.pop %v1031
        %v1033 = vmul.f32 %v1031, %v1032
        %v1034 = vsub.f32 1.0, %v1033
        %v1035 = vmul.f32 %v1032, %v1034
        %v1036 = vadd.f32 %v1032, %v1035
        %vm1037 = vweird.f32 %v1031
        %vm1038 = vweird.f32 %v1032
        %vm1039 = vmor %vm1037, %vm1038
        %v1040 = vsel %vm1039, %v1032, %v1036
        %v1041 = vand.u32 2147483647, %v1031
        %vm1042 = vcmp.eq.f32.partialorder %v1041, 8.507059e+37
        %v1043 = vand.u32 %v1031, 2147483648
        %v1044 = vor.u32 1.1754944e-38, %v1043
        %v1045 = vsel %vm1042, %v1044, %v1040
        %v1046 = vmul.f32 1.0, %v1045
        %v1047 = vadd.f32 %v1004, %v323
        %v1048 = vmul.f32 %v1026, %v1047
        %v1049 = vadd.f32 %v966, %v1048
        %v1050 = vtanh.pop %v1049
        %v1051 = vsub.f32 1.0, %v1046
        %v1052 = vmul.f32 %v1051, %v1050
        %v1053 = vmul.f32 %v1046, %v960
        %v1054 = vadd.f32 %v1052, %v1053
        %s1055 = sadd.s32 %s325, 4
        %v1056 = vstv %s1055
        %vm1057 = vcmp.gt.s32.totalorder %v288, %v1056
        %v1058 = vsel %vm1057, 1, 0
        %1059 = vset.pattern.permute.xlu0 0
        %1060 = vperm.xlu0 %1059, %v1058
        %v1061 = vpop.permute.xlu0 %1060
        %vm1062 = vcmp.eq.s32.totalorder %v1061, 1
        %v1063 = vsel %vm1062, %v1054, 0.0
        %v1065 = vrot.slane %v1063, 1
        %v1066 = vrot.slane %v1063, 2
        %v1067 = vrot.slane %v1063, 3
        %v1068 = vrot.slane %v1063, 4
        %v1069 = vrot.slane %v1063, 5
        %v1070 = vrot.slane %v1063, 6
        %v1071 = vrot.slane %v1063, 7
        %1079 = vst [vmem:[%s280 + $0x4] sm:$0x1] %v1063
        %1080 = vst [vmem:[%s280 + $0xc] sm:$0x1] %v1065
        %1081 = vst [vmem:[%s280 + $0x14] sm:$0x1] %v1066
        %1082 = vst [vmem:[%s280 + $0x1c] sm:$0x1] %v1067
        %1083 = vst [vmem:[%s280 + $0x24] sm:$0x1] %v1068
        %1084 = vst [vmem:[%s280 + $0x2c] sm:$0x1] %v1069
        %1085 = vst [vmem:[%s280 + $0x34] sm:$0x1] %v1070
        %1086 = vst [vmem:[%s280 + $0x3c] sm:$0x1] %v1071
        %v1087 = vsel %vm1062, %v1054, %v960
        %s1088 = scalar_lea.vmem %s257, 60 [#allocation3]
        %v1089 = vld [vmem:[%s1088] sm:$0xff]
        %v1090 = vld [vmem:[%s1088 + $0x8] sm:$0xf]
        %v1091 = vunpack.c.l.bf16 %v1089
        %v1092 = vunpack.c.h.bf16 %v1089
        %v1093 = vunpack.c.l.bf16 %v1090
        %v1094 = vpack.c.bf16 %v1087, %v1087
        %1095 = vmatpush.bf16.msra.mxu0 %v434
        %1096 = vmatpush.bf16.msra.mxu0 %v431
        %1097 = vmatpush.bf16.msra.mxu0 %v428
        %1098 = vmatpush.bf16.msra.mxu0 %v425
        %1099 = vmatpush.bf16.msra.mxu0 %v422
        %1100 = vmatpush.bf16.msra.mxu0 %v419
        %1101 = vmatpush.bf16.msra.mxu0 %v416
        %1102 = vmatpush.bf16.msra.mxu0 %v413
        %1103 = vmatmul.bf16.gmra.mxu0 %v1094
        %v1104 = vpop.f32.mrf.mxu0
        %v1105 = vadd.f32 0.0, %v1104
        %v1106 = vpop.f32.mrf.mxu0
        %1107 = vdwg.mxu0
        %1108 = vmatpush.bf16.msra.mxu0 %v435
        %1109 = vmatpush.bf16.msra.mxu0 %v432
        %1110 = vmatpush.bf16.msra.mxu0 %v429
        %1111 = vmatpush.bf16.msra.mxu0 %v426
        %1112 = vmatpush.bf16.msra.mxu0 %v423
        %1113 = vmatpush.bf16.msra.mxu0 %v420
        %1114 = vmatpush.bf16.msra.mxu0 %v417
        %1115 = vmatpush.bf16.msra.mxu0 %v414
        %1116 = vmatmul.bf16.gmra.mxu0 %v1094
        %v1117 = vpop.f32.mrf.mxu0
        %v1118 = vadd.f32 0.0, %v1117
        %v1119 = vpop.f32.mrf.mxu0
        %1120 = vdwg.mxu0
        %1121 = vmatpush.bf16.msra.mxu0 %v436
        %1122 = vmatpush.bf16.msra.mxu0 %v433
        %1123 = vmatpush.bf16.msra.mxu0 %v430
        %1124 = vmatpush.bf16.msra.mxu0 %v427
        %1125 = vmatpush.bf16.msra.mxu0 %v424
        %1126 = vmatpush.bf16.msra.mxu0 %v421
        %1127 = vmatpush.bf16.msra.mxu0 %v418
        %1128 = vmatpush.bf16.msra.mxu0 %v415
        %1129 = vmatmul.bf16.gmra.mxu0 %v1094
        %v1130 = vpop.f32.mrf.mxu0
        %v1131 = vadd.f32 0.0, %v1130
        %v1132 = vpop.f32.mrf.mxu0
        %1133 = vdwg.mxu0
        %v1134 = vadd.f32 %v1091, %v1105
        %v1135 = vxor.u32 %v1134, 2147483648
        %v1136 = vmul.f32 %v1135, 1.442695
        %v1137 = vpow.pop %v1136
        %v1138 = vadd.f32 %v1137, 1.0
        %v1139 = vrcp.pop %v1138
        %v1140 = vmul.f32 %v1138, %v1139
        %v1141 = vsub.f32 1.0, %v1140
        %v1142 = vmul.f32 %v1139, %v1141
        %v1143 = vadd.f32 %v1139, %v1142
        %vm1144 = vweird.f32 %v1138
        %vm1145 = vweird.f32 %v1139
        %vm1146 = vmor %vm1144, %vm1145
        %v1147 = vsel %vm1146, %v1139, %v1143
        %v1148 = vand.u32 2147483647, %v1138
        %vm1149 = vcmp.eq.f32.partialorder %v1148, 8.507059e+37
        %v1150 = vand.u32 %v1138, 2147483648
        %v1151 = vor.u32 1.1754944e-38, %v1150
        %v1152 = vsel %vm1149, %v1151, %v1147
        %v1153 = vmul.f32 1.0, %v1152
        %v1154 = vadd.f32 %v1092, %v1118
        %v1155 = vxor.u32 %v1154, 2147483648
        %v1156 = vmul.f32 %v1155, 1.442695
        %v1157 = vpow.pop %v1156
        %v1158 = vadd.f32 %v1157, 1.0
        %v1159 = vrcp.pop %v1158
        %v1160 = vmul.f32 %v1158, %v1159
        %v1161 = vsub.f32 1.0, %v1160
        %v1162 = vmul.f32 %v1159, %v1161
        %v1163 = vadd.f32 %v1159, %v1162
        %vm1164 = vweird.f32 %v1158
        %vm1165 = vweird.f32 %v1159
        %vm1166 = vmor %vm1164, %vm1165
        %v1167 = vsel %vm1166, %v1159, %v1163
        %v1168 = vand.u32 2147483647, %v1158
        %vm1169 = vcmp.eq.f32.partialorder %v1168, 8.507059e+37
        %v1170 = vand.u32 %v1158, 2147483648
        %v1171 = vor.u32 1.1754944e-38, %v1170
        %v1172 = vsel %vm1169, %v1171, %v1167
        %v1173 = vmul.f32 1.0, %v1172
        %v1174 = vadd.f32 %v1131, %v323
        %v1175 = vmul.f32 %v1153, %v1174
        %v1176 = vadd.f32 %v1093, %v1175
        %v1177 = vtanh.pop %v1176
        %v1178 = vsub.f32 1.0, %v1173
        %v1179 = vmul.f32 %v1178, %v1177
        %v1180 = vmul.f32 %v1173, %v1087
        %v1181 = vadd.f32 %v1179, %v1180
        %s1182 = sadd.s32 %s325, 5
        %v1183 = vstv %s1182
        %vm1184 = vcmp.gt.s32.totalorder %v288, %v1183
        %v1185 = vsel %vm1184, 1, 0
        %1186 = vset.pattern.permute.xlu0 0
        %1187 = vperm.xlu0 %1186, %v1185
        %v1188 = vpop.permute.xlu0 %1187
        %vm1189 = vcmp.eq.s32.totalorder %v1188, 1
        %v1190 = vsel %vm1189, %v1181, 0.0
        %v1192 = vrot.slane %v1190, 1
        %v1193 = vrot.slane %v1190, 2
        %v1194 = vrot.slane %v1190, 3
        %v1195 = vrot.slane %v1190, 4
        %v1196 = vrot.slane %v1190, 5
        %v1197 = vrot.slane %v1190, 6
        %v1198 = vrot.slane %v1190, 7
        %1206 = vst [vmem:[%s280 + $0x5] sm:$0x1] %v1190
        %1207 = vst [vmem:[%s280 + $0xd] sm:$0x1] %v1192
        %1208 = vst [vmem:[%s280 + $0x15] sm:$0x1] %v1193
        %1209 = vst [vmem:[%s280 + $0x1d] sm:$0x1] %v1194
        %1210 = vst [vmem:[%s280 + $0x25] sm:$0x1] %v1195
        %1211 = vst [vmem:[%s280 + $0x2d] sm:$0x1] %v1196
        %1212 = vst [vmem:[%s280 + $0x35] sm:$0x1] %v1197
        %1213 = vst [vmem:[%s280 + $0x3d] sm:$0x1] %v1198
        %v1214 = vsel %vm1189, %v1181, %v1087
        %s1215 = scalar_lea.vmem %s257, 72 [#allocation3]
        %v1216 = vld [vmem:[%s1215] sm:$0xff]
        %v1217 = vld [vmem:[%s1215 + $0x8] sm:$0xf]
        %v1218 = vunpack.c.l.bf16 %v1216
        %v1219 = vunpack.c.h.bf16 %v1216
        %v1220 = vunpack.c.l.bf16 %v1217
        %v1221 = vpack.c.bf16 %v1214, %v1214
        %1222 = vmatpush.bf16.msra.mxu0 %v434
        %1223 = vmatpush.bf16.msra.mxu0 %v431
        %1224 = vmatpush.bf16.msra.mxu0 %v428
        %1225 = vmatpush.bf16.msra.mxu0 %v425
        %1226 = vmatpush.bf16.msra.mxu0 %v422
        %1227 = vmatpush.bf16.msra.mxu0 %v419
        %1228 = vmatpush.bf16.msra.mxu0 %v416
        %1229 = vmatpush.bf16.msra.mxu0 %v413
        %1230 = vmatmul.bf16.gmra.mxu0 %v1221
        %v1231 = vpop.f32.mrf.mxu0
        %v1232 = vadd.f32 0.0, %v1231
        %v1233 = vpop.f32.mrf.mxu0
        %1234 = vdwg.mxu0
        %1235 = vmatpush.bf16.msra.mxu0 %v435
        %1236 = vmatpush.bf16.msra.mxu0 %v432
        %1237 = vmatpush.bf16.msra.mxu0 %v429
        %1238 = vmatpush.bf16.msra.mxu0 %v426
        %1239 = vmatpush.bf16.msra.mxu0 %v423
        %1240 = vmatpush.bf16.msra.mxu0 %v420
        %1241 = vmatpush.bf16.msra.mxu0 %v417
        %1242 = vmatpush.bf16.msra.mxu0 %v414
        %1243 = vmatmul.bf16.gmra.mxu0 %v1221
        %v1244 = vpop.f32.mrf.mxu0
        %v1245 = vadd.f32 0.0, %v1244
        %v1246 = vpop.f32.mrf.mxu0
        %1247 = vdwg.mxu0
        %1248 = vmatpush.bf16.msra.mxu0 %v436
        %1249 = vmatpush.bf16.msra.mxu0 %v433
        %1250 = vmatpush.bf16.msra.mxu0 %v430
        %1251 = vmatpush.bf16.msra.mxu0 %v427
        %1252 = vmatpush.bf16.msra.mxu0 %v424
        %1253 = vmatpush.bf16.msra.mxu0 %v421
        %1254 = vmatpush.bf16.msra.mxu0 %v418
        %1255 = vmatpush.bf16.msra.mxu0 %v415
        %1256 = vmatmul.bf16.gmra.mxu0 %v1221
        %v1257 = vpop.f32.mrf.mxu0
        %v1258 = vadd.f32 0.0, %v1257
        %v1259 = vpop.f32.mrf.mxu0
        %1260 = vdwg.mxu0
        %v1261 = vadd.f32 %v1218, %v1232
        %v1262 = vxor.u32 %v1261, 2147483648
        %v1263 = vmul.f32 %v1262, 1.442695
        %v1264 = vpow.pop %v1263
        %v1265 = vadd.f32 %v1264, 1.0
        %v1266 = vrcp.pop %v1265
        %v1267 = vmul.f32 %v1265, %v1266
        %v1268 = vsub.f32 1.0, %v1267
        %v1269 = vmul.f32 %v1266, %v1268
        %v1270 = vadd.f32 %v1266, %v1269
        %vm1271 = vweird.f32 %v1265
        %vm1272 = vweird.f32 %v1266
        %vm1273 = vmor %vm1271, %vm1272
        %v1274 = vsel %vm1273, %v1266, %v1270
        %v1275 = vand.u32 2147483647, %v1265
        %vm1276 = vcmp.eq.f32.partialorder %v1275, 8.507059e+37
        %v1277 = vand.u32 %v1265, 2147483648
        %v1278 = vor.u32 1.1754944e-38, %v1277
        %v1279 = vsel %vm1276, %v1278, %v1274
        %v1280 = vmul.f32 1.0, %v1279
        %v1281 = vadd.f32 %v1219, %v1245
        %v1282 = vxor.u32 %v1281, 2147483648
        %v1283 = vmul.f32 %v1282, 1.442695
        %v1284 = vpow.pop %v1283
        %v1285 = vadd.f32 %v1284, 1.0
        %v1286 = vrcp.pop %v1285
        %v1287 = vmul.f32 %v1285, %v1286
        %v1288 = vsub.f32 1.0, %v1287
        %v1289 = vmul.f32 %v1286, %v1288
        %v1290 = vadd.f32 %v1286, %v1289
        %vm1291 = vweird.f32 %v1285
        %vm1292 = vweird.f32 %v1286
        %vm1293 = vmor %vm1291, %vm1292
        %v1294 = vsel %vm1293, %v1286, %v1290
        %v1295 = vand.u32 2147483647, %v1285
        %vm1296 = vcmp.eq.f32.partialorder %v1295, 8.507059e+37
        %v1297 = vand.u32 %v1285, 2147483648
        %v1298 = vor.u32 1.1754944e-38, %v1297
        %v1299 = vsel %vm1296, %v1298, %v1294
        %v1300 = vmul.f32 1.0, %v1299
        %v1301 = vadd.f32 %v1258, %v323
        %v1302 = vmul.f32 %v1280, %v1301
        %v1303 = vadd.f32 %v1220, %v1302
        %v1304 = vtanh.pop %v1303
        %v1305 = vsub.f32 1.0, %v1300
        %v1306 = vmul.f32 %v1305, %v1304
        %v1307 = vmul.f32 %v1300, %v1214
        %v1308 = vadd.f32 %v1306, %v1307
        %s1309 = sadd.s32 %s325, 6
        %v1310 = vstv %s1309
        %vm1311 = vcmp.gt.s32.totalorder %v288, %v1310
        %v1312 = vsel %vm1311, 1, 0
        %1313 = vset.pattern.permute.xlu0 0
        %1314 = vperm.xlu0 %1313, %v1312
        %v1315 = vpop.permute.xlu0 %1314
        %vm1316 = vcmp.eq.s32.totalorder %v1315, 1
        %v1317 = vsel %vm1316, %v1308, 0.0
        %v1319 = vrot.slane %v1317, 1
        %v1320 = vrot.slane %v1317, 2
        %v1321 = vrot.slane %v1317, 3
        %v1322 = vrot.slane %v1317, 4
        %v1323 = vrot.slane %v1317, 5
        %v1324 = vrot.slane %v1317, 6
        %v1325 = vrot.slane %v1317, 7
        %1333 = vst [vmem:[%s280 + $0x6] sm:$0x1] %v1317
        %1334 = vst [vmem:[%s280 + $0xe] sm:$0x1] %v1319
        %1335 = vst [vmem:[%s280 + $0x16] sm:$0x1] %v1320
        %1336 = vst [vmem:[%s280 + $0x1e] sm:$0x1] %v1321
        %1337 = vst [vmem:[%s280 + $0x26] sm:$0x1] %v1322
        %1338 = vst [vmem:[%s280 + $0x2e] sm:$0x1] %v1323
        %1339 = vst [vmem:[%s280 + $0x36] sm:$0x1] %v1324
        %1340 = vst [vmem:[%s280 + $0x3e] sm:$0x1] %v1325
        %v1341 = vsel %vm1316, %v1308, %v1214
        %s1342 = scalar_lea.vmem %s257, 84 [#allocation3]
        %v1343 = vld [vmem:[%s1342] sm:$0xff]
        %v1344 = vld [vmem:[%s1342 + $0x8] sm:$0xf]
        %v1345 = vunpack.c.l.bf16 %v1343
        %v1346 = vunpack.c.h.bf16 %v1343
        %v1347 = vunpack.c.l.bf16 %v1344
        %v1348 = vpack.c.bf16 %v1341, %v1341
        %1349 = vmatpush.bf16.msra.mxu0 %v434
        %1350 = vmatpush.bf16.msra.mxu0 %v431
        %1351 = vmatpush.bf16.msra.mxu0 %v428
        %1352 = vmatpush.bf16.msra.mxu0 %v425
        %1353 = vmatpush.bf16.msra.mxu0 %v422
        %1354 = vmatpush.bf16.msra.mxu0 %v419
        %1355 = vmatpush.bf16.msra.mxu0 %v416
        %1356 = vmatpush.bf16.msra.mxu0 %v413
        %1357 = vmatmul.bf16.gmra.mxu0 %v1348
        %v1358 = vpop.f32.mrf.mxu0
        %v1359 = vadd.f32 0.0, %v1358
        %v1360 = vpop.f32.mrf.mxu0
        %1361 = vdwg.mxu0
        %1362 = vmatpush.bf16.msra.mxu0 %v435
        %1363 = vmatpush.bf16.msra.mxu0 %v432
        %1364 = vmatpush.bf16.msra.mxu0 %v429
        %1365 = vmatpush.bf16.msra.mxu0 %v426
        %1366 = vmatpush.bf16.msra.mxu0 %v423
        %1367 = vmatpush.bf16.msra.mxu0 %v420
        %1368 = vmatpush.bf16.msra.mxu0 %v417
        %1369 = vmatpush.bf16.msra.mxu0 %v414
        %1370 = vmatmul.bf16.gmra.mxu0 %v1348
        %v1371 = vpop.f32.mrf.mxu0
        %v1372 = vadd.f32 0.0, %v1371
        %v1373 = vpop.f32.mrf.mxu0
        %1374 = vdwg.mxu0
        %1375 = vmatpush.bf16.msra.mxu0 %v436
        %1376 = vmatpush.bf16.msra.mxu0 %v433
        %1377 = vmatpush.bf16.msra.mxu0 %v430
        %1378 = vmatpush.bf16.msra.mxu0 %v427
        %1379 = vmatpush.bf16.msra.mxu0 %v424
        %1380 = vmatpush.bf16.msra.mxu0 %v421
        %1381 = vmatpush.bf16.msra.mxu0 %v418
        %1382 = vmatpush.bf16.msra.mxu0 %v415
        %1383 = vmatmul.bf16.gmra.mxu0 %v1348
        %v1384 = vpop.f32.mrf.mxu0
        %v1385 = vadd.f32 0.0, %v1384
        %v1386 = vpop.f32.mrf.mxu0
        %1387 = vdwg.mxu0
        %v1388 = vadd.f32 %v1345, %v1359
        %v1389 = vxor.u32 %v1388, 2147483648
        %v1390 = vmul.f32 %v1389, 1.442695
        %v1391 = vpow.pop %v1390
        %v1392 = vadd.f32 %v1391, 1.0
        %v1393 = vrcp.pop %v1392
        %v1394 = vmul.f32 %v1392, %v1393
        %v1395 = vsub.f32 1.0, %v1394
        %v1396 = vmul.f32 %v1393, %v1395
        %v1397 = vadd.f32 %v1393, %v1396
        %vm1398 = vweird.f32 %v1392
        %vm1399 = vweird.f32 %v1393
        %vm1400 = vmor %vm1398, %vm1399
        %v1401 = vsel %vm1400, %v1393, %v1397
        %v1402 = vand.u32 2147483647, %v1392
        %vm1403 = vcmp.eq.f32.partialorder %v1402, 8.507059e+37
        %v1404 = vand.u32 %v1392, 2147483648
        %v1405 = vor.u32 1.1754944e-38, %v1404
        %v1406 = vsel %vm1403, %v1405, %v1401
        %v1407 = vmul.f32 1.0, %v1406
        %v1408 = vadd.f32 %v1346, %v1372
        %v1409 = vxor.u32 %v1408, 2147483648
        %v1410 = vmul.f32 %v1409, 1.442695
        %v1411 = vpow.pop %v1410
        %v1412 = vadd.f32 %v1411, 1.0
        %v1413 = vrcp.pop %v1412
        %v1414 = vmul.f32 %v1412, %v1413
        %v1415 = vsub.f32 1.0, %v1414
        %v1416 = vmul.f32 %v1413, %v1415
        %v1417 = vadd.f32 %v1413, %v1416
        %vm1418 = vweird.f32 %v1412
        %vm1419 = vweird.f32 %v1413
        %vm1420 = vmor %vm1418, %vm1419
        %v1421 = vsel %vm1420, %v1413, %v1417
        %v1422 = vand.u32 2147483647, %v1412
        %vm1423 = vcmp.eq.f32.partialorder %v1422, 8.507059e+37
        %v1424 = vand.u32 %v1412, 2147483648
        %v1425 = vor.u32 1.1754944e-38, %v1424
        %v1426 = vsel %vm1423, %v1425, %v1421
        %v1427 = vmul.f32 1.0, %v1426
        %v1428 = vadd.f32 %v1385, %v323
        %v1429 = vmul.f32 %v1407, %v1428
        %v1430 = vadd.f32 %v1347, %v1429
        %v1431 = vtanh.pop %v1430
        %v1432 = vsub.f32 1.0, %v1427
        %v1433 = vmul.f32 %v1432, %v1431
        %v1434 = vmul.f32 %v1427, %v1341
        %v1435 = vadd.f32 %v1433, %v1434
        %s1436 = sadd.s32 %s325, 7
        %v1437 = vstv %s1436
        %vm1438 = vcmp.gt.s32.totalorder %v288, %v1437
        %v1439 = vsel %vm1438, 1, 0
        %1440 = vset.pattern.permute.xlu0 0
        %1441 = vperm.xlu0 %1440, %v1439
        %v1442 = vpop.permute.xlu0 %1441
        %vm1443 = vcmp.eq.s32.totalorder %v1442, 1
        %v1444 = vsel %vm1443, %v1435, 0.0
        %v1446 = vrot.slane %v1444, 1
        %v1447 = vrot.slane %v1444, 2
        %v1448 = vrot.slane %v1444, 3
        %v1449 = vrot.slane %v1444, 4
        %v1450 = vrot.slane %v1444, 5
        %v1451 = vrot.slane %v1444, 6
        %v1452 = vrot.slane %v1444, 7
        %1460 = vst [vmem:[%s280 + $0x7] sm:$0x1] %v1444
        %1461 = vst [vmem:[%s280 + $0xf] sm:$0x1] %v1446
        %1462 = vst [vmem:[%s280 + $0x17] sm:$0x1] %v1447
        %1463 = vst [vmem:[%s280 + $0x1f] sm:$0x1] %v1448
        %1464 = vst [vmem:[%s280 + $0x27] sm:$0x1] %v1449
        %1465 = vst [vmem:[%s280 + $0x2f] sm:$0x1] %v1450
        %1466 = vst [vmem:[%s280 + $0x37] sm:$0x1] %v1451
        %1467 = vst [vmem:[%s280 + $0x3f] sm:$0x1] %v1452
        %v1468 = vsel %vm1443, %v1435, %v1341
        %1469 = vst [vmem:[#allocation2] sm:$0xff] %v1468
        %s1470 = sand.u32 %s134, 1
        %s1471 = sand.u32 %s134, 1
        %s1472 = smul.addr %s1471, 64
        %s1473 = scalar_lea.vmem [#allocation4], %s1472
        // Predicated region
        $region71: #{sentence_vae_forward.6} parent=61 // pred_check
          %p1474 = pneg %p144
        $region72: #{sentence_vae_forward.6} parent=61 // pred_check_branch
          %1476 = sbr.rel (%p1474) target = $region74
        $region73: #{sentence_vae_forward.6} parent=61 // pred_region
          %s1477 = smul.addr %s16, 8
          %s1478 = scalar_lea.vmem %s5, %s1477
          // Predicated region
          $region75: #{sentence_vae_forward.6} parent=73 // pred_check
            _
          $region76: #{sentence_vae_forward.6} parent=73 // pred_check_branch
            %1480 = sbr.rel (0) target = $region78
          $region77: #{sentence_vae_forward.6} parent=73 // pred_region
            // Predicated region
            $region79: #{sentence_vae_forward.6} parent=77 // pred_check
              _
            $region80: #{sentence_vae_forward.6} parent=77 // pred_check_branch
              %1482 = sbr.rel (0) target = $region82
            $region81: #{sentence_vae_forward.6} parent=77 // pred_region
              // Predicated region
              $region94: #{sentence_vae_forward.6} parent=81 // pred_check
                _
              $region95: #{sentence_vae_forward.6} parent=81 // pred_check_branch
                %1512 = sbr.rel (0) target = $region97
              $region96: #{sentence_vae_forward.6} parent=81 // pred_region
                loop: start=0, step=1, limit=1
                $region98: #{sentence_vae_forward.6} parent=96 // loop_pre_header
                  _
                $region99: #{sentence_vae_forward.6} parent=96 // loop_header
                  %s1514 = sphi 0, %s1518
                  %p1515 = scmp.ge.s32.totalorder %s1514, 1
                  %s1519 = sphi %s1473, %s1473
                  %s1520 = sphi %s1478, %s1478
                $region100: #{sentence_vae_forward.6} parent=96 // loop_header_branch
                  %1517 = sbr.rel (%p1515) target = $region104
                $region101: #{sentence_vae_forward.6} parent=96 // loop_body
                  %v1521 = vld [vmem:[%s1519] sm:$0xff]
                  %1522 = vst [vmem:[%s1520] sm:$0xff] %v1521
                  %v1523 = vld [vmem:[%s1519 + $0x8] sm:$0xff]
                  %1524 = vst [vmem:[%s1520 + $0x10] sm:$0xff] %v1523
                  %v1525 = vld [vmem:[%s1519 + $0x10] sm:$0xff]
                  %1526 = vst [vmem:[%s1520 + $0x20] sm:$0xff] %v1525
                  %v1527 = vld [vmem:[%s1519 + $0x18] sm:$0xff]
                  %1528 = vst [vmem:[%s1520 + $0x30] sm:$0xff] %v1527
                  %v1529 = vld [vmem:[%s1519 + $0x20] sm:$0xff]
                  %1530 = vst [vmem:[%s1520 + $0x40] sm:$0xff] %v1529
                  %v1531 = vld [vmem:[%s1519 + $0x28] sm:$0xff]
                  %1532 = vst [vmem:[%s1520 + $0x50] sm:$0xff] %v1531
                  %v1533 = vld [vmem:[%s1519 + $0x30] sm:$0xff]
                  %1534 = vst [vmem:[%s1520 + $0x60] sm:$0xff] %v1533
                  %v1535 = vld [vmem:[%s1519 + $0x38] sm:$0xff]
                  %1536 = vst [vmem:[%s1520 + $0x70] sm:$0xff] %v1535
                $region102: #{sentence_vae_forward.6} parent=96 // loop_footer
                  %s1518 = sadd.s32 1, %s1514
                $region103: #{sentence_vae_forward.6} parent=96 // loop_footer_branch
                  %1513 = sbr.rel target = $region99
                $region104: #{sentence_vae_forward.6} parent=96 // loop_exit
                  _
              $region97: #{sentence_vae_forward.6} parent=81 // pred_fallthru
                _
              // Predicated region
              $region105: #{sentence_vae_forward.6} parent=81 // pred_check
                _
              $region106: #{sentence_vae_forward.6} parent=81 // pred_check_branch
                %1538 = sbr.rel target = $region108
              $region107: #{sentence_vae_forward.6} parent=81 // pred_region
                _
              $region108: #{sentence_vae_forward.6} parent=81 // pred_fallthru
                _
            $region82: #{sentence_vae_forward.6} parent=77 // pred_fallthru
              _
            // Predicated region
            $region83: #{sentence_vae_forward.6} parent=77 // pred_check
              _
            $region84: #{sentence_vae_forward.6} parent=77 // pred_check_branch
              %1484 = sbr.rel target = $region86
            $region85: #{sentence_vae_forward.6} parent=77 // pred_region
              %s1486 = ssub.s32 256, 1
              loop: start=0, step=1, limit=1
              $region87: #{sentence_vae_forward.6} parent=85 // loop_pre_header
                _
              $region88: #{sentence_vae_forward.6} parent=85 // loop_header
                %s1488 = sphi 0, %s1492
                %p1489 = scmp.ge.s32.totalorder %s1488, 1
                %s1493 = sphi %s1473, %s1473
                %s1494 = sphi %s1478, %s1478
              $region89: #{sentence_vae_forward.6} parent=85 // loop_header_branch
                %1491 = sbr.rel (%p1489) target = $region93
              $region90: #{sentence_vae_forward.6} parent=85 // loop_body
                %v1495 = vld [vmem:[%s1493] sm:%s1486]
                %1496 = vst [vmem:[%s1494] sm:%s1486] %v1495
                %v1497 = vld [vmem:[%s1493 + $0x8] sm:%s1486]
                %1498 = vst [vmem:[%s1494 + $0x10] sm:%s1486] %v1497
                %v1499 = vld [vmem:[%s1493 + $0x10] sm:%s1486]
                %1500 = vst [vmem:[%s1494 + $0x20] sm:%s1486] %v1499
                %v1501 = vld [vmem:[%s1493 + $0x18] sm:%s1486]
                %1502 = vst [vmem:[%s1494 + $0x30] sm:%s1486] %v1501
                %v1503 = vld [vmem:[%s1493 + $0x20] sm:%s1486]
                %1504 = vst [vmem:[%s1494 + $0x40] sm:%s1486] %v1503
                %v1505 = vld [vmem:[%s1493 + $0x28] sm:%s1486]
                %1506 = vst [vmem:[%s1494 + $0x50] sm:%s1486] %v1505
                %v1507 = vld [vmem:[%s1493 + $0x30] sm:%s1486]
                %1508 = vst [vmem:[%s1494 + $0x60] sm:%s1486] %v1507
                %v1509 = vld [vmem:[%s1493 + $0x38] sm:%s1486]
                %1510 = vst [vmem:[%s1494 + $0x70] sm:%s1486] %v1509
              $region91: #{sentence_vae_forward.6} parent=85 // loop_footer
                %s1492 = sadd.s32 1, %s1488
              $region92: #{sentence_vae_forward.6} parent=85 // loop_footer_branch
                %1487 = sbr.rel target = $region88
              $region93: #{sentence_vae_forward.6} parent=85 // loop_exit
                _
            $region86: #{sentence_vae_forward.6} parent=77 // pred_fallthru
              _
          $region78: #{sentence_vae_forward.6} parent=73 // pred_fallthru
            _
          %1539 = vnop
        $region74: #{sentence_vae_forward.6} parent=61 // pred_fallthru
          _
      $region62: #{sentence_vae_forward.6} parent=5 // pred_fallthru
        _
      %p1540 = scmp.le.s32.totalorder 2, %s11
      // Predicated region
      $region109: #{sentence_vae_forward.6} parent=5 // pred_check
        %p1541 = pneg %p1540
      $region110: #{sentence_vae_forward.6} parent=5 // pred_check_branch
        %1543 = sbr.rel (%p1541) target = $region112
      $region111: #{sentence_vae_forward.6} parent=5 // pred_region
        %s1544 = ssub.s32 %s11, 2
        // Predicated region
        $region113: #{sentence_vae_forward.6} parent=111 // pred_check
          %p1545 = pneg %p150
        $region114: #{sentence_vae_forward.6} parent=111 // pred_check_branch
          %1547 = sbr.rel (%p1545) target = $region116
        $region115: #{sentence_vae_forward.6} parent=111 // pred_region
          %s1548 = sand.u32 %s135, 1
          %s1549 = sand.u32 %s135, 1
          %s1550 = smul.addr %s1549, 64
          %s1551 = scalar_lea.vmem [#allocation4], %s1550
        $region116: #{sentence_vae_forward.6} parent=111 // pred_fallthru
          _
      $region112: #{sentence_vae_forward.6} parent=5 // pred_fallthru
        _
    $region6: #{sentence_vae_forward.6} parent=1 // loop_footer
      %s15 = sadd.s32 1, %s11
    $region7: #{sentence_vae_forward.6} parent=1 // loop_footer_branch
      %10 = sbr.rel target = $region3
    $region8: #{sentence_vae_forward.6} parent=1 // loop_exit
      _

</llo_original>
